<compile_context>
chip_gen: v6e
topology: v6e:2x2x1
jax: 0.10.0
libtpu: 0.0.40
codegen_flags: <defaults>
</compile_context>

<pallas_src>
import functools

import jax
import jax.numpy as jnp
from jax import lax
from jax.experimental import pallas as pl
from jax.experimental.pallas import tpu as pltpu

DIM = 64
EPS = 1e-5

# Output row parity a uses input-row taps (kh, oh), where oh is the row offset
# into the (conceptually) zero-padded input. Columns are the mirror image:
#   col parity 0: (kw=1, ow=1), (kw=3, ow=0);  col parity 1: (kw=2, ow=1), (kw=0, ow=2).
_ROW_TAPS = {0: ((1, 1), (3, 0)), 1: ((2, 1), (0, 2))}


# ---------------- fused Linear + ReLU + BatchNorm1d ----------------
def _linear_relu_bn_kernel(x_ref, w_ref, b_ref, g_ref, beta_ref, o_ref):
    B = x_ref.shape[0]
    x = x_ref[...].astype(jnp.bfloat16)                   # tiny (B, K) cast
    h = jnp.dot(x, w_ref[...], preferred_element_type=jnp.float32) + b_ref[...]
    h = jnp.maximum(h, 0.0)                               # ReLU before BN (reference order)
    # NOTE: per-feature batch stats are exact because the grid tiles FEATURES,
    # never the batch axis. Do not tile this kernel over batch.
    inv_b = 1.0 / B
    s1 = jnp.sum(h, axis=0, keepdims=True)
    s2 = jnp.sum(h * h, axis=0, keepdims=True)
    mu = s1 * inv_b
    var = jnp.maximum(s2 * inv_b - mu * mu, 0.0)          # single-pass variance
    scale = lax.rsqrt(var + EPS) * g_ref[...]
    o_ref[...] = h * scale + (beta_ref[...] - mu * scale)


def linear_relu_bn(x, w_t, b, gamma, beta, *, tile_n=8192):
    B, K = x.shape
    N = w_t.shape[1]
    assert N % tile_n == 0
    # N=16384, tile_n=8192 -> 2 "parallel" grid steps: keeps v7x megacore able to
    # split the dominant weight read across both TensorCores.
    return pl.pallas_call(
        _linear_relu_bn_kernel,
        out_shape=jax.ShapeDtypeStruct((B, N), jnp.float32),
        grid=(N // tile_n,),
        in_specs=[
            pl.BlockSpec((B, K), lambda j: (0, 0)),
            pl.BlockSpec((K, tile_n), lambda j: (0, j)),
            pl.BlockSpec((1, tile_n), lambda j: (0, j)),
            pl.BlockSpec((1, tile_n), lambda j: (0, j)),
            pl.BlockSpec((1, tile_n), lambda j: (0, j)),
        ],
        out_specs=pl.BlockSpec((B, tile_n), lambda j: (0, j)),
        compiler_params=pltpu.CompilerParams(
            dimension_semantics=("parallel",),
            vmem_limit_bytes=24 * 1024 * 1024),
    )(x, w_t, b, gamma, beta)


# -------- fused ConvTranspose2d(4,2,1) [+ ReLU + BatchNorm2d | + Tanh] --------
def _convt_kernel(x_ref, wm_ref, wl_ref, wr_ref, b2_ref, g2_ref, bt2_ref, o_ref,
                  *, H, W, cout, relu_bn, tanh_out):
    f32 = jnp.float32
    B = x_ref.shape[0]
    cin = x_ref.shape[3]
    BHW = B * H * W
    two_cout = 2 * cout

    # Flattened activation: (B, H, W, Cin) -> (B*H*W, Cin) is a free row-major
    # merge (W is a multiple of 8, Cin unchanged).
    x2 = x_ref[...].reshape(BHW, cin)

    # Flat-row bookkeeping (H, W are powers of two).
    ridx = lax.broadcasted_iota(jnp.int32, (BHW, 1), 0)
    w_pos = ridx & (W - 1)                                 # column index within a row
    hw_pos = ridx & (H * W - 1)                            # position within one image
    not_w_first = w_pos > 0
    not_w_last = w_pos < (W - 1)
    not_h_first = hw_pos >= W
    not_h_last = hw_pos < (H - 1) * W

    outs = []
    for a in (0, 1):
        # Second row tap: previous input row for parity 0, next row for parity 1.
        # The circular roll's wrapped rows land exactly on the masked positions.
        if a == 0:
            tap2 = jnp.where(not_h_first, pltpu.roll(x2, shift=W, axis=0), 0.0)
        else:
            tap2 = jnp.where(not_h_last, pltpu.roll(x2, shift=BHW - W, axis=0), 0.0)
        lhs_mid = jnp.concatenate([x2, tap2], axis=-1)                      # (BHW, 2*Cin)
        # Column-shifted variants via sublane roll + boundary mask.
        lhs_l = jnp.where(not_w_first, pltpu.roll(lhs_mid, shift=1, axis=0), 0.0)
        lhs_r = jnp.where(not_w_last, pltpu.roll(lhs_mid, shift=BHW - 1, axis=0), 0.0)

        acc = (jnp.dot(lhs_mid, wm_ref[a].astype(f32), preferred_element_type=f32)
               + jnp.dot(lhs_l, wl_ref[a].astype(f32), preferred_element_type=f32)
               + jnp.dot(lhs_r, wr_ref[a].astype(f32), preferred_element_type=f32)
               + b2_ref[...])                                               # (BHW, 2*Cout)
        outs.append(acc)

    if relu_bn:
        v0 = jnp.maximum(outs[0], 0.0)                     # ReLU before BN (reference order)
        v1 = jnp.maximum(outs[1], 0.0)
        # Single-pass batch stats over B*2H*2W samples per channel; the channel
        # set is duplicated across the two lane halves (column parities).
        n_total = 4.0 * BHW
        s1 = jnp.sum(v0, axis=0, keepdims=True) + jnp.sum(v1, axis=0, keepdims=True)
        s2 = jnp.sum(v0 * v0, axis=0, keepdims=True) + jnp.sum(v1 * v1, axis=0, keepdims=True)
        mean_c = (s1[:, :cout] + s1[:, cout:]) / n_total
        ex2_c = (s2[:, :cout] + s2[:, cout:]) / n_total
        var_c = jnp.maximum(ex2_c - mean_c * mean_c, 0.0)
        inv_c = lax.rsqrt(var_c + EPS)
        mean2 = jnp.concatenate([mean_c, mean_c], axis=-1)
        inv2 = jnp.concatenate([inv_c, inv_c], axis=-1)
        scale = inv2 * g2_ref[...]
        shift = bt2_ref[...] - mean2 * scale
        outs = [v0 * scale + shift, v1 * scale + shift]
    if tanh_out:
        outs = [jnp.tanh(v) for v in outs]

    # Output layout (B, H, 2, W, 2*Cout): the 2x2 parity interleave to
    # (B, 2H, 2W, Cout) is a free row-major reshape in the wrapper.
    for a in (0, 1):
        o_ref[:, :, a:a + 1, :, :] = outs[a].reshape(B, H, 1, W, two_cout)


def conv_transpose_block(x_nhwc, wm, wl, wr, b2, g2, bt2, *, relu_bn, tanh_out):
    """Fused ConvTranspose2d(kernel=4, stride=2, pad=1) [+ReLU+BN2d | +Tanh] on NHWC input."""
    B, H, W, cin = x_nhwc.shape
    two_cout = wm.shape[-1]
    two_cin = wm.shape[1]
    cout = two_cout // 2
    assert (H & (H - 1)) == 0 and (W & (W - 1)) == 0, "H, W must be powers of two"
    kernel = functools.partial(_convt_kernel, H=H, W=W, cout=cout,
                               relu_bn=relu_bn, tanh_out=tanh_out)
    out_shape = jax.ShapeDtypeStruct((B, H, 2, W, two_cout), jnp.float32)

    if relu_bn:
        # Fused batch-statistics BN couples all batch elements -> single invocation.
        # TODO(synk): batch-tiled two-pass BN + "parallel" grid for training-scale
        # batches (needed to respect v7x's 64 MiB/TC VMEM at large B).
        vmem = pl.BlockSpec(memory_space=pltpu.MemorySpace.VMEM)
        out = pl.pallas_call(
            kernel,
            out_shape=out_shape,
            in_specs=[vmem] * 7,
            out_specs=vmem,
            compiler_params=pltpu.CompilerParams(vmem_limit_bytes=30 * 1024 * 1024),
        )(x_nhwc, wm, wl, wr, b2, g2, bt2)
    else:
        # No BN -> batch elements are independent: grid over batch ("parallel")
        # so both v7x TensorCores are used and inputs pipeline at larger B.
        wspec = pl.BlockSpec((2, two_cin, two_cout), lambda b: (0, 0, 0))
        vspec = pl.BlockSpec((1, two_cout), lambda b: (0, 0))
        out = pl.pallas_call(
            kernel,
            out_shape=out_shape,
            grid=(B,),
            in_specs=[pl.BlockSpec((1, H, W, cin), lambda b: (b, 0, 0, 0)),
                      wspec, wspec, wspec, vspec, vspec, vspec],
            out_specs=pl.BlockSpec((1, H, 2, W, two_cout), lambda b: (b, 0, 0, 0, 0)),
            compiler_params=pltpu.CompilerParams(
                dimension_semantics=("parallel",),
                vmem_limit_bytes=30 * 1024 * 1024),
        )(x_nhwc, wm, wl, wr, b2, g2, bt2)
    # Free (pure row-major) reshape: (B, H, 2, W, 2*Cout) -> (B, 2H, 2W, Cout).
    return out.reshape(B, 2 * H, 2 * W, cout)


# ------------------------------ parameter prep ------------------------------
def _prep_convt(w, b, gamma, beta):
    """PyTorch ConvTranspose2d weight (Cin, Cout, 4, 4) -> kernel-ready bf16 matrices."""
    cin, cout = w.shape[0], w.shape[1]
    wk = jnp.transpose(w, (2, 3, 0, 1)).astype(jnp.float32)   # (kh, kw, Cin, Cout)
    zeros = jnp.zeros((cin, cout), jnp.float32)
    wmid = lambda kh: jnp.concatenate([wk[kh, 1], wk[kh, 2]], axis=-1)   # both col parities
    wleft = lambda kh: jnp.concatenate([wk[kh, 3], zeros], axis=-1)      # col parity 0 only
    wright = lambda kh: jnp.concatenate([zeros, wk[kh, 0]], axis=-1)     # col parity 1 only

    def stack_taps(f):
        # Per row parity, stack the two row taps along K (matches the lane-packed
        # LHS [oh=1 slab | oh=0/2 slab] built in the kernel).
        rows = []
        for a in (0, 1):
            (kh_a, _), (kh_b, _) = _ROW_TAPS[a]
            rows.append(jnp.concatenate([f(kh_a), f(kh_b)], axis=0))      # (2*Cin, 2*Cout)
        return jnp.stack(rows)                                            # (2, 2*Cin, 2*Cout)

    wm, wl, wr = (stack_taps(f).astype(jnp.bfloat16) for f in (wmid, wleft, wright))
    b2 = jnp.concatenate([b, b]).reshape(1, 2 * cout).astype(jnp.float32)
    g2 = jnp.concatenate([gamma, gamma]).reshape(1, 2 * cout).astype(jnp.float32)
    bt2 = jnp.concatenate([beta, beta]).reshape(1, 2 * cout).astype(jnp.float32)
    return wm, wl, wr, b2, g2, bt2


def prepare_params(p):
    """One-time conversion of PyTorch-layout params into the kernel-ready layout."""
    # Fold the x.view(B, 4*DIM, 8, 8) NCHW->NHWC conversion into the linear layer:
    # NHWC-flat feature n=(h, w, c) comes from PyTorch feature f = c*64 + h*8 + w.
    h = jnp.arange(8)
    w = jnp.arange(8)
    c = jnp.arange(4 * DIM)
    perm = (c[None, None, :] * 64 + h[:, None, None] * 8 + w[None, :, None]).reshape(-1)
    return {
        "lin_w_t": p["lin_w_t"][:, perm].astype(jnp.bfloat16),   # bf16 halves the 8 MiB read
        "lin_b": p["lin_b"][:, perm],
        "bn1_g": p["bn1_g"][:, perm],
        "bn1_b": p["bn1_b"][:, perm],
        "ct1": _prep_convt(p["ct1_w"], p["ct1_b"], p["bn2_g"], p["bn2_b"]),
        "ct2": _prep_convt(p["ct2_w"], p["ct2_b"], p["bn3_g"], p["bn3_b"]),
        "ct3": _prep_convt(p["ct3_w"], p["ct3_b"],
                           jnp.ones((3,), jnp.float32), jnp.zeros((3,), jnp.float32)),
    }


# ------------------------------ full forward ------------------------------
def wgan_g_forward(z, p):
    B = z.shape[0]
    h = linear_relu_bn(z, p["lin_w_t"], p["lin_b"], p["bn1_g"], p["bn1_b"])  # (B, 16384), NHWC order
    h = h.reshape(B, 8, 8, 4 * DIM)                                          # free reshape (weights permuted)
    h = conv_transpose_block(h, *p["ct1"], relu_bn=True, tanh_out=False)     # (B, 16, 16, 128)
    h = conv_transpose_block(h, *p["ct2"], relu_bn=True, tanh_out=False)     # (B, 32, 32, 64)
    h = conv_transpose_block(h, *p["ct3"], relu_bn=False, tanh_out=True)     # (B, 64, 64, 3)
    return jnp.transpose(h, (0, 3, 1, 2))                                    # NCHW (small final transpose)


def init_params(key):
    """Random parameters in the PyTorch module's native layouts."""
    ks = jax.random.split(key, 8)
    nrm = lambda k, s, sc=0.05: sc * jax.random.normal(k, s, jnp.float32)
    NF = 8 * 8 * 4 * DIM
    return {
        "lin_w_t": nrm(ks[0], (128, NF)),               # Linear weight, pre-transposed (K, N)
        "lin_b": nrm(ks[1], (1, NF), 0.01),
        "bn1_g": jnp.ones((1, NF), jnp.float32),
        "bn1_b": jnp.zeros((1, NF), jnp.float32),
        "ct1_w": nrm(ks[2], (4 * DIM, 2 * DIM, 4, 4)),  # PyTorch (Cin, Cout, kh, kw)
        "ct1_b": nrm(ks[3], (2 * DIM,), 0.01),
        "bn2_g": jnp.ones((2 * DIM,), jnp.float32),
        "bn2_b": jnp.zeros((2 * DIM,), jnp.float32),
        "ct2_w": nrm(ks[4], (2 * DIM, DIM, 4, 4)),
        "ct2_b": nrm(ks[5], (DIM,), 0.01),
        "bn3_g": jnp.ones((DIM,), jnp.float32),
        "bn3_b": jnp.zeros((DIM,), jnp.float32),
        "ct3_w": nrm(ks[6], (DIM, 3, 4, 4)),
        "ct3_b": nrm(ks[7], (3,), 0.01),
    }


# ---------------- pure-XLA reference (numerical validation only) ----------------
def _convt_ref_nchw(x_nchw, w, b):
    """PyTorch ConvTranspose2d(4, stride=2, padding=1) expressed as an XLA dilated conv."""
    wf = jnp.transpose(jnp.flip(w, (2, 3)), (1, 0, 2, 3))     # (Cout, Cin, 4, 4)
    y = lax.conv_general_dilated(
        x_nchw, wf, window_strides=(1, 1), padding=((2, 2), (2, 2)),
        lhs_dilation=(2, 2), dimension_numbers=("NCHW", "OIHW", "NCHW"),
        precision=lax.Precision.HIGHEST)
    return y + b.reshape(1, -1, 1, 1)


if __name__ == "__main__":
    key = jax.random.PRNGKey(0)
    pkey, xkey, ck1, ck2 = jax.random.split(key, 4)

    # --- validation 1: fused ConvT+ReLU+BN block (single-invocation path, ct1-like) ---
    ks = jax.random.split(ck1, 5)
    xc = jax.random.normal(ks[0], (2, 8, 8, 4 * DIM), jnp.float32)
    wc = 0.05 * jax.random.normal(ks[1], (4 * DIM, 2 * DIM, 4, 4), jnp.float32)
    bc = 0.01 * jax.random.normal(ks[2], (2 * DIM,), jnp.float32)
    gc = 1.0 + 0.1 * jax.random.normal(ks[3], (2 * DIM,), jnp.float32)
    btc = 0.1 * jax.random.normal(ks[4], (2 * DIM,), jnp.float32)
    got = conv_transpose_block(xc, *_prep_convt(wc, bc, gc, btc),
                               relu_bn=True, tanh_out=False)
    wq = wc.astype(jnp.bfloat16).astype(jnp.float32)          # match kernel's bf16 weight storage
    ref = jnp.maximum(_convt_ref_nchw(jnp.transpose(xc, (0, 3, 1, 2)), wq, bc), 0.0)
    mu = jnp.mean(ref, axis=(0, 2, 3), keepdims=True)
    var = jnp.mean((ref - mu) ** 2, axis=(0, 2, 3), keepdims=True)
    ref = (ref - mu) * lax.rsqrt(var + EPS) * gc.reshape(1, -1, 1, 1) + btc.reshape(1, -1, 1, 1)
    ref = jnp.transpose(ref, (0, 2, 3, 1))                    # NHWC, matches kernel output
    err = float(jnp.max(jnp.abs(got - ref)))
    assert err < 2e-2, f"ConvT+ReLU+BN block mismatch vs XLA reference: {err}"

    # --- validation 2: batch-gridded ConvT+Tanh path (ct3-like, lane-sparse cout) ---
    ks = jax.random.split(ck2, 3)
    xt = jax.random.normal(ks[0], (2, 16, 16, DIM), jnp.float32)
    wt = 0.05 * jax.random.normal(ks[1], (DIM, 3, 4, 4), jnp.float32)
    bt = 0.01 * jax.random.normal(ks[2], (3,), jnp.float32)
    got = conv_transpose_block(
        xt, *_prep_convt(wt, bt, jnp.ones((3,), jnp.float32), jnp.zeros((3,), jnp.float32)),
        relu_bn=False, tanh_out=True)
    wq = wt.astype(jnp.bfloat16).astype(jnp.float32)
    ref = jnp.tanh(_convt_ref_nchw(jnp.transpose(xt, (0, 3, 1, 2)), wq, bt))
    ref = jnp.transpose(ref, (0, 2, 3, 1))
    err = float(jnp.max(jnp.abs(got - ref)))
    assert err < 2e-2, f"ConvT+Tanh block mismatch vs XLA reference: {err}"

    # --- full forward pass ---
    params = init_params(pkey)
    kernel_params = prepare_params(params)                    # one-time weight re-layout (bf16)
    z = jax.random.normal(xkey, (2, 128), jnp.float32)        # batch=2, latent=128
    out = jax.jit(wgan_g_forward)(z, kernel_params)
    out = jax.block_until_ready(out)
    assert out.shape == (2, 3, 64, 64), out.shape
    assert bool(jnp.all(jnp.isfinite(out)))
    print("KERNEL_OK")
</pallas_src>

<mosaic_0001>
module attributes {stable_mosaic.version = 11 : i64} {
  func.func @_convt_kernel(%arg0: memref<2x8x8x256xf32, #tpu.memory_space<vmem>>, %arg1: memref<2x512x256xbf16, #tpu.memory_space<vmem>>, %arg2: memref<2x512x256xbf16, #tpu.memory_space<vmem>>, %arg3: memref<2x512x256xbf16, #tpu.memory_space<vmem>>, %arg4: memref<1x256xf32, #tpu.memory_space<vmem>>, %arg5: memref<1x256xf32, #tpu.memory_space<vmem>>, %arg6: memref<1x256xf32, #tpu.memory_space<vmem>>, %arg7: memref<2x8x2x8x256xf32, #tpu.memory_space<vmem>>) attributes {dimension_semantics = [], scalar_prefetch = 0 : i64, scratch_operands = 0 : i64, tpu.core_type = #tpu.core_type<tc>} {
    %c0 = arith.constant 0 : index
    %c0_0 = arith.constant 0 : index
    %c0_1 = arith.constant 0 : index
    %c0_2 = arith.constant 0 : index
    %0 = vector.load %arg0[%c0, %c0_0, %c0_1, %c0_2] : memref<2x8x8x256xf32, #tpu.memory_space<vmem>>, vector<2x8x8x256xf32>
    %1 = vector.shape_cast %0 : vector<2x8x8x256xf32> to vector<128x256xf32>
    %2 = tpu.iota {dimensions = array<i32: 0>} : vector<128x1xi32>
    %c7_i32 = arith.constant 7 : i32
    %3 = vector.broadcast %c7_i32 : i32 to vector<128x1xi32>
    %4 = arith.andi %2, %3 : vector<128x1xi32>
    %c63_i32 = arith.constant 63 : i32
    %5 = vector.broadcast %c63_i32 : i32 to vector<128x1xi32>
    %6 = arith.andi %2, %5 : vector<128x1xi32>
    %c0_i32 = arith.constant 0 : i32
    %7 = vector.broadcast %c0_i32 : i32 to vector<128x1xi32>
    %8 = arith.cmpi sgt, %4, %7 : vector<128x1xi32>
    %c7_i32_3 = arith.constant 7 : i32
    %9 = vector.broadcast %c7_i32_3 : i32 to vector<128x1xi32>
    %10 = arith.cmpi slt, %4, %9 : vector<128x1xi32>
    %c8_i32 = arith.constant 8 : i32
    %11 = vector.broadcast %c8_i32 : i32 to vector<128x1xi32>
    %12 = arith.cmpi sge, %6, %11 : vector<128x1xi32>
    %c56_i32 = arith.constant 56 : i32
    %13 = vector.broadcast %c56_i32 : i32 to vector<128x1xi32>
    %14 = arith.cmpi slt, %6, %13 : vector<128x1xi32>
    %c8_i32_4 = arith.constant 8 : i32
    %15 = tpu.dynamic_rotate %1 by %c8_i32_4 dim 0 : vector<128x256xf32>, i32 -> vector<128x256xf32>
    %cst = arith.constant 0.000000e+00 : f32
    %16 = vector.shape_cast %12 : vector<128x1xi1> to vector<128x1xi1>
    %17 = vector.broadcast %16 : vector<128x1xi1> to vector<128x256xi1>
    %18 = vector.broadcast %cst : f32 to vector<128x256xf32>
    %19 = arith.select %17, %15, %18 : vector<128x256xi1>, vector<128x256xf32>
    %20 = tpu.concatenate %1, %19 in 1 : vector<128x256xf32>, vector<128x256xf32> -> vector<128x512xf32>
    %c1_i32 = arith.constant 1 : i32
    %21 = tpu.dynamic_rotate %20 by %c1_i32 dim 0 : vector<128x512xf32>, i32 -> vector<128x512xf32>
    %cst_5 = arith.constant 0.000000e+00 : f32
    %22 = vector.shape_cast %8 : vector<128x1xi1> to vector<128x1xi1>
    %23 = vector.broadcast %22 : vector<128x1xi1> to vector<128x512xi1>
    %24 = vector.broadcast %cst_5 : f32 to vector<128x512xf32>
    %25 = arith.select %23, %21, %24 : vector<128x512xi1>, vector<128x512xf32>
    %c127_i32 = arith.constant 127 : i32
    %26 = tpu.dynamic_rotate %20 by %c127_i32 dim 0 : vector<128x512xf32>, i32 -> vector<128x512xf32>
    %cst_6 = arith.constant 0.000000e+00 : f32
    %27 = vector.shape_cast %10 : vector<128x1xi1> to vector<128x1xi1>
    %28 = vector.broadcast %27 : vector<128x1xi1> to vector<128x512xi1>
    %29 = vector.broadcast %cst_6 : f32 to vector<128x512xf32>
    %30 = arith.select %28, %26, %29 : vector<128x512xi1>, vector<128x512xf32>
    %c0_7 = arith.constant 0 : index
    %c0_8 = arith.constant 0 : index
    %c0_9 = arith.constant 0 : index
    %31 = vector.load %arg1[%c0_7, %c0_8, %c0_9] : memref<2x512x256xbf16, #tpu.memory_space<vmem>>, vector<1x512x256xbf16>
    %32 = vector.shape_cast %31 : vector<1x512x256xbf16> to vector<512x256xbf16>
    %33 = arith.extf %32 : vector<512x256xbf16> to vector<512x256xf32>
    %cst_10 = arith.constant dense<0.000000e+00> : vector<128x256xf32>
    %34 = tpu.matmul %20, %33, %cst_10 {dimension_numbers = #tpu.dot_dimension_numbers<[1], [0], [0], [1], [0, 0, 1, 1], [], []>} : vector<128x512xf32>, vector<512x256xf32>, vector<128x256xf32> -> vector<128x256xf32>
    %c0_11 = arith.constant 0 : index
    %c0_12 = arith.constant 0 : index
    %c0_13 = arith.constant 0 : index
    %35 = vector.load %arg2[%c0_11, %c0_12, %c0_13] : memref<2x512x256xbf16, #tpu.memory_space<vmem>>, vector<1x512x256xbf16>
    %36 = vector.shape_cast %35 : vector<1x512x256xbf16> to vector<512x256xbf16>
    %37 = arith.extf %36 : vector<512x256xbf16> to vector<512x256xf32>
    %cst_14 = arith.constant dense<0.000000e+00> : vector<128x256xf32>
    %38 = tpu.matmul %25, %37, %cst_14 {dimension_numbers = #tpu.dot_dimension_numbers<[1], [0], [0], [1], [0, 0, 1, 1], [], []>} : vector<128x512xf32>, vector<512x256xf32>, vector<128x256xf32> -> vector<128x256xf32>
    %39 = arith.addf %34, %38 : vector<128x256xf32>
    %c0_15 = arith.constant 0 : index
    %c0_16 = arith.constant 0 : index
    %c0_17 = arith.constant 0 : index
    %40 = vector.load %arg3[%c0_15, %c0_16, %c0_17] : memref<2x512x256xbf16, #tpu.memory_space<vmem>>, vector<1x512x256xbf16>
    %41 = vector.shape_cast %40 : vector<1x512x256xbf16> to vector<512x256xbf16>
    %42 = arith.extf %41 : vector<512x256xbf16> to vector<512x256xf32>
    %cst_18 = arith.constant dense<0.000000e+00> : vector<128x256xf32>
    %43 = tpu.matmul %30, %42, %cst_18 {dimension_numbers = #tpu.dot_dimension_numbers<[1], [0], [0], [1], [0, 0, 1, 1], [], []>} : vector<128x512xf32>, vector<512x256xf32>, vector<128x256xf32> -> vector<128x256xf32>
    %44 = arith.addf %39, %43 : vector<128x256xf32>
    %c0_19 = arith.constant 0 : index
    %c0_20 = arith.constant 0 : index
    %45 = vector.load %arg4[%c0_19, %c0_20] : memref<1x256xf32, #tpu.memory_space<vmem>>, vector<1x256xf32>
    %46 = vector.broadcast %45 : vector<1x256xf32> to vector<128x256xf32>
    %47 = arith.addf %44, %46 : vector<128x256xf32>
    %c120_i32 = arith.constant 120 : i32
    %48 = tpu.dynamic_rotate %1 by %c120_i32 dim 0 : vector<128x256xf32>, i32 -> vector<128x256xf32>
    %cst_21 = arith.constant 0.000000e+00 : f32
    %49 = vector.shape_cast %14 : vector<128x1xi1> to vector<128x1xi1>
    %50 = vector.broadcast %49 : vector<128x1xi1> to vector<128x256xi1>
    %51 = vector.broadcast %cst_21 : f32 to vector<128x256xf32>
    %52 = arith.select %50, %48, %51 : vector<128x256xi1>, vector<128x256xf32>
    %53 = tpu.concatenate %1, %52 in 1 : vector<128x256xf32>, vector<128x256xf32> -> vector<128x512xf32>
    %c1_i32_22 = arith.constant 1 : i32
    %54 = tpu.dynamic_rotate %53 by %c1_i32_22 dim 0 : vector<128x512xf32>, i32 -> vector<128x512xf32>
    %cst_23 = arith.constant 0.000000e+00 : f32
    %55 = vector.shape_cast %8 : vector<128x1xi1> to vector<128x1xi1>
    %56 = vector.broadcast %55 : vector<128x1xi1> to vector<128x512xi1>
    %57 = vector.broadcast %cst_23 : f32 to vector<128x512xf32>
    %58 = arith.select %56, %54, %57 : vector<128x512xi1>, vector<128x512xf32>
    %c127_i32_24 = arith.constant 127 : i32
    %59 = tpu.dynamic_rotate %53 by %c127_i32_24 dim 0 : vector<128x512xf32>, i32 -> vector<128x512xf32>
    %cst_25 = arith.constant 0.000000e+00 : f32
    %60 = vector.shape_cast %10 : vector<128x1xi1> to vector<128x1xi1>
    %61 = vector.broadcast %60 : vector<128x1xi1> to vector<128x512xi1>
    %62 = vector.broadcast %cst_25 : f32 to vector<128x512xf32>
    %63 = arith.select %61, %59, %62 : vector<128x512xi1>, vector<128x512xf32>
    %c1 = arith.constant 1 : index
    %c0_26 = arith.constant 0 : index
    %c0_27 = arith.constant 0 : index
    %64 = vector.load %arg1[%c1, %c0_26, %c0_27] : memref<2x512x256xbf16, #tpu.memory_space<vmem>>, vector<1x512x256xbf16>
    %65 = vector.shape_cast %64 : vector<1x512x256xbf16> to vector<512x256xbf16>
    %66 = arith.extf %65 : vector<512x256xbf16> to vector<512x256xf32>
    %cst_28 = arith.constant dense<0.000000e+00> : vector<128x256xf32>
    %67 = tpu.matmul %53, %66, %cst_28 {dimension_numbers = #tpu.dot_dimension_numbers<[1], [0], [0], [1], [0, 0, 1, 1], [], []>} : vector<128x512xf32>, vector<512x256xf32>, vector<128x256xf32> -> vector<128x256xf32>
    %c1_29 = arith.constant 1 : index
    %c0_30 = arith.constant 0 : index
    %c0_31 = arith.constant 0 : index
    %68 = vector.load %arg2[%c1_29, %c0_30, %c0_31] : memref<2x512x256xbf16, #tpu.memory_space<vmem>>, vector<1x512x256xbf16>
    %69 = vector.shape_cast %68 : vector<1x512x256xbf16> to vector<512x256xbf16>
    %70 = arith.extf %69 : vector<512x256xbf16> to vector<512x256xf32>
    %cst_32 = arith.constant dense<0.000000e+00> : vector<128x256xf32>
    %71 = tpu.matmul %58, %70, %cst_32 {dimension_numbers = #tpu.dot_dimension_numbers<[1], [0], [0], [1], [0, 0, 1, 1], [], []>} : vector<128x512xf32>, vector<512x256xf32>, vector<128x256xf32> -> vector<128x256xf32>
    %72 = arith.addf %67, %71 : vector<128x256xf32>
    %c1_33 = arith.constant 1 : index
    %c0_34 = arith.constant 0 : index
    %c0_35 = arith.constant 0 : index
    %73 = vector.load %arg3[%c1_33, %c0_34, %c0_35] : memref<2x512x256xbf16, #tpu.memory_space<vmem>>, vector<1x512x256xbf16>
    %74 = vector.shape_cast %73 : vector<1x512x256xbf16> to vector<512x256xbf16>
    %75 = arith.extf %74 : vector<512x256xbf16> to vector<512x256xf32>
    %cst_36 = arith.constant dense<0.000000e+00> : vector<128x256xf32>
    %76 = tpu.matmul %63, %75, %cst_36 {dimension_numbers = #tpu.dot_dimension_numbers<[1], [0], [0], [1], [0, 0, 1, 1], [], []>} : vector<128x512xf32>, vector<512x256xf32>, vector<128x256xf32> -> vector<128x256xf32>
    %77 = arith.addf %72, %76 : vector<128x256xf32>
    %c0_37 = arith.constant 0 : index
    %c0_38 = arith.constant 0 : index
    %78 = vector.load %arg4[%c0_37, %c0_38] : memref<1x256xf32, #tpu.memory_space<vmem>>, vector<1x256xf32>
    %79 = vector.broadcast %78 : vector<1x256xf32> to vector<128x256xf32>
    %80 = arith.addf %77, %79 : vector<128x256xf32>
    %cst_39 = arith.constant 0.000000e+00 : f32
    %81 = vector.broadcast %cst_39 : f32 to vector<128x256xf32>
    %82 = arith.maximumf %47, %81 : vector<128x256xf32>
    %cst_40 = arith.constant 0.000000e+00 : f32
    %83 = vector.broadcast %cst_40 : f32 to vector<128x256xf32>
    %84 = arith.maximumf %80, %83 : vector<128x256xf32>
    %cst_41 = arith.constant dense<0.000000e+00> : vector<256xf32>
    %85 = vector.multi_reduction <add>, %82, %cst_41 [0] : vector<128x256xf32> to vector<256xf32>
    %86 = vector.shape_cast %85 : vector<256xf32> to vector<1x256xf32>
    %cst_42 = arith.constant dense<0.000000e+00> : vector<256xf32>
    %87 = vector.multi_reduction <add>, %84, %cst_42 [0] : vector<128x256xf32> to vector<256xf32>
    %88 = vector.shape_cast %87 : vector<256xf32> to vector<1x256xf32>
    %89 = arith.addf %86, %88 : vector<1x256xf32>
    %90 = arith.mulf %82, %82 : vector<128x256xf32>
    %cst_43 = arith.constant dense<0.000000e+00> : vector<256xf32>
    %91 = vector.multi_reduction <add>, %90, %cst_43 [0] : vector<128x256xf32> to vector<256xf32>
    %92 = vector.shape_cast %91 : vector<256xf32> to vector<1x256xf32>
    %93 = arith.mulf %84, %84 : vector<128x256xf32>
    %cst_44 = arith.constant dense<0.000000e+00> : vector<256xf32>
    %94 = vector.multi_reduction <add>, %93, %cst_44 [0] : vector<128x256xf32> to vector<256xf32>
    %95 = vector.shape_cast %94 : vector<256xf32> to vector<1x256xf32>
    %96 = arith.addf %92, %95 : vector<1x256xf32>
    %97 = vector.extract_strided_slice %89 {offsets = [0, 0], sizes = [1, 128], strides = [1, 1]} : vector<1x256xf32> to vector<1x128xf32>
    %98 = vector.extract_strided_slice %89 {offsets = [0, 128], sizes = [1, 128], strides = [1, 1]} : vector<1x256xf32> to vector<1x128xf32>
    %99 = arith.addf %97, %98 : vector<1x128xf32>
    %cst_45 = arith.constant 5.120000e+02 : f32
    %100 = vector.broadcast %cst_45 : f32 to vector<1x128xf32>
    %101 = arith.divf %99, %100 : vector<1x128xf32>
    %102 = vector.extract_strided_slice %96 {offsets = [0, 0], sizes = [1, 128], strides = [1, 1]} : vector<1x256xf32> to vector<1x128xf32>
    %103 = vector.extract_strided_slice %96 {offsets = [0, 128], sizes = [1, 128], strides = [1, 1]} : vector<1x256xf32> to vector<1x128xf32>
    %104 = arith.addf %102, %103 : vector<1x128xf32>
    %cst_46 = arith.constant 5.120000e+02 : f32
    %105 = vector.broadcast %cst_46 : f32 to vector<1x128xf32>
    %106 = arith.divf %104, %105 : vector<1x128xf32>
    %107 = arith.mulf %101, %101 : vector<1x128xf32>
    %108 = arith.subf %106, %107 : vector<1x128xf32>
    %cst_47 = arith.constant 0.000000e+00 : f32
    %109 = vector.broadcast %cst_47 : f32 to vector<1x128xf32>
    %110 = arith.maximumf %108, %109 : vector<1x128xf32>
    %cst_48 = arith.constant 9.99999974E-6 : f32
    %111 = vector.broadcast %cst_48 : f32 to vector<1x128xf32>
    %112 = arith.addf %110, %111 : vector<1x128xf32>
    %113 = math.rsqrt %112 : vector<1x128xf32>
    %114 = tpu.concatenate %101, %101 in 1 : vector<1x128xf32>, vector<1x128xf32> -> vector<1x256xf32>
    %115 = tpu.concatenate %113, %113 in 1 : vector<1x128xf32>, vector<1x128xf32> -> vector<1x256xf32>
    %c0_49 = arith.constant 0 : index
    %c0_50 = arith.constant 0 : index
    %116 = vector.load %arg5[%c0_49, %c0_50] : memref<1x256xf32, #tpu.memory_space<vmem>>, vector<1x256xf32>
    %117 = arith.mulf %115, %116 : vector<1x256xf32>
    %c0_51 = arith.constant 0 : index
    %c0_52 = arith.constant 0 : index
    %118 = vector.load %arg6[%c0_51, %c0_52] : memref<1x256xf32, #tpu.memory_space<vmem>>, vector<1x256xf32>
    %119 = arith.mulf %114, %117 : vector<1x256xf32>
    %120 = arith.subf %118, %119 : vector<1x256xf32>
    %121 = vector.broadcast %117 : vector<1x256xf32> to vector<128x256xf32>
    %122 = arith.mulf %82, %121 : vector<128x256xf32>
    %123 = vector.broadcast %120 : vector<1x256xf32> to vector<128x256xf32>
    %124 = arith.addf %122, %123 : vector<128x256xf32>
    %125 = vector.broadcast %117 : vector<1x256xf32> to vector<128x256xf32>
    %126 = arith.mulf %84, %125 : vector<128x256xf32>
    %127 = vector.broadcast %120 : vector<1x256xf32> to vector<128x256xf32>
    %128 = arith.addf %126, %127 : vector<128x256xf32>
    %129 = vector.shape_cast %124 : vector<128x256xf32> to vector<2x8x1x8x256xf32>
    %c0_53 = arith.constant 0 : index
    %c0_54 = arith.constant 0 : index
    %c0_55 = arith.constant 0 : index
    %c0_56 = arith.constant 0 : index
    %c0_57 = arith.constant 0 : index
    %130 = vector.load %arg7[%c0_53, %c0_54, %c0_55, %c0_56, %c0_57] : memref<2x8x2x8x256xf32, #tpu.memory_space<vmem>>, vector<2x8x1x8x256xf32>
    tpu.vector_store %arg7[%c0_53, %c0_54, %c0_55, %c0_56, %c0_57], %129 {strides = array<i32>} : memref<2x8x2x8x256xf32, #tpu.memory_space<vmem>>, vector<2x8x1x8x256xf32>,
    %131 = vector.shape_cast %128 : vector<128x256xf32> to vector<2x8x1x8x256xf32>
    %c0_58 = arith.constant 0 : index
    %c0_59 = arith.constant 0 : index
    %c1_60 = arith.constant 1 : index
    %c0_61 = arith.constant 0 : index
    %c0_62 = arith.constant 0 : index
    %132 = vector.load %arg7[%c0_58, %c0_59, %c1_60, %c0_61, %c0_62] : memref<2x8x2x8x256xf32, #tpu.memory_space<vmem>>, vector<2x8x1x8x256xf32>
    tpu.vector_store %arg7[%c0_58, %c0_59, %c1_60, %c0_61, %c0_62], %131 {strides = array<i32>} : memref<2x8x2x8x256xf32, #tpu.memory_space<vmem>>, vector<2x8x1x8x256xf32>,
    return
  }
}

</mosaic_0001>

<llo_original>
// kernel: tpu_custom_call.1
$region0: #{tpu_custom_call.1}
  #allocation0 [shape = 'u32[]', space=smem, size = 0x4, offset = 0x4, fixed_abs, tag = 'smem constant byte address 0x4 - core index']
  #allocation1 [shape = 'u32[144,128]{1,0:T(1,128)}', space=vmem, size = 0x12000, scoped, tag = 'internal scratch']
  %s0 = inlined_call_operand.hbm [shape: f32[2,8,8,256], index: 0, kind: input, shape index: {}]
  %s1 = inlined_call_operand.hbm [shape: bf16[2,512,256], index: 1, kind: input, shape index: {}]
  %s2 = inlined_call_operand.hbm [shape: bf16[2,512,256], index: 2, kind: input, shape index: {}]
  %s3 = inlined_call_operand.hbm [shape: bf16[2,512,256], index: 3, kind: input, shape index: {}]
  %s4 = inlined_call_operand.vmem [shape: f32[1,256], index: 4, kind: input, shape index: {}]
  %s5 = inlined_call_operand.vmem [shape: f32[1,256], index: 5, kind: input, shape index: {}]
  %s6 = inlined_call_operand.vmem [shape: f32[1,256], index: 6, kind: input, shape index: {}]
  %s7 = inlined_call_operand.hbm [shape: f32[2,8,2,8,256], index: 7, kind: output, shape index: {}]
  %s8 = sld [smem:[#allocation0]]
  $region54: #{tpu_custom_call.1} parent=0
    _
  %s10 = ssub.s32 1, %s8
  %s11 = scalar_select 0, %s10, %s8
  $region1: #{tpu_custom_call.1} parent=0
    #allocation2 [shape = 'u8[131072]{0}', space=vmem, size = 0x20000, scoped, tag = 'input window, operand 0, single buffered']
    #allocation3 [shape = 's32[1]{0}', space=sflag, size = 0x4, scoped, tag = 'scoped memory for tpu_custom_call.1']
    #allocation4 [shape = 's32[1]{0}', space=sflag, size = 0x4, scoped, tag = 'scoped memory for tpu_custom_call.1']
    #allocation5 [shape = 'u8[524288]{0}', space=vmem, size = 0x80000, scoped, tag = 'input window, operand 1, single buffered']
    #allocation6 [shape = 's32[1]{0}', space=sflag, size = 0x4, scoped, tag = 'scoped memory for tpu_custom_call.1']
    #allocation7 [shape = 'u8[524288]{0}', space=vmem, size = 0x80000, scoped, tag = 'input window, operand 2, single buffered']
    #allocation8 [shape = 'u8[524288]{0}', space=vmem, size = 0x80000, scoped, tag = 'input window, operand 3, single buffered']
    #allocation9 [shape = 's32[1]{0}', space=sflag, size = 0x4, scoped, tag = 'scoped memory for tpu_custom_call.1']
    #allocation10 [shape = 'u8[262144]{0}', space=vmem, size = 0x40000, scoped, tag = 'output window, operand 0, single buffered']
    %12 = vsyncpa [#allocation3], 0
    %13 = vsyncpa [#allocation6], 0
    %14 = vsyncpa [#allocation9], 0
    %15 = vsyncpa [#allocation4], 0
    // Predicated region
    $region2: #{tpu_custom_call.1} parent=1 // pred_check
      _
    $region3: #{tpu_custom_call.1} parent=1 // pred_check_branch
      %17 = sbr.rel (0) target = $region5
    $region4: #{tpu_custom_call.1} parent=1 // pred_region
      %s19 = ssub.s32 4096, 4096
      %20 = vsyncadd [#allocation3], %s19
      %s21 = sshll.u32 [#allocation2], 4
      %s22 = int_to_ptr.vmem [resolvable:$true] %s21
      %27 = dma.hbm_to_vmem [thread:$0]  %s0, 4096, %s22, [#allocation3], 256, 256, 16
    $region5: #{tpu_custom_call.1} parent=1 // pred_fallthru
      _
    // Predicated region
    $region6: #{tpu_custom_call.1} parent=1 // pred_check
      _
    $region7: #{tpu_custom_call.1} parent=1 // pred_check_branch
      %29 = sbr.rel (0) target = $region9
    $region8: #{tpu_custom_call.1} parent=1 // pred_region
      %s31 = ssub.s32 16384, 16384
      %32 = vsyncadd [#allocation6], %s31
      %s33 = sshll.u32 [#allocation5], 4
      %s34 = int_to_ptr.vmem [resolvable:$true] %s33
      %39 = dma.hbm_to_vmem [thread:$0]  %s1, 16384, %s34, [#allocation6], 128, 128, 8
    $region9: #{tpu_custom_call.1} parent=1 // pred_fallthru
      _
    // Predicated region
    $region10: #{tpu_custom_call.1} parent=1 // pred_check
      _
    $region11: #{tpu_custom_call.1} parent=1 // pred_check_branch
      %41 = sbr.rel (0) target = $region13
    $region12: #{tpu_custom_call.1} parent=1 // pred_region
      %s43 = ssub.s32 16384, 16384
      %44 = vsyncadd [#allocation6], %s43
      %s45 = sshll.u32 [#allocation7], 4
      %s46 = int_to_ptr.vmem [resolvable:$true] %s45
      %51 = dma.hbm_to_vmem [thread:$0]  %s2, 16384, %s46, [#allocation6], 128, 128, 8
    $region13: #{tpu_custom_call.1} parent=1 // pred_fallthru
      _
    // Predicated region
    $region14: #{tpu_custom_call.1} parent=1 // pred_check
      _
    $region15: #{tpu_custom_call.1} parent=1 // pred_check_branch
      %53 = sbr.rel (0) target = $region17
    $region16: #{tpu_custom_call.1} parent=1 // pred_region
      %s55 = ssub.s32 16384, 16384
      %56 = vsyncadd [#allocation9], %s55
      %s57 = sshll.u32 [#allocation8], 4
      %s58 = int_to_ptr.vmem [resolvable:$true] %s57
      %63 = dma.hbm_to_vmem [thread:$0]  %s3, 16384, %s58, [#allocation9], 128, 128, 8
    $region17: #{tpu_custom_call.1} parent=1 // pred_fallthru
      _
    // Predicated region
    $region18: #{tpu_custom_call.1} parent=1 // pred_check
      _
    $region19: #{tpu_custom_call.1} parent=1 // pred_check_branch
      %65 = sbr.rel (0) target = $region21
    $region20: #{tpu_custom_call.1} parent=1 // pred_region
      _
    $region21: #{tpu_custom_call.1} parent=1 // pred_fallthru
      _
    // Predicated region
    $region22: #{tpu_custom_call.1} parent=1 // pred_check
      _
    $region23: #{tpu_custom_call.1} parent=1 // pred_check_branch
      %67 = sbr.rel (0) target = $region25
    $region24: #{tpu_custom_call.1} parent=1 // pred_region
      _
    $region25: #{tpu_custom_call.1} parent=1 // pred_fallthru
      _
    // Predicated region
    $region26: #{tpu_custom_call.1} parent=1 // pred_check
      _
    $region27: #{tpu_custom_call.1} parent=1 // pred_check_branch
      %69 = sbr.rel (0) target = $region29
    $region28: #{tpu_custom_call.1} parent=1 // pred_region
      _
    $region29: #{tpu_custom_call.1} parent=1 // pred_fallthru
      _
    // Predicated region
    $region30: #{tpu_custom_call.1} parent=1 // pred_check
      _
    $region31: #{tpu_custom_call.1} parent=1 // pred_check_branch
      %71 = sbr.rel (0) target = $region33
    $region32: #{tpu_custom_call.1} parent=1 // pred_region
      %72 = dma.done [#allocation3], 4096
    $region33: #{tpu_custom_call.1} parent=1 // pred_fallthru
      _
    // Predicated region
    $region34: #{tpu_custom_call.1} parent=1 // pred_check
      _
    $region35: #{tpu_custom_call.1} parent=1 // pred_check_branch
      %74 = sbr.rel (0) target = $region37
    $region36: #{tpu_custom_call.1} parent=1 // pred_region
      %75 = dma.done [#allocation6], 16384
    $region37: #{tpu_custom_call.1} parent=1 // pred_fallthru
      _
    // Predicated region
    $region38: #{tpu_custom_call.1} parent=1 // pred_check
      _
    $region39: #{tpu_custom_call.1} parent=1 // pred_check_branch
      %77 = sbr.rel (0) target = $region41
    $region40: #{tpu_custom_call.1} parent=1 // pred_region
      %78 = dma.done [#allocation6], 16384
    $region41: #{tpu_custom_call.1} parent=1 // pred_fallthru
      _
    // Predicated region
    $region42: #{tpu_custom_call.1} parent=1 // pred_check
      _
    $region43: #{tpu_custom_call.1} parent=1 // pred_check_branch
      %80 = sbr.rel (0) target = $region45
    $region44: #{tpu_custom_call.1} parent=1 // pred_region
      %81 = dma.done [#allocation9], 16384
    $region45: #{tpu_custom_call.1} parent=1 // pred_fallthru
      _
    %v82 = vld [vmem:[#allocation2] sm:$0xff]
    %v83 = vld [vmem:[#allocation2 + $0x8] sm:$0xff]
    %v84 = vld [vmem:[#allocation2 + $0x10] sm:$0xff]
    %v85 = vld [vmem:[#allocation2 + $0x18] sm:$0xff]
    %v86 = vld [vmem:[#allocation2 + $0x20] sm:$0xff]
    %v87 = vld [vmem:[#allocation2 + $0x28] sm:$0xff]
    %v88 = vld [vmem:[#allocation2 + $0x30] sm:$0xff]
    %v89 = vld [vmem:[#allocation2 + $0x38] sm:$0xff]
    %v90 = vld [vmem:[#allocation2 + $0x40] sm:$0xff]
    %v91 = vld [vmem:[#allocation2 + $0x48] sm:$0xff]
    %v92 = vld [vmem:[#allocation2 + $0x50] sm:$0xff]
    %v93 = vld [vmem:[#allocation2 + $0x58] sm:$0xff]
    %v94 = vld [vmem:[#allocation2 + $0x60] sm:$0xff]
    %v95 = vld [vmem:[#allocation2 + $0x68] sm:$0xff]
    %v96 = vld [vmem:[#allocation2 + $0x70] sm:$0xff]
    %v97 = vld [vmem:[#allocation2 + $0x78] sm:$0xff]
    %v98 = vld [vmem:[#allocation2 + $0x80] sm:$0xff]
    %v99 = vld [vmem:[#allocation2 + $0x88] sm:$0xff]
    %v100 = vld [vmem:[#allocation2 + $0x90] sm:$0xff]
    %v101 = vld [vmem:[#allocation2 + $0x98] sm:$0xff]
    %v102 = vld [vmem:[#allocation2 + $0xa0] sm:$0xff]
    %v103 = vld [vmem:[#allocation2 + $0xa8] sm:$0xff]
    %v104 = vld [vmem:[#allocation2 + $0xb0] sm:$0xff]
    %v105 = vld [vmem:[#allocation2 + $0xb8] sm:$0xff]
    %v106 = vld [vmem:[#allocation2 + $0xc0] sm:$0xff]
    %v107 = vld [vmem:[#allocation2 + $0xc8] sm:$0xff]
    %v108 = vld [vmem:[#allocation2 + $0xd0] sm:$0xff]
    %v109 = vld [vmem:[#allocation2 + $0xd8] sm:$0xff]
    %v110 = vld [vmem:[#allocation2 + $0xe0] sm:$0xff]
    %v111 = vld [vmem:[#allocation2 + $0xe8] sm:$0xff]
    %v112 = vld [vmem:[#allocation2 + $0xf0] sm:$0xff]
    %v113 = vld [vmem:[#allocation2 + $0xf8] sm:$0xff]
    %v114 = vlaneseq
    %v115 = vshrl.u32 %v114, 7
    %v116 = vadd.s32 %v115, 8
    %v117 = vadd.s32 %v115, 16
    %v118 = vadd.s32 %v115, 24
    %v119 = vadd.s32 %v115, 32
    %v120 = vadd.s32 %v115, 40
    %v121 = vadd.s32 %v115, 48
    %v122 = vadd.s32 %v115, 56
    %v123 = vadd.s32 %v115, 64
    %v124 = vadd.s32 %v115, 72
    %v125 = vadd.s32 %v115, 80
    %v126 = vadd.s32 %v115, 88
    %v127 = vadd.s32 %v115, 96
    %v128 = vadd.s32 %v115, 104
    %v129 = vadd.s32 %v115, 112
    %v130 = vadd.s32 %v115, 120
    %v131 = vand.u32 %v115, 7
    %v132 = vand.u32 %v116, 7
    %v133 = vand.u32 %v117, 7
    %v134 = vand.u32 %v118, 7
    %v135 = vand.u32 %v119, 7
    %v136 = vand.u32 %v120, 7
    %v137 = vand.u32 %v121, 7
    %v138 = vand.u32 %v122, 7
    %v139 = vand.u32 %v123, 7
    %v140 = vand.u32 %v124, 7
    %v141 = vand.u32 %v125, 7
    %v142 = vand.u32 %v126, 7
    %v143 = vand.u32 %v127, 7
    %v144 = vand.u32 %v128, 7
    %v145 = vand.u32 %v129, 7
    %v146 = vand.u32 %v130, 7
    %v147 = vand.u32 %v115, 63
    %v148 = vand.u32 %v116, 63
    %v149 = vand.u32 %v117, 63
    %v150 = vand.u32 %v118, 63
    %v151 = vand.u32 %v119, 63
    %v152 = vand.u32 %v120, 63
    %v153 = vand.u32 %v121, 63
    %v154 = vand.u32 %v122, 63
    %v155 = vand.u32 %v123, 63
    %v156 = vand.u32 %v124, 63
    %v157 = vand.u32 %v125, 63
    %v158 = vand.u32 %v126, 63
    %v159 = vand.u32 %v127, 63
    %v160 = vand.u32 %v128, 63
    %v161 = vand.u32 %v129, 63
    %v162 = vand.u32 %v130, 63
    %vm163 = vcmp.gt.s32.totalorder %v131, 0
    %vm164 = vcmp.gt.s32.totalorder %v132, 0
    %vm165 = vcmp.gt.s32.totalorder %v133, 0
    %vm166 = vcmp.gt.s32.totalorder %v134, 0
    %vm167 = vcmp.gt.s32.totalorder %v135, 0
    %vm168 = vcmp.gt.s32.totalorder %v136, 0
    %vm169 = vcmp.gt.s32.totalorder %v137, 0
    %vm170 = vcmp.gt.s32.totalorder %v138, 0
    %vm171 = vcmp.gt.s32.totalorder %v139, 0
    %vm172 = vcmp.gt.s32.totalorder %v140, 0
    %vm173 = vcmp.gt.s32.totalorder %v141, 0
    %vm174 = vcmp.gt.s32.totalorder %v142, 0
    %vm175 = vcmp.gt.s32.totalorder %v143, 0
    %vm176 = vcmp.gt.s32.totalorder %v144, 0
    %vm177 = vcmp.gt.s32.totalorder %v145, 0
    %vm178 = vcmp.gt.s32.totalorder %v146, 0
    %vm179 = vcmp.lt.s32.totalorder %v131, 7
    %vm180 = vcmp.lt.s32.totalorder %v132, 7
    %vm181 = vcmp.lt.s32.totalorder %v133, 7
    %vm182 = vcmp.lt.s32.totalorder %v134, 7
    %vm183 = vcmp.lt.s32.totalorder %v135, 7
    %vm184 = vcmp.lt.s32.totalorder %v136, 7
    %vm185 = vcmp.lt.s32.totalorder %v137, 7
    %vm186 = vcmp.lt.s32.totalorder %v138, 7
    %vm187 = vcmp.lt.s32.totalorder %v139, 7
    %vm188 = vcmp.lt.s32.totalorder %v140, 7
    %vm189 = vcmp.lt.s32.totalorder %v141, 7
    %vm190 = vcmp.lt.s32.totalorder %v142, 7
    %vm191 = vcmp.lt.s32.totalorder %v143, 7
    %vm192 = vcmp.lt.s32.totalorder %v144, 7
    %vm193 = vcmp.lt.s32.totalorder %v145, 7
    %vm194 = vcmp.lt.s32.totalorder %v146, 7
    %vm195 = vcmp.ge.s32.totalorder %v147, 8
    %vm196 = vcmp.ge.s32.totalorder %v148, 8
    %vm197 = vcmp.ge.s32.totalorder %v149, 8
    %vm198 = vcmp.ge.s32.totalorder %v150, 8
    %vm199 = vcmp.ge.s32.totalorder %v151, 8
    %vm200 = vcmp.ge.s32.totalorder %v152, 8
    %vm201 = vcmp.ge.s32.totalorder %v153, 8
    %vm202 = vcmp.ge.s32.totalorder %v154, 8
    %vm203 = vcmp.ge.s32.totalorder %v155, 8
    %vm204 = vcmp.ge.s32.totalorder %v156, 8
    %vm205 = vcmp.ge.s32.totalorder %v157, 8
    %vm206 = vcmp.ge.s32.totalorder %v158, 8
    %vm207 = vcmp.ge.s32.totalorder %v159, 8
    %vm208 = vcmp.ge.s32.totalorder %v160, 8
    %vm209 = vcmp.ge.s32.totalorder %v161, 8
    %vm210 = vcmp.ge.s32.totalorder %v162, 8
    %vm211 = vcmp.lt.s32.totalorder %v147, 56
    %vm212 = vcmp.lt.s32.totalorder %v148, 56
    %vm213 = vcmp.lt.s32.totalorder %v149, 56
    %vm214 = vcmp.lt.s32.totalorder %v150, 56
    %vm215 = vcmp.lt.s32.totalorder %v151, 56
    %vm216 = vcmp.lt.s32.totalorder %v152, 56
    %vm217 = vcmp.lt.s32.totalorder %v153, 56
    %vm218 = vcmp.lt.s32.totalorder %v154, 56
    %vm219 = vcmp.lt.s32.totalorder %v155, 56
    %vm220 = vcmp.lt.s32.totalorder %v156, 56
    %vm221 = vcmp.lt.s32.totalorder %v157, 56
    %vm222 = vcmp.lt.s32.totalorder %v158, 56
    %vm223 = vcmp.lt.s32.totalorder %v159, 56
    %vm224 = vcmp.lt.s32.totalorder %v160, 56
    %vm225 = vcmp.lt.s32.totalorder %v161, 56
    %vm226 = vcmp.lt.s32.totalorder %v162, 56
    %v227 = vsel %vm195, 1, 0
    %v228 = vsel %vm196, 1, 0
    %v229 = vsel %vm197, 1, 0
    %v230 = vsel %vm198, 1, 0
    %v231 = vsel %vm199, 1, 0
    %v232 = vsel %vm200, 1, 0
    %v233 = vsel %vm201, 1, 0
    %v234 = vsel %vm202, 1, 0
    %v235 = vsel %vm203, 1, 0
    %v236 = vsel %vm204, 1, 0
    %v237 = vsel %vm205, 1, 0
    %v238 = vsel %vm206, 1, 0
    %v239 = vsel %vm207, 1, 0
    %v240 = vsel %vm208, 1, 0
    %v241 = vsel %vm209, 1, 0
    %v242 = vsel %vm210, 1, 0
    %vm243 = vcmp.eq.s32.totalorder %v227, 1
    %vm244 = vcmp.eq.s32.totalorder %v228, 1
    %vm245 = vcmp.eq.s32.totalorder %v229, 1
    %vm246 = vcmp.eq.s32.totalorder %v230, 1
    %vm247 = vcmp.eq.s32.totalorder %v231, 1
    %vm248 = vcmp.eq.s32.totalorder %v232, 1
    %vm249 = vcmp.eq.s32.totalorder %v233, 1
    %vm250 = vcmp.eq.s32.totalorder %v234, 1
    %vm251 = vcmp.eq.s32.totalorder %v235, 1
    %vm252 = vcmp.eq.s32.totalorder %v236, 1
    %vm253 = vcmp.eq.s32.totalorder %v237, 1
    %vm254 = vcmp.eq.s32.totalorder %v238, 1
    %vm255 = vcmp.eq.s32.totalorder %v239, 1
    %vm256 = vcmp.eq.s32.totalorder %v240, 1
    %vm257 = vcmp.eq.s32.totalorder %v241, 1
    %vm258 = vcmp.eq.s32.totalorder %v242, 1
    %v259 = vsel %vm243, %v112, 0.0
    %v260 = vsel %vm243, %v113, 0.0
    %v261 = vsel %vm244, %v82, 0.0
    %v262 = vsel %vm244, %v83, 0.0
    %v263 = vsel %vm245, %v84, 0.0
    %v264 = vsel %vm245, %v85, 0.0
    %v265 = vsel %vm246, %v86, 0.0
    %v266 = vsel %vm246, %v87, 0.0
    %v267 = vsel %vm247, %v88, 0.0
    %v268 = vsel %vm247, %v89, 0.0
    %v269 = vsel %vm248, %v90, 0.0
    %v270 = vsel %vm248, %v91, 0.0
    %v271 = vsel %vm249, %v92, 0.0
    %v272 = vsel %vm249, %v93, 0.0
    %v273 = vsel %vm250, %v94, 0.0
    %v274 = vsel %vm250, %v95, 0.0
    %v275 = vsel %vm251, %v96, 0.0
    %v276 = vsel %vm251, %v97, 0.0
    %v277 = vsel %vm252, %v98, 0.0
    %v278 = vsel %vm252, %v99, 0.0
    %v279 = vsel %vm253, %v100, 0.0
    %v280 = vsel %vm253, %v101, 0.0
    %v281 = vsel %vm254, %v102, 0.0
    %v282 = vsel %vm254, %v103, 0.0
    %v283 = vsel %vm255, %v104, 0.0
    %v284 = vsel %vm255, %v105, 0.0
    %v285 = vsel %vm256, %v106, 0.0
    %v286 = vsel %vm256, %v107, 0.0
    %v287 = vsel %vm257, %v108, 0.0
    %v288 = vsel %vm257, %v109, 0.0
    %v289 = vsel %vm258, %v110, 0.0
    %v290 = vsel %vm258, %v111, 0.0
    %v291 = vrot.slane %v82, 7
    %v292 = vrot.slane %v83, 7
    %v293 = vrot.slane %v259, 7
    %v294 = vrot.slane %v260, 7
    %v295 = vrot.slane %v84, 7
    %v296 = vrot.slane %v85, 7
    %v297 = vrot.slane %v261, 7
    %v298 = vrot.slane %v262, 7
    %v299 = vrot.slane %v86, 7
    %v300 = vrot.slane %v87, 7
    %v301 = vrot.slane %v263, 7
    %v302 = vrot.slane %v264, 7
    %v303 = vrot.slane %v88, 7
    %v304 = vrot.slane %v89, 7
    %v305 = vrot.slane %v265, 7
    %v306 = vrot.slane %v266, 7
    %v307 = vrot.slane %v90, 7
    %v308 = vrot.slane %v91, 7
    %v309 = vrot.slane %v267, 7
    %v310 = vrot.slane %v268, 7
    %v311 = vrot.slane %v92, 7
    %v312 = vrot.slane %v93, 7
    %v313 = vrot.slane %v269, 7
    %v314 = vrot.slane %v270, 7
    %v315 = vrot.slane %v94, 7
    %v316 = vrot.slane %v95, 7
    %v317 = vrot.slane %v271, 7
    %v318 = vrot.slane %v272, 7
    %v319 = vrot.slane %v96, 7
    %v320 = vrot.slane %v97, 7
    %v321 = vrot.slane %v273, 7
    %v322 = vrot.slane %v274, 7
    %v323 = vrot.slane %v98, 7
    %v324 = vrot.slane %v99, 7
    %v325 = vrot.slane %v275, 7
    %v326 = vrot.slane %v276, 7
    %v327 = vrot.slane %v100, 7
    %v328 = vrot.slane %v101, 7
    %v329 = vrot.slane %v277, 7
    %v330 = vrot.slane %v278, 7
    %v331 = vrot.slane %v102, 7
    %v332 = vrot.slane %v103, 7
    %v333 = vrot.slane %v279, 7
    %v334 = vrot.slane %v280, 7
    %v335 = vrot.slane %v104, 7
    %v336 = vrot.slane %v105, 7
    %v337 = vrot.slane %v281, 7
    %v338 = vrot.slane %v282, 7
    %v339 = vrot.slane %v106, 7
    %v340 = vrot.slane %v107, 7
    %v341 = vrot.slane %v283, 7
    %v342 = vrot.slane %v284, 7
    %v343 = vrot.slane %v108, 7
    %v344 = vrot.slane %v109, 7
    %v345 = vrot.slane %v285, 7
    %v346 = vrot.slane %v286, 7
    %v347 = vrot.slane %v110, 7
    %v348 = vrot.slane %v111, 7
    %v349 = vrot.slane %v287, 7
    %v350 = vrot.slane %v288, 7
    %v351 = vrot.slane %v112, 7
    %v352 = vrot.slane %v113, 7
    %v353 = vrot.slane %v289, 7
    %v354 = vrot.slane %v290, 7
    %vm355 = vcmp.lt.s32.totalorder %v115, 1
    %v356 = vsel %vm355, %v347, %v351
    %v357 = vsel %vm355, %v348, %v352
    %v358 = vsel %vm355, %v349, %v353
    %v359 = vsel %vm355, %v350, %v354
    %v360 = vsel %vm355, %v343, %v347
    %v361 = vsel %vm355, %v344, %v348
    %v362 = vsel %vm355, %v345, %v349
    %v363 = vsel %vm355, %v346, %v350
    %v364 = vsel %vm355, %v339, %v343
    %v365 = vsel %vm355, %v340, %v344
    %v366 = vsel %vm355, %v341, %v345
    %v367 = vsel %vm355, %v342, %v346
    %v368 = vsel %vm355, %v335, %v339
    %v369 = vsel %vm355, %v336, %v340
    %v370 = vsel %vm355, %v337, %v341
    %v371 = vsel %vm355, %v338, %v342
    %v372 = vsel %vm355, %v331, %v335
    %v373 = vsel %vm355, %v332, %v336
    %v374 = vsel %vm355, %v333, %v337
    %v375 = vsel %vm355, %v334, %v338
    %v376 = vsel %vm355, %v327, %v331
    %v377 = vsel %vm355, %v328, %v332
    %v378 = vsel %vm355, %v329, %v333
    %v379 = vsel %vm355, %v330, %v334
    %v380 = vsel %vm355, %v323, %v327
    %v381 = vsel %vm355, %v324, %v328
    %v382 = vsel %vm355, %v325, %v329
    %v383 = vsel %vm355, %v326, %v330
    %v384 = vsel %vm355, %v319, %v323
    %v385 = vsel %vm355, %v320, %v324
    %v386 = vsel %vm355, %v321, %v325
    %v387 = vsel %vm355, %v322, %v326
    %v388 = vsel %vm355, %v315, %v319
    %v389 = vsel %vm355, %v316, %v320
    %v390 = vsel %vm355, %v317, %v321
    %v391 = vsel %vm355, %v318, %v322
    %v392 = vsel %vm355, %v311, %v315
    %v393 = vsel %vm355, %v312, %v316
    %v394 = vsel %vm355, %v313, %v317
    %v395 = vsel %vm355, %v314, %v318
    %v396 = vsel %vm355, %v307, %v311
    %v397 = vsel %vm355, %v308, %v312
    %v398 = vsel %vm355, %v309, %v313
    %v399 = vsel %vm355, %v310, %v314
    %v400 = vsel %vm355, %v303, %v307
    %v401 = vsel %vm355, %v304, %v308
    %v402 = vsel %vm355, %v305, %v309
    %v403 = vsel %vm355, %v306, %v310
    %v404 = vsel %vm355, %v299, %v303
    %v405 = vsel %vm355, %v300, %v304
    %v406 = vsel %vm355, %v301, %v305
    %v407 = vsel %vm355, %v302, %v306
    %v408 = vsel %vm355, %v295, %v299
    %v409 = vsel %vm355, %v296, %v300
    %v410 = vsel %vm355, %v297, %v301
    %v411 = vsel %vm355, %v298, %v302
    %v412 = vsel %vm355, %v291, %v295
    %v413 = vsel %vm355, %v292, %v296
    %v414 = vsel %vm355, %v293, %v297
    %v415 = vsel %vm355, %v294, %v298
    %v416 = vsel %vm355, %v351, %v291
    %v417 = vsel %vm355, %v352, %v292
    %v418 = vsel %vm355, %v353, %v293
    %v419 = vsel %vm355, %v354, %v294
    %v420 = vsel %vm163, 1, 0
    %v421 = vsel %vm164, 1, 0
    %v422 = vsel %vm165, 1, 0
    %v423 = vsel %vm166, 1, 0
    %v424 = vsel %vm167, 1, 0
    %v425 = vsel %vm168, 1, 0
    %v426 = vsel %vm169, 1, 0
    %v427 = vsel %vm170, 1, 0
    %v428 = vsel %vm171, 1, 0
    %v429 = vsel %vm172, 1, 0
    %v430 = vsel %vm173, 1, 0
    %v431 = vsel %vm174, 1, 0
    %v432 = vsel %vm175, 1, 0
    %v433 = vsel %vm176, 1, 0
    %v434 = vsel %vm177, 1, 0
    %v435 = vsel %vm178, 1, 0
    %vm436 = vcmp.eq.s32.totalorder %v420, 1
    %vm437 = vcmp.eq.s32.totalorder %v421, 1
    %vm438 = vcmp.eq.s32.totalorder %v422, 1
    %vm439 = vcmp.eq.s32.totalorder %v423, 1
    %vm440 = vcmp.eq.s32.totalorder %v424, 1
    %vm441 = vcmp.eq.s32.totalorder %v425, 1
    %vm442 = vcmp.eq.s32.totalorder %v426, 1
    %vm443 = vcmp.eq.s32.totalorder %v427, 1
    %vm444 = vcmp.eq.s32.totalorder %v428, 1
    %vm445 = vcmp.eq.s32.totalorder %v429, 1
    %vm446 = vcmp.eq.s32.totalorder %v430, 1
    %vm447 = vcmp.eq.s32.totalorder %v431, 1
    %vm448 = vcmp.eq.s32.totalorder %v432, 1
    %vm449 = vcmp.eq.s32.totalorder %v433, 1
    %vm450 = vcmp.eq.s32.totalorder %v434, 1
    %vm451 = vcmp.eq.s32.totalorder %v435, 1
    %v452 = vsel %vm436, %v416, 0.0
    %v453 = vsel %vm436, %v417, 0.0
    %v454 = vsel %vm436, %v418, 0.0
    %v455 = vsel %vm436, %v419, 0.0
    %v456 = vsel %vm437, %v412, 0.0
    %v457 = vsel %vm437, %v413, 0.0
    %v458 = vsel %vm437, %v414, 0.0
    %v459 = vsel %vm437, %v415, 0.0
    %v460 = vsel %vm438, %v408, 0.0
    %v461 = vsel %vm438, %v409, 0.0
    %v462 = vsel %vm438, %v410, 0.0
    %v463 = vsel %vm438, %v411, 0.0
    %v464 = vsel %vm439, %v404, 0.0
    %v465 = vsel %vm439, %v405, 0.0
    %v466 = vsel %vm439, %v406, 0.0
    %v467 = vsel %vm439, %v407, 0.0
    %v468 = vsel %vm440, %v400, 0.0
    %v469 = vsel %vm440, %v401, 0.0
    %v470 = vsel %vm440, %v402, 0.0
    %v471 = vsel %vm440, %v403, 0.0
    %v472 = vsel %vm441, %v396, 0.0
    %v473 = vsel %vm441, %v397, 0.0
    %v474 = vsel %vm441, %v398, 0.0
    %v475 = vsel %vm441, %v399, 0.0
    %v476 = vsel %vm442, %v392, 0.0
    %v477 = vsel %vm442, %v393, 0.0
    %v478 = vsel %vm442, %v394, 0.0
    %v479 = vsel %vm442, %v395, 0.0
    %v480 = vsel %vm443, %v388, 0.0
    %v481 = vsel %vm443, %v389, 0.0
    %v482 = vsel %vm443, %v390, 0.0
    %v483 = vsel %vm443, %v391, 0.0
    %v484 = vsel %vm444, %v384, 0.0
    %v485 = vsel %vm444, %v385, 0.0
    %v486 = vsel %vm444, %v386, 0.0
    %v487 = vsel %vm444, %v387, 0.0
    %v488 = vsel %vm445, %v380, 0.0
    %v489 = vsel %vm445, %v381, 0.0
    %v490 = vsel %vm445, %v382, 0.0
    %v491 = vsel %vm445, %v383, 0.0
    %v492 = vsel %vm446, %v376, 0.0
    %v493 = vsel %vm446, %v377, 0.0
    %v494 = vsel %vm446, %v378, 0.0
    %v495 = vsel %vm446, %v379, 0.0
    %v496 = vsel %vm447, %v372, 0.0
    %v497 = vsel %vm447, %v373, 0.0
    %v498 = vsel %vm447, %v374, 0.0
    %v499 = vsel %vm447, %v375, 0.0
    %v500 = vsel %vm448, %v368, 0.0
    %v501 = vsel %vm448, %v369, 0.0
    %v502 = vsel %vm448, %v370, 0.0
    %v503 = vsel %vm448, %v371, 0.0
    %v504 = vsel %vm449, %v364, 0.0
    %v505 = vsel %vm449, %v365, 0.0
    %v506 = vsel %vm449, %v366, 0.0
    %v507 = vsel %vm449, %v367, 0.0
    %v508 = vsel %vm450, %v360, 0.0
    %v509 = vsel %vm450, %v361, 0.0
    %v510 = vsel %vm450, %v362, 0.0
    %v511 = vsel %vm450, %v363, 0.0
    %v512 = vsel %vm451, %v356, 0.0
    %v513 = vsel %vm451, %v357, 0.0
    %v514 = vsel %vm451, %v358, 0.0
    %v515 = vsel %vm451, %v359, 0.0
    %v516 = vrot.slane %v82, 1
    %v517 = vrot.slane %v83, 1
    %v518 = vrot.slane %v259, 1
    %v519 = vrot.slane %v260, 1
    %v520 = vrot.slane %v84, 1
    %v521 = vrot.slane %v85, 1
    %v522 = vrot.slane %v261, 1
    %v523 = vrot.slane %v262, 1
    %v524 = vrot.slane %v86, 1
    %v525 = vrot.slane %v87, 1
    %v526 = vrot.slane %v263, 1
    %v527 = vrot.slane %v264, 1
    %v528 = vrot.slane %v88, 1
    %v529 = vrot.slane %v89, 1
    %v530 = vrot.slane %v265, 1
    %v531 = vrot.slane %v266, 1
    %v532 = vrot.slane %v90, 1
    %v533 = vrot.slane %v91, 1
    %v534 = vrot.slane %v267, 1
    %v535 = vrot.slane %v268, 1
    %v536 = vrot.slane %v92, 1
    %v537 = vrot.slane %v93, 1
    %v538 = vrot.slane %v269, 1
    %v539 = vrot.slane %v270, 1
    %v540 = vrot.slane %v94, 1
    %v541 = vrot.slane %v95, 1
    %v542 = vrot.slane %v271, 1
    %v543 = vrot.slane %v272, 1
    %v544 = vrot.slane %v96, 1
    %v545 = vrot.slane %v97, 1
    %v546 = vrot.slane %v273, 1
    %v547 = vrot.slane %v274, 1
    %v548 = vrot.slane %v98, 1
    %v549 = vrot.slane %v99, 1
    %v550 = vrot.slane %v275, 1
    %v551 = vrot.slane %v276, 1
    %v552 = vrot.slane %v100, 1
    %v553 = vrot.slane %v101, 1
    %v554 = vrot.slane %v277, 1
    %v555 = vrot.slane %v278, 1
    %v556 = vrot.slane %v102, 1
    %v557 = vrot.slane %v103, 1
    %v558 = vrot.slane %v279, 1
    %v559 = vrot.slane %v280, 1
    %v560 = vrot.slane %v104, 1
    %v561 = vrot.slane %v105, 1
    %v562 = vrot.slane %v281, 1
    %v563 = vrot.slane %v282, 1
    %v564 = vrot.slane %v106, 1
    %v565 = vrot.slane %v107, 1
    %v566 = vrot.slane %v283, 1
    %v567 = vrot.slane %v284, 1
    %v568 = vrot.slane %v108, 1
    %v569 = vrot.slane %v109, 1
    %v570 = vrot.slane %v285, 1
    %v571 = vrot.slane %v286, 1
    %v572 = vrot.slane %v110, 1
    %v573 = vrot.slane %v111, 1
    %v574 = vrot.slane %v287, 1
    %v575 = vrot.slane %v288, 1
    %v576 = vrot.slane %v112, 1
    %v577 = vrot.slane %v113, 1
    %v578 = vrot.slane %v289, 1
    %v579 = vrot.slane %v290, 1
    %vm580 = vcmp.lt.s32.totalorder %v115, 7
    %v581 = vsel %vm580, %v572, %v576
    %v582 = vsel %vm580, %v573, %v577
    %v583 = vsel %vm580, %v574, %v578
    %v584 = vsel %vm580, %v575, %v579
    %v585 = vsel %vm580, %v568, %v572
    %v586 = vsel %vm580, %v569, %v573
    %v587 = vsel %vm580, %v570, %v574
    %v588 = vsel %vm580, %v571, %v575
    %v589 = vsel %vm580, %v564, %v568
    %v590 = vsel %vm580, %v565, %v569
    %v591 = vsel %vm580, %v566, %v570
    %v592 = vsel %vm580, %v567, %v571
    %v593 = vsel %vm580, %v560, %v564
    %v594 = vsel %vm580, %v561, %v565
    %v595 = vsel %vm580, %v562, %v566
    %v596 = vsel %vm580, %v563, %v567
    %v597 = vsel %vm580, %v556, %v560
    %v598 = vsel %vm580, %v557, %v561
    %v599 = vsel %vm580, %v558, %v562
    %v600 = vsel %vm580, %v559, %v563
    %v601 = vsel %vm580, %v552, %v556
    %v602 = vsel %vm580, %v553, %v557
    %v603 = vsel %vm580, %v554, %v558
    %v604 = vsel %vm580, %v555, %v559
    %v605 = vsel %vm580, %v548, %v552
    %v606 = vsel %vm580, %v549, %v553
    %v607 = vsel %vm580, %v550, %v554
    %v608 = vsel %vm580, %v551, %v555
    %v609 = vsel %vm580, %v544, %v548
    %v610 = vsel %vm580, %v545, %v549
    %v611 = vsel %vm580, %v546, %v550
    %v612 = vsel %vm580, %v547, %v551
    %v613 = vsel %vm580, %v540, %v544
    %v614 = vsel %vm580, %v541, %v545
    %v615 = vsel %vm580, %v542, %v546
    %v616 = vsel %vm580, %v543, %v547
    %v617 = vsel %vm580, %v536, %v540
    %v618 = vsel %vm580, %v537, %v541
    %v619 = vsel %vm580, %v538, %v542
    %v620 = vsel %vm580, %v539, %v543
    %v621 = vsel %vm580, %v532, %v536
    %v622 = vsel %vm580, %v533, %v537
    %v623 = vsel %vm580, %v534, %v538
    %v624 = vsel %vm580, %v535, %v539
    %v625 = vsel %vm580, %v528, %v532
    %v626 = vsel %vm580, %v529, %v533
    %v627 = vsel %vm580, %v530, %v534
    %v628 = vsel %vm580, %v531, %v535
    %v629 = vsel %vm580, %v524, %v528
    %v630 = vsel %vm580, %v525, %v529
    %v631 = vsel %vm580, %v526, %v530
    %v632 = vsel %vm580, %v527, %v531
    %v633 = vsel %vm580, %v520, %v524
    %v634 = vsel %vm580, %v521, %v525
    %v635 = vsel %vm580, %v522, %v526
    %v636 = vsel %vm580, %v523, %v527
    %v637 = vsel %vm580, %v516, %v520
    %v638 = vsel %vm580, %v517, %v521
    %v639 = vsel %vm580, %v518, %v522
    %v640 = vsel %vm580, %v519, %v523
    %v641 = vsel %vm580, %v576, %v516
    %v642 = vsel %vm580, %v577, %v517
    %v643 = vsel %vm580, %v578, %v518
    %v644 = vsel %vm580, %v579, %v519
    %v645 = vsel %vm179, 1, 0
    %v646 = vsel %vm180, 1, 0
    %v647 = vsel %vm181, 1, 0
    %v648 = vsel %vm182, 1, 0
    %v649 = vsel %vm183, 1, 0
    %v650 = vsel %vm184, 1, 0
    %v651 = vsel %vm185, 1, 0
    %v652 = vsel %vm186, 1, 0
    %v653 = vsel %vm187, 1, 0
    %v654 = vsel %vm188, 1, 0
    %v655 = vsel %vm189, 1, 0
    %v656 = vsel %vm190, 1, 0
    %v657 = vsel %vm191, 1, 0
    %v658 = vsel %vm192, 1, 0
    %v659 = vsel %vm193, 1, 0
    %v660 = vsel %vm194, 1, 0
    %vm661 = vcmp.eq.s32.totalorder %v645, 1
    %vm662 = vcmp.eq.s32.totalorder %v646, 1
    %vm663 = vcmp.eq.s32.totalorder %v647, 1
    %vm664 = vcmp.eq.s32.totalorder %v648, 1
    %vm665 = vcmp.eq.s32.totalorder %v649, 1
    %vm666 = vcmp.eq.s32.totalorder %v650, 1
    %vm667 = vcmp.eq.s32.totalorder %v651, 1
    %vm668 = vcmp.eq.s32.totalorder %v652, 1
    %vm669 = vcmp.eq.s32.totalorder %v653, 1
    %vm670 = vcmp.eq.s32.totalorder %v654, 1
    %vm671 = vcmp.eq.s32.totalorder %v655, 1
    %vm672 = vcmp.eq.s32.totalorder %v656, 1
    %vm673 = vcmp.eq.s32.totalorder %v657, 1
    %vm674 = vcmp.eq.s32.totalorder %v658, 1
    %vm675 = vcmp.eq.s32.totalorder %v659, 1
    %vm676 = vcmp.eq.s32.totalorder %v660, 1
    %v677 = vsel %vm661, %v637, 0.0
    %v678 = vsel %vm661, %v638, 0.0
    %v679 = vsel %vm661, %v639, 0.0
    %v680 = vsel %vm661, %v640, 0.0
    %v681 = vsel %vm662, %v633, 0.0
    %v682 = vsel %vm662, %v634, 0.0
    %v683 = vsel %vm662, %v635, 0.0
    %v684 = vsel %vm662, %v636, 0.0
    %v685 = vsel %vm663, %v629, 0.0
    %v686 = vsel %vm663, %v630, 0.0
    %v687 = vsel %vm663, %v631, 0.0
    %v688 = vsel %vm663, %v632, 0.0
    %v689 = vsel %vm664, %v625, 0.0
    %v690 = vsel %vm664, %v626, 0.0
    %v691 = vsel %vm664, %v627, 0.0
    %v692 = vsel %vm664, %v628, 0.0
    %v693 = vsel %vm665, %v621, 0.0
    %v694 = vsel %vm665, %v622, 0.0
    %v695 = vsel %vm665, %v623, 0.0
    %v696 = vsel %vm665, %v624, 0.0
    %v697 = vsel %vm666, %v617, 0.0
    %v698 = vsel %vm666, %v618, 0.0
    %v699 = vsel %vm666, %v619, 0.0
    %v700 = vsel %vm666, %v620, 0.0
    %v701 = vsel %vm667, %v613, 0.0
    %v702 = vsel %vm667, %v614, 0.0
    %v703 = vsel %vm667, %v615, 0.0
    %v704 = vsel %vm667, %v616, 0.0
    %v705 = vsel %vm668, %v609, 0.0
    %v706 = vsel %vm668, %v610, 0.0
    %v707 = vsel %vm668, %v611, 0.0
    %v708 = vsel %vm668, %v612, 0.0
    %v709 = vsel %vm669, %v605, 0.0
    %v710 = vsel %vm669, %v606, 0.0
    %v711 = vsel %vm669, %v607, 0.0
    %v712 = vsel %vm669, %v608, 0.0
    %v713 = vsel %vm670, %v601, 0.0
    %v714 = vsel %vm670, %v602, 0.0
    %v715 = vsel %vm670, %v603, 0.0
    %v716 = vsel %vm670, %v604, 0.0
    %v717 = vsel %vm671, %v597, 0.0
    %v718 = vsel %vm671, %v598, 0.0
    %v719 = vsel %vm671, %v599, 0.0
    %v720 = vsel %vm671, %v600, 0.0
    %v721 = vsel %vm672, %v593, 0.0
    %v722 = vsel %vm672, %v594, 0.0
    %v723 = vsel %vm672, %v595, 0.0
    %v724 = vsel %vm672, %v596, 0.0
    %v725 = vsel %vm673, %v589, 0.0
    %v726 = vsel %vm673, %v590, 0.0
    %v727 = vsel %vm673, %v591, 0.0
    %v728 = vsel %vm673, %v592, 0.0
    %v729 = vsel %vm674, %v585, 0.0
    %v730 = vsel %vm674, %v586, 0.0
    %v731 = vsel %vm674, %v587, 0.0
    %v732 = vsel %vm674, %v588, 0.0
    %v733 = vsel %vm675, %v581, 0.0
    %v734 = vsel %vm675, %v582, 0.0
    %v735 = vsel %vm675, %v583, 0.0
    %v736 = vsel %vm675, %v584, 0.0
    %v737 = vsel %vm676, %v641, 0.0
    %v738 = vsel %vm676, %v642, 0.0
    %v739 = vsel %vm676, %v643, 0.0
    %v740 = vsel %vm676, %v644, 0.0
    %v741 = vld [vmem:[#allocation5] sm:$0xff]
    %v742 = vld [vmem:[#allocation5 + $0x8] sm:$0xff]
    %v743 = vld [vmem:[#allocation5 + $0x10] sm:$0xff]
    %v744 = vld [vmem:[#allocation5 + $0x18] sm:$0xff]
    %v745 = vld [vmem:[#allocation5 + $0x20] sm:$0xff]
    %v746 = vld [vmem:[#allocation5 + $0x28] sm:$0xff]
    %v747 = vld [vmem:[#allocation5 + $0x30] sm:$0xff]
    %v748 = vld [vmem:[#allocation5 + $0x38] sm:$0xff]
    %v749 = vld [vmem:[#allocation5 + $0x40] sm:$0xff]
    %v750 = vld [vmem:[#allocation5 + $0x48] sm:$0xff]
    %v751 = vld [vmem:[#allocation5 + $0x50] sm:$0xff]
    %v752 = vld [vmem:[#allocation5 + $0x58] sm:$0xff]
    %v753 = vld [vmem:[#allocation5 + $0x60] sm:$0xff]
    %v754 = vld [vmem:[#allocation5 + $0x68] sm:$0xff]
    %v755 = vld [vmem:[#allocation5 + $0x70] sm:$0xff]
    %v756 = vld [vmem:[#allocation5 + $0x78] sm:$0xff]
    %v757 = vld [vmem:[#allocation5 + $0x80] sm:$0xff]
    %v758 = vld [vmem:[#allocation5 + $0x88] sm:$0xff]
    %v759 = vld [vmem:[#allocation5 + $0x90] sm:$0xff]
    %v760 = vld [vmem:[#allocation5 + $0x98] sm:$0xff]
    %v761 = vld [vmem:[#allocation5 + $0xa0] sm:$0xff]
    %v762 = vld [vmem:[#allocation5 + $0xa8] sm:$0xff]
    %v763 = vld [vmem:[#allocation5 + $0xb0] sm:$0xff]
    %v764 = vld [vmem:[#allocation5 + $0xb8] sm:$0xff]
    %v765 = vld [vmem:[#allocation5 + $0xc0] sm:$0xff]
    %v766 = vld [vmem:[#allocation5 + $0xc8] sm:$0xff]
    %v767 = vld [vmem:[#allocation5 + $0xd0] sm:$0xff]
    %v768 = vld [vmem:[#allocation5 + $0xd8] sm:$0xff]
    %v769 = vld [vmem:[#allocation5 + $0xe0] sm:$0xff]
    %v770 = vld [vmem:[#allocation5 + $0xe8] sm:$0xff]
    %v771 = vld [vmem:[#allocation5 + $0xf0] sm:$0xff]
    %v772 = vld [vmem:[#allocation5 + $0xf8] sm:$0xff]
    %v773 = vld [vmem:[#allocation5 + $0x100] sm:$0xff]
    %v774 = vld [vmem:[#allocation5 + $0x108] sm:$0xff]
    %v775 = vld [vmem:[#allocation5 + $0x110] sm:$0xff]
    %v776 = vld [vmem:[#allocation5 + $0x118] sm:$0xff]
    %v777 = vld [vmem:[#allocation5 + $0x120] sm:$0xff]
    %v778 = vld [vmem:[#allocation5 + $0x128] sm:$0xff]
    %v779 = vld [vmem:[#allocation5 + $0x130] sm:$0xff]
    %v780 = vld [vmem:[#allocation5 + $0x138] sm:$0xff]
    %v781 = vld [vmem:[#allocation5 + $0x140] sm:$0xff]
    %v782 = vld [vmem:[#allocation5 + $0x148] sm:$0xff]
    %v783 = vld [vmem:[#allocation5 + $0x150] sm:$0xff]
    %v784 = vld [vmem:[#allocation5 + $0x158] sm:$0xff]
    %v785 = vld [vmem:[#allocation5 + $0x160] sm:$0xff]
    %v786 = vld [vmem:[#allocation5 + $0x168] sm:$0xff]
    %v787 = vld [vmem:[#allocation5 + $0x170] sm:$0xff]
    %v788 = vld [vmem:[#allocation5 + $0x178] sm:$0xff]
    %v789 = vld [vmem:[#allocation5 + $0x180] sm:$0xff]
    %v790 = vld [vmem:[#allocation5 + $0x188] sm:$0xff]
    %v791 = vld [vmem:[#allocation5 + $0x190] sm:$0xff]
    %v792 = vld [vmem:[#allocation5 + $0x198] sm:$0xff]
    %v793 = vld [vmem:[#allocation5 + $0x1a0] sm:$0xff]
    %v794 = vld [vmem:[#allocation5 + $0x1a8] sm:$0xff]
    %v795 = vld [vmem:[#allocation5 + $0x1b0] sm:$0xff]
    %v796 = vld [vmem:[#allocation5 + $0x1b8] sm:$0xff]
    %v797 = vld [vmem:[#allocation5 + $0x1c0] sm:$0xff]
    %v798 = vld [vmem:[#allocation5 + $0x1c8] sm:$0xff]
    %v799 = vld [vmem:[#allocation5 + $0x1d0] sm:$0xff]
    %v800 = vld [vmem:[#allocation5 + $0x1d8] sm:$0xff]
    %v801 = vld [vmem:[#allocation5 + $0x1e0] sm:$0xff]
    %v802 = vld [vmem:[#allocation5 + $0x1e8] sm:$0xff]
    %v803 = vld [vmem:[#allocation5 + $0x1f0] sm:$0xff]
    %v804 = vld [vmem:[#allocation5 + $0x1f8] sm:$0xff]
    %v805 = vunpack.c.l.bf16 %v741
    %v806 = vunpack.c.h.bf16 %v741
    %v807 = vunpack.c.l.bf16 %v742
    %v808 = vunpack.c.h.bf16 %v742
    %v809 = vunpack.c.l.bf16 %v743
    %v810 = vunpack.c.h.bf16 %v743
    %v811 = vunpack.c.l.bf16 %v744
    %v812 = vunpack.c.h.bf16 %v744
    %v813 = vunpack.c.l.bf16 %v745
    %v814 = vunpack.c.h.bf16 %v745
    %v815 = vunpack.c.l.bf16 %v746
    %v816 = vunpack.c.h.bf16 %v746
    %v817 = vunpack.c.l.bf16 %v747
    %v818 = vunpack.c.h.bf16 %v747
    %v819 = vunpack.c.l.bf16 %v748
    %v820 = vunpack.c.h.bf16 %v748
    %v821 = vunpack.c.l.bf16 %v749
    %v822 = vunpack.c.h.bf16 %v749
    %v823 = vunpack.c.l.bf16 %v750
    %v824 = vunpack.c.h.bf16 %v750
    %v825 = vunpack.c.l.bf16 %v751
    %v826 = vunpack.c.h.bf16 %v751
    %v827 = vunpack.c.l.bf16 %v752
    %v828 = vunpack.c.h.bf16 %v752
    %v829 = vunpack.c.l.bf16 %v753
    %v830 = vunpack.c.h.bf16 %v753
    %v831 = vunpack.c.l.bf16 %v754
    %v832 = vunpack.c.h.bf16 %v754
    %v833 = vunpack.c.l.bf16 %v755
    %v834 = vunpack.c.h.bf16 %v755
    %v835 = vunpack.c.l.bf16 %v756
    %v836 = vunpack.c.h.bf16 %v756
    %v837 = vunpack.c.l.bf16 %v757
    %v838 = vunpack.c.h.bf16 %v757
    %v839 = vunpack.c.l.bf16 %v758
    %v840 = vunpack.c.h.bf16 %v758
    %v841 = vunpack.c.l.bf16 %v759
    %v842 = vunpack.c.h.bf16 %v759
    %v843 = vunpack.c.l.bf16 %v760
    %v844 = vunpack.c.h.bf16 %v760
    %v845 = vunpack.c.l.bf16 %v761
    %v846 = vunpack.c.h.bf16 %v761
    %v847 = vunpack.c.l.bf16 %v762
    %v848 = vunpack.c.h.bf16 %v762
    %v849 = vunpack.c.l.bf16 %v763
    %v850 = vunpack.c.h.bf16 %v763
    %v851 = vunpack.c.l.bf16 %v764
    %v852 = vunpack.c.h.bf16 %v764
    %v853 = vunpack.c.l.bf16 %v765
    %v854 = vunpack.c.h.bf16 %v765
    %v855 = vunpack.c.l.bf16 %v766
    %v856 = vunpack.c.h.bf16 %v766
    %v857 = vunpack.c.l.bf16 %v767
    %v858 = vunpack.c.h.bf16 %v767
    %v859 = vunpack.c.l.bf16 %v768
    %v860 = vunpack.c.h.bf16 %v768
    %v861 = vunpack.c.l.bf16 %v769
    %v862 = vunpack.c.h.bf16 %v769
    %v863 = vunpack.c.l.bf16 %v770
    %v864 = vunpack.c.h.bf16 %v770
    %v865 = vunpack.c.l.bf16 %v771
    %v866 = vunpack.c.h.bf16 %v771
    %v867 = vunpack.c.l.bf16 %v772
    %v868 = vunpack.c.h.bf16 %v772
    %v869 = vunpack.c.l.bf16 %v773
    %v870 = vunpack.c.h.bf16 %v773
    %v871 = vunpack.c.l.bf16 %v774
    %v872 = vunpack.c.h.bf16 %v774
    %v873 = vunpack.c.l.bf16 %v775
    %v874 = vunpack.c.h.bf16 %v775
    %v875 = vunpack.c.l.bf16 %v776
    %v876 = vunpack.c.h.bf16 %v776
    %v877 = vunpack.c.l.bf16 %v777
    %v878 = vunpack.c.h.bf16 %v777
    %v879 = vunpack.c.l.bf16 %v778
    %v880 = vunpack.c.h.bf16 %v778
    %v881 = vunpack.c.l.bf16 %v779
    %v882 = vunpack.c.h.bf16 %v779
    %v883 = vunpack.c.l.bf16 %v780
    %v884 = vunpack.c.h.bf16 %v780
    %v885 = vunpack.c.l.bf16 %v781
    %v886 = vunpack.c.h.bf16 %v781
    %v887 = vunpack.c.l.bf16 %v782
    %v888 = vunpack.c.h.bf16 %v782
    %v889 = vunpack.c.l.bf16 %v783
    %v890 = vunpack.c.h.bf16 %v783
    %v891 = vunpack.c.l.bf16 %v784
    %v892 = vunpack.c.h.bf16 %v784
    %v893 = vunpack.c.l.bf16 %v785
    %v894 = vunpack.c.h.bf16 %v785
    %v895 = vunpack.c.l.bf16 %v786
    %v896 = vunpack.c.h.bf16 %v786
    %v897 = vunpack.c.l.bf16 %v787
    %v898 = vunpack.c.h.bf16 %v787
    %v899 = vunpack.c.l.bf16 %v788
    %v900 = vunpack.c.h.bf16 %v788
    %v901 = vunpack.c.l.bf16 %v789
    %v902 = vunpack.c.h.bf16 %v789
    %v903 = vunpack.c.l.bf16 %v790
    %v904 = vunpack.c.h.bf16 %v790
    %v905 = vunpack.c.l.bf16 %v791
    %v906 = vunpack.c.h.bf16 %v791
    %v907 = vunpack.c.l.bf16 %v792
    %v908 = vunpack.c.h.bf16 %v792
    %v909 = vunpack.c.l.bf16 %v793
    %v910 = vunpack.c.h.bf16 %v793
    %v911 = vunpack.c.l.bf16 %v794
    %v912 = vunpack.c.h.bf16 %v794
    %v913 = vunpack.c.l.bf16 %v795
    %v914 = vunpack.c.h.bf16 %v795
    %v915 = vunpack.c.l.bf16 %v796
    %v916 = vunpack.c.h.bf16 %v796
    %v917 = vunpack.c.l.bf16 %v797
    %v918 = vunpack.c.h.bf16 %v797
    %v919 = vunpack.c.l.bf16 %v798
    %v920 = vunpack.c.h.bf16 %v798
    %v921 = vunpack.c.l.bf16 %v799
    %v922 = vunpack.c.h.bf16 %v799
    %v923 = vunpack.c.l.bf16 %v800
    %v924 = vunpack.c.h.bf16 %v800
    %v925 = vunpack.c.l.bf16 %v801
    %v926 = vunpack.c.h.bf16 %v801
    %v927 = vunpack.c.l.bf16 %v802
    %v928 = vunpack.c.h.bf16 %v802
    %v929 = vunpack.c.l.bf16 %v803
    %v930 = vunpack.c.h.bf16 %v803
    %v931 = vunpack.c.l.bf16 %v804
    %v932 = vunpack.c.h.bf16 %v804
    %v933 = vld [vmem:[#allocation7] sm:$0xff]
    %v934 = vld [vmem:[#allocation7 + $0x8] sm:$0xff]
    %v935 = vld [vmem:[#allocation7 + $0x10] sm:$0xff]
    %v936 = vld [vmem:[#allocation7 + $0x18] sm:$0xff]
    %v937 = vld [vmem:[#allocation7 + $0x20] sm:$0xff]
    %v938 = vld [vmem:[#allocation7 + $0x28] sm:$0xff]
    %v939 = vld [vmem:[#allocation7 + $0x30] sm:$0xff]
    %v940 = vld [vmem:[#allocation7 + $0x38] sm:$0xff]
    %v941 = vld [vmem:[#allocation7 + $0x40] sm:$0xff]
    %v942 = vld [vmem:[#allocation7 + $0x48] sm:$0xff]
    %v943 = vld [vmem:[#allocation7 + $0x50] sm:$0xff]
    %v944 = vld [vmem:[#allocation7 + $0x58] sm:$0xff]
    %v945 = vld [vmem:[#allocation7 + $0x60] sm:$0xff]
    %v946 = vld [vmem:[#allocation7 + $0x68] sm:$0xff]
    %v947 = vld [vmem:[#allocation7 + $0x70] sm:$0xff]
    %v948 = vld [vmem:[#allocation7 + $0x78] sm:$0xff]
    %v949 = vld [vmem:[#allocation7 + $0x80] sm:$0xff]
    %v950 = vld [vmem:[#allocation7 + $0x88] sm:$0xff]
    %v951 = vld [vmem:[#allocation7 + $0x90] sm:$0xff]
    %v952 = vld [vmem:[#allocation7 + $0x98] sm:$0xff]
    %v953 = vld [vmem:[#allocation7 + $0xa0] sm:$0xff]
    %v954 = vld [vmem:[#allocation7 + $0xa8] sm:$0xff]
    %v955 = vld [vmem:[#allocation7 + $0xb0] sm:$0xff]
    %v956 = vld [vmem:[#allocation7 + $0xb8] sm:$0xff]
    %v957 = vld [vmem:[#allocation7 + $0xc0] sm:$0xff]
    %v958 = vld [vmem:[#allocation7 + $0xc8] sm:$0xff]
    %v959 = vld [vmem:[#allocation7 + $0xd0] sm:$0xff]
    %v960 = vld [vmem:[#allocation7 + $0xd8] sm:$0xff]
    %v961 = vld [vmem:[#allocation7 + $0xe0] sm:$0xff]
    %v962 = vld [vmem:[#allocation7 + $0xe8] sm:$0xff]
    %v963 = vld [vmem:[#allocation7 + $0xf0] sm:$0xff]
    %v964 = vld [vmem:[#allocation7 + $0xf8] sm:$0xff]
    %v965 = vld [vmem:[#allocation7 + $0x100] sm:$0xff]
    %v966 = vld [vmem:[#allocation7 + $0x108] sm:$0xff]
    %v967 = vld [vmem:[#allocation7 + $0x110] sm:$0xff]
    %v968 = vld [vmem:[#allocation7 + $0x118] sm:$0xff]
    %v969 = vld [vmem:[#allocation7 + $0x120] sm:$0xff]
    %v970 = vld [vmem:[#allocation7 + $0x128] sm:$0xff]
    %v971 = vld [vmem:[#allocation7 + $0x130] sm:$0xff]
    %v972 = vld [vmem:[#allocation7 + $0x138] sm:$0xff]
    %v973 = vld [vmem:[#allocation7 + $0x140] sm:$0xff]
    %v974 = vld [vmem:[#allocation7 + $0x148] sm:$0xff]
    %v975 = vld [vmem:[#allocation7 + $0x150] sm:$0xff]
    %v976 = vld [vmem:[#allocation7 + $0x158] sm:$0xff]
    %v977 = vld [vmem:[#allocation7 + $0x160] sm:$0xff]
    %v978 = vld [vmem:[#allocation7 + $0x168] sm:$0xff]
    %v979 = vld [vmem:[#allocation7 + $0x170] sm:$0xff]
    %v980 = vld [vmem:[#allocation7 + $0x178] sm:$0xff]
    %v981 = vld [vmem:[#allocation7 + $0x180] sm:$0xff]
    %v982 = vld [vmem:[#allocation7 + $0x188] sm:$0xff]
    %v983 = vld [vmem:[#allocation7 + $0x190] sm:$0xff]
    %v984 = vld [vmem:[#allocation7 + $0x198] sm:$0xff]
    %v985 = vld [vmem:[#allocation7 + $0x1a0] sm:$0xff]
    %v986 = vld [vmem:[#allocation7 + $0x1a8] sm:$0xff]
    %v987 = vld [vmem:[#allocation7 + $0x1b0] sm:$0xff]
    %v988 = vld [vmem:[#allocation7 + $0x1b8] sm:$0xff]
    %v989 = vld [vmem:[#allocation7 + $0x1c0] sm:$0xff]
    %v990 = vld [vmem:[#allocation7 + $0x1c8] sm:$0xff]
    %v991 = vld [vmem:[#allocation7 + $0x1d0] sm:$0xff]
    %v992 = vld [vmem:[#allocation7 + $0x1d8] sm:$0xff]
    %v993 = vld [vmem:[#allocation7 + $0x1e0] sm:$0xff]
    %v994 = vld [vmem:[#allocation7 + $0x1e8] sm:$0xff]
    %v995 = vld [vmem:[#allocation7 + $0x1f0] sm:$0xff]
    %v996 = vld [vmem:[#allocation7 + $0x1f8] sm:$0xff]
    %v997 = vunpack.c.l.bf16 %v933
    %v998 = vunpack.c.h.bf16 %v933
    %v999 = vunpack.c.l.bf16 %v934
    %v1000 = vunpack.c.h.bf16 %v934
    %v1001 = vunpack.c.l.bf16 %v935
    %v1002 = vunpack.c.h.bf16 %v935
    %v1003 = vunpack.c.l.bf16 %v936
    %v1004 = vunpack.c.h.bf16 %v936
    %v1005 = vunpack.c.l.bf16 %v937
    %v1006 = vunpack.c.h.bf16 %v937
    %v1007 = vunpack.c.l.bf16 %v938
    %v1008 = vunpack.c.h.bf16 %v938
    %v1009 = vunpack.c.l.bf16 %v939
    %v1010 = vunpack.c.h.bf16 %v939
    %v1011 = vunpack.c.l.bf16 %v940
    %v1012 = vunpack.c.h.bf16 %v940
    %v1013 = vunpack.c.l.bf16 %v941
    %v1014 = vunpack.c.h.bf16 %v941
    %v1015 = vunpack.c.l.bf16 %v942
    %v1016 = vunpack.c.h.bf16 %v942
    %v1017 = vunpack.c.l.bf16 %v943
    %v1018 = vunpack.c.h.bf16 %v943
    %v1019 = vunpack.c.l.bf16 %v944
    %v1020 = vunpack.c.h.bf16 %v944
    %v1021 = vunpack.c.l.bf16 %v945
    %v1022 = vunpack.c.h.bf16 %v945
    %v1023 = vunpack.c.l.bf16 %v946
    %v1024 = vunpack.c.h.bf16 %v946
    %v1025 = vunpack.c.l.bf16 %v947
    %v1026 = vunpack.c.h.bf16 %v947
    %v1027 = vunpack.c.l.bf16 %v948
    %v1028 = vunpack.c.h.bf16 %v948
    %v1029 = vunpack.c.l.bf16 %v949
    %v1030 = vunpack.c.h.bf16 %v949
    %v1031 = vunpack.c.l.bf16 %v950
    %v1032 = vunpack.c.h.bf16 %v950
    %v1033 = vunpack.c.l.bf16 %v951
    %v1034 = vunpack.c.h.bf16 %v951
    %v1035 = vunpack.c.l.bf16 %v952
    %v1036 = vunpack.c.h.bf16 %v952
    %v1037 = vunpack.c.l.bf16 %v953
    %v1038 = vunpack.c.h.bf16 %v953
    %v1039 = vunpack.c.l.bf16 %v954
    %v1040 = vunpack.c.h.bf16 %v954
    %v1041 = vunpack.c.l.bf16 %v955
    %v1042 = vunpack.c.h.bf16 %v955
    %v1043 = vunpack.c.l.bf16 %v956
    %v1044 = vunpack.c.h.bf16 %v956
    %v1045 = vunpack.c.l.bf16 %v957
    %v1046 = vunpack.c.h.bf16 %v957
    %v1047 = vunpack.c.l.bf16 %v958
    %v1048 = vunpack.c.h.bf16 %v958
    %v1049 = vunpack.c.l.bf16 %v959
    %v1050 = vunpack.c.h.bf16 %v959
    %v1051 = vunpack.c.l.bf16 %v960
    %v1052 = vunpack.c.h.bf16 %v960
    %v1053 = vunpack.c.l.bf16 %v961
    %v1054 = vunpack.c.h.bf16 %v961
    %v1055 = vunpack.c.l.bf16 %v962
    %v1056 = vunpack.c.h.bf16 %v962
    %v1057 = vunpack.c.l.bf16 %v963
    %v1058 = vunpack.c.h.bf16 %v963
    %v1059 = vunpack.c.l.bf16 %v964
    %v1060 = vunpack.c.h.bf16 %v964
    %v1061 = vunpack.c.l.bf16 %v965
    %v1062 = vunpack.c.h.bf16 %v965
    %v1063 = vunpack.c.l.bf16 %v966
    %v1064 = vunpack.c.h.bf16 %v966
    %v1065 = vunpack.c.l.bf16 %v967
    %v1066 = vunpack.c.h.bf16 %v967
    %v1067 = vunpack.c.l.bf16 %v968
    %v1068 = vunpack.c.h.bf16 %v968
    %v1069 = vunpack.c.l.bf16 %v969
    %v1070 = vunpack.c.h.bf16 %v969
    %v1071 = vunpack.c.l.bf16 %v970
    %v1072 = vunpack.c.h.bf16 %v970
    %v1073 = vunpack.c.l.bf16 %v971
    %v1074 = vunpack.c.h.bf16 %v971
    %v1075 = vunpack.c.l.bf16 %v972
    %v1076 = vunpack.c.h.bf16 %v972
    %v1077 = vunpack.c.l.bf16 %v973
    %v1078 = vunpack.c.h.bf16 %v973
    %v1079 = vunpack.c.l.bf16 %v974
    %v1080 = vunpack.c.h.bf16 %v974
    %v1081 = vunpack.c.l.bf16 %v975
    %v1082 = vunpack.c.h.bf16 %v975
    %v1083 = vunpack.c.l.bf16 %v976
    %v1084 = vunpack.c.h.bf16 %v976
    %v1085 = vunpack.c.l.bf16 %v977
    %v1086 = vunpack.c.h.bf16 %v977
    %v1087 = vunpack.c.l.bf16 %v978
    %v1088 = vunpack.c.h.bf16 %v978
    %v1089 = vunpack.c.l.bf16 %v979
    %v1090 = vunpack.c.h.bf16 %v979
    %v1091 = vunpack.c.l.bf16 %v980
    %v1092 = vunpack.c.h.bf16 %v980
    %v1093 = vunpack.c.l.bf16 %v981
    %v1094 = vunpack.c.h.bf16 %v981
    %v1095 = vunpack.c.l.bf16 %v982
    %v1096 = vunpack.c.h.bf16 %v982
    %v1097 = vunpack.c.l.bf16 %v983
    %v1098 = vunpack.c.h.bf16 %v983
    %v1099 = vunpack.c.l.bf16 %v984
    %v1100 = vunpack.c.h.bf16 %v984
    %v1101 = vunpack.c.l.bf16 %v985
    %v1102 = vunpack.c.h.bf16 %v985
    %v1103 = vunpack.c.l.bf16 %v986
    %v1104 = vunpack.c.h.bf16 %v986
    %v1105 = vunpack.c.l.bf16 %v987
    %v1106 = vunpack.c.h.bf16 %v987
    %v1107 = vunpack.c.l.bf16 %v988
    %v1108 = vunpack.c.h.bf16 %v988
    %v1109 = vunpack.c.l.bf16 %v989
    %v1110 = vunpack.c.h.bf16 %v989
    %v1111 = vunpack.c.l.bf16 %v990
    %v1112 = vunpack.c.h.bf16 %v990
    %v1113 = vunpack.c.l.bf16 %v991
    %v1114 = vunpack.c.h.bf16 %v991
    %v1115 = vunpack.c.l.bf16 %v992
    %v1116 = vunpack.c.h.bf16 %v992
    %v1117 = vunpack.c.l.bf16 %v993
    %v1118 = vunpack.c.h.bf16 %v993
    %v1119 = vunpack.c.l.bf16 %v994
    %v1120 = vunpack.c.h.bf16 %v994
    %v1121 = vunpack.c.l.bf16 %v995
    %v1122 = vunpack.c.h.bf16 %v995
    %v1123 = vunpack.c.l.bf16 %v996
    %v1124 = vunpack.c.h.bf16 %v996
    %1125 = vmatprep.subr.mxu0 %v1028
    %1126 = vmatpush1.msra.mxu0 %v1027
    %1127 = vmatprep.subr.mxu0 %v1026
    %1128 = vmatpush1.msra.mxu0 %v1025
    %1129 = vmatprep.subr.mxu0 %v1024
    %1130 = vmatpush1.msra.mxu0 %v1023
    %1131 = vmatprep.subr.mxu0 %v1022
    %1132 = vmatpush1.msra.mxu0 %v1021
    %1133 = vmatprep.subr.mxu0 %v1020
    %1134 = vmatpush1.msra.mxu0 %v1019
    %1135 = vmatprep.subr.mxu0 %v1018
    %1136 = vmatpush1.msra.mxu0 %v1017
    %1137 = vmatprep.subr.mxu0 %v1016
    %1138 = vmatpush1.msra.mxu0 %v1015
    %1139 = vmatprep.subr.mxu0 %v1014
    %1140 = vmatpush1.msra.mxu0 %v1013
    %1141 = vmatprep.subr.mxu0 %v1012
    %1142 = vmatpush1.msra.mxu0 %v1011
    %1143 = vmatprep.subr.mxu0 %v1010
    %1144 = vmatpush1.msra.mxu0 %v1009
    %1145 = vmatprep.subr.mxu0 %v1008
    %1146 = vmatpush1.msra.mxu0 %v1007
    %1147 = vmatprep.subr.mxu0 %v1006
    %1148 = vmatpush1.msra.mxu0 %v1005
    %1149 = vmatprep.subr.mxu0 %v1004
    %1150 = vmatpush1.msra.mxu0 %v1003
    %1151 = vmatprep.subr.mxu0 %v1002
    %1152 = vmatpush1.msra.mxu0 %v1001
    %1153 = vmatprep.subr.mxu0 %v1000
    %1154 = vmatpush1.msra.mxu0 %v999
    %1155 = vmatprep.subr.mxu0 %v998
    %1156 = vmatpush1.msra.mxu0 %v997
    %1157 = vmatprep.subr.mxu0 %v1060
    %1158 = vmatpush2.msra.mxu0 %v1059
    %1159 = vmatprep.subr.mxu0 %v1058
    %1160 = vmatpush2.msra.mxu0 %v1057
    %1161 = vmatprep.subr.mxu0 %v1056
    %1162 = vmatpush2.msra.mxu0 %v1055
    %1163 = vmatprep.subr.mxu0 %v1054
    %1164 = vmatpush2.msra.mxu0 %v1053
    %1165 = vmatprep.subr.mxu0 %v1052
    %1166 = vmatpush2.msra.mxu0 %v1051
    %1167 = vmatprep.subr.mxu0 %v1050
    %1168 = vmatpush2.msra.mxu0 %v1049
    %1169 = vmatprep.subr.mxu0 %v1048
    %1170 = vmatpush2.msra.mxu0 %v1047
    %1171 = vmatprep.subr.mxu0 %v1046
    %1172 = vmatpush2.msra.mxu0 %v1045
    %1173 = vmatprep.subr.mxu0 %v1044
    %1174 = vmatpush2.msra.mxu0 %v1043
    %1175 = vmatprep.subr.mxu0 %v1042
    %1176 = vmatpush2.msra.mxu0 %v1041
    %1177 = vmatprep.subr.mxu0 %v1040
    %1178 = vmatpush2.msra.mxu0 %v1039
    %1179 = vmatprep.subr.mxu0 %v1038
    %1180 = vmatpush2.msra.mxu0 %v1037
    %1181 = vmatprep.subr.mxu0 %v1036
    %1182 = vmatpush2.msra.mxu0 %v1035
    %1183 = vmatprep.subr.mxu0 %v1034
    %1184 = vmatpush2.msra.mxu0 %v1033
    %1185 = vmatprep.subr.mxu0 %v1032
    %1186 = vmatpush2.msra.mxu0 %v1031
    %1187 = vmatprep.subr.mxu0 %v1030
    %1188 = vmatpush2.msra.mxu0 %v1029
    %1189 = vmatprep.mubr.f32.mxu0 %v453
    %1190 = vmatmul.mubr.f32.gmra.mxu0 %v452
    %v1191 = vpop.f32.mrf.mxu0
    %v1192 = vadd.f32 0.0, %v1191
    %v1193 = vpop.f32.mrf.mxu0
    %v1194 = vadd.f32 0.0, %v1193
    %1195 = vmatprep.mubr.f32.mxu0 %v457
    %1196 = vmatmul.mubr.f32.gmra.mxu0 %v456
    %v1197 = vpop.f32.mrf.mxu0
    %v1198 = vadd.f32 0.0, %v1197
    %v1199 = vpop.f32.mrf.mxu0
    %v1200 = vadd.f32 0.0, %v1199
    %1201 = vmatprep.mubr.f32.mxu0 %v461
    %1202 = vmatmul.mubr.f32.gmra.mxu0 %v460
    %v1203 = vpop.f32.mrf.mxu0
    %v1204 = vadd.f32 0.0, %v1203
    %v1205 = vpop.f32.mrf.mxu0
    %v1206 = vadd.f32 0.0, %v1205
    %1207 = vmatprep.mubr.f32.mxu0 %v465
    %1208 = vmatmul.mubr.f32.gmra.mxu0 %v464
    %v1209 = vpop.f32.mrf.mxu0
    %v1210 = vadd.f32 0.0, %v1209
    %v1211 = vpop.f32.mrf.mxu0
    %v1212 = vadd.f32 0.0, %v1211
    %1213 = vmatprep.mubr.f32.mxu0 %v469
    %1214 = vmatmul.mubr.f32.gmra.mxu0 %v468
    %v1215 = vpop.f32.mrf.mxu0
    %v1216 = vadd.f32 0.0, %v1215
    %v1217 = vpop.f32.mrf.mxu0
    %v1218 = vadd.f32 0.0, %v1217
    %1219 = vmatprep.mubr.f32.mxu0 %v473
    %1220 = vmatmul.mubr.f32.gmra.mxu0 %v472
    %v1221 = vpop.f32.mrf.mxu0
    %v1222 = vadd.f32 0.0, %v1221
    %v1223 = vpop.f32.mrf.mxu0
    %v1224 = vadd.f32 0.0, %v1223
    %1225 = vmatprep.mubr.f32.mxu0 %v477
    %1226 = vmatmul.mubr.f32.gmra.mxu0 %v476
    %v1227 = vpop.f32.mrf.mxu0
    %v1228 = vadd.f32 0.0, %v1227
    %v1229 = vpop.f32.mrf.mxu0
    %v1230 = vadd.f32 0.0, %v1229
    %1231 = vmatprep.mubr.f32.mxu0 %v481
    %1232 = vmatmul.mubr.f32.gmra.mxu0 %v480
    %v1233 = vpop.f32.mrf.mxu0
    %v1234 = vadd.f32 0.0, %v1233
    %v1235 = vpop.f32.mrf.mxu0
    %v1236 = vadd.f32 0.0, %v1235
    %1237 = vmatprep.mubr.f32.mxu0 %v485
    %1238 = vmatmul.mubr.f32.gmra.mxu0 %v484
    %v1239 = vpop.f32.mrf.mxu0
    %v1240 = vadd.f32 0.0, %v1239
    %v1241 = vpop.f32.mrf.mxu0
    %v1242 = vadd.f32 0.0, %v1241
    %1243 = vmatprep.mubr.f32.mxu0 %v489
    %1244 = vmatmul.mubr.f32.gmra.mxu0 %v488
    %v1245 = vpop.f32.mrf.mxu0
    %v1246 = vadd.f32 0.0, %v1245
    %v1247 = vpop.f32.mrf.mxu0
    %v1248 = vadd.f32 0.0, %v1247
    %1249 = vmatprep.mubr.f32.mxu0 %v493
    %1250 = vmatmul.mubr.f32.gmra.mxu0 %v492
    %v1251 = vpop.f32.mrf.mxu0
    %v1252 = vadd.f32 0.0, %v1251
    %v1253 = vpop.f32.mrf.mxu0
    %v1254 = vadd.f32 0.0, %v1253
    %1255 = vmatprep.mubr.f32.mxu0 %v497
    %1256 = vmatmul.mubr.f32.gmra.mxu0 %v496
    %v1257 = vpop.f32.mrf.mxu0
    %v1258 = vadd.f32 0.0, %v1257
    %v1259 = vpop.f32.mrf.mxu0
    %v1260 = vadd.f32 0.0, %v1259
    %1261 = vmatprep.mubr.f32.mxu0 %v501
    %1262 = vmatmul.mubr.f32.gmra.mxu0 %v500
    %v1263 = vpop.f32.mrf.mxu0
    %v1264 = vadd.f32 0.0, %v1263
    %v1265 = vpop.f32.mrf.mxu0
    %v1266 = vadd.f32 0.0, %v1265
    %1267 = vmatprep.mubr.f32.mxu0 %v505
    %1268 = vmatmul.mubr.f32.gmra.mxu0 %v504
    %v1269 = vpop.f32.mrf.mxu0
    %v1270 = vadd.f32 0.0, %v1269
    %v1271 = vpop.f32.mrf.mxu0
    %v1272 = vadd.f32 0.0, %v1271
    %1273 = vmatprep.mubr.f32.mxu0 %v509
    %1274 = vmatmul.mubr.f32.gmra.mxu0 %v508
    %v1275 = vpop.f32.mrf.mxu0
    %v1276 = vadd.f32 0.0, %v1275
    %v1277 = vpop.f32.mrf.mxu0
    %v1278 = vadd.f32 0.0, %v1277
    %1279 = vmatprep.mubr.f32.mxu0 %v513
    %1280 = vmatmul.mubr.f32.gmra.mxu0 %v512
    %v1281 = vpop.f32.mrf.mxu0
    %v1282 = vadd.f32 0.0, %v1281
    %v1283 = vpop.f32.mrf.mxu0
    %v1284 = vadd.f32 0.0, %v1283
    %1285 = vdwg.mxu0
    %1286 = vmatprep.subr.mxu0 %v1092
    %1287 = vmatpush1.msra.mxu0 %v1091
    %1288 = vmatprep.subr.mxu0 %v1090
    %1289 = vmatpush1.msra.mxu0 %v1089
    %1290 = vmatprep.subr.mxu0 %v1088
    %1291 = vmatpush1.msra.mxu0 %v1087
    %1292 = vmatprep.subr.mxu0 %v1086
    %1293 = vmatpush1.msra.mxu0 %v1085
    %1294 = vmatprep.subr.mxu0 %v1084
    %1295 = vmatpush1.msra.mxu0 %v1083
    %1296 = vmatprep.subr.mxu0 %v1082
    %1297 = vmatpush1.msra.mxu0 %v1081
    %1298 = vmatprep.subr.mxu0 %v1080
    %1299 = vmatpush1.msra.mxu0 %v1079
    %1300 = vmatprep.subr.mxu0 %v1078
    %1301 = vmatpush1.msra.mxu0 %v1077
    %1302 = vmatprep.subr.mxu0 %v1076
    %1303 = vmatpush1.msra.mxu0 %v1075
    %1304 = vmatprep.subr.mxu0 %v1074
    %1305 = vmatpush1.msra.mxu0 %v1073
    %1306 = vmatprep.subr.mxu0 %v1072
    %1307 = vmatpush1.msra.mxu0 %v1071
    %1308 = vmatprep.subr.mxu0 %v1070
    %1309 = vmatpush1.msra.mxu0 %v1069
    %1310 = vmatprep.subr.mxu0 %v1068
    %1311 = vmatpush1.msra.mxu0 %v1067
    %1312 = vmatprep.subr.mxu0 %v1066
    %1313 = vmatpush1.msra.mxu0 %v1065
    %1314 = vmatprep.subr.mxu0 %v1064
    %1315 = vmatpush1.msra.mxu0 %v1063
    %1316 = vmatprep.subr.mxu0 %v1062
    %1317 = vmatpush1.msra.mxu0 %v1061
    %1318 = vmatprep.subr.mxu0 %v1124
    %1319 = vmatpush2.msra.mxu0 %v1123
    %1320 = vmatprep.subr.mxu0 %v1122
    %1321 = vmatpush2.msra.mxu0 %v1121
    %1322 = vmatprep.subr.mxu0 %v1120
    %1323 = vmatpush2.msra.mxu0 %v1119
    %1324 = vmatprep.subr.mxu0 %v1118
    %1325 = vmatpush2.msra.mxu0 %v1117
    %1326 = vmatprep.subr.mxu0 %v1116
    %1327 = vmatpush2.msra.mxu0 %v1115
    %1328 = vmatprep.subr.mxu0 %v1114
    %1329 = vmatpush2.msra.mxu0 %v1113
    %1330 = vmatprep.subr.mxu0 %v1112
    %1331 = vmatpush2.msra.mxu0 %v1111
    %1332 = vmatprep.subr.mxu0 %v1110
    %1333 = vmatpush2.msra.mxu0 %v1109
    %1334 = vmatprep.subr.mxu0 %v1108
    %1335 = vmatpush2.msra.mxu0 %v1107
    %1336 = vmatprep.subr.mxu0 %v1106
    %1337 = vmatpush2.msra.mxu0 %v1105
    %1338 = vmatprep.subr.mxu0 %v1104
    %1339 = vmatpush2.msra.mxu0 %v1103
    %1340 = vmatprep.subr.mxu0 %v1102
    %1341 = vmatpush2.msra.mxu0 %v1101
    %1342 = vmatprep.subr.mxu0 %v1100
    %1343 = vmatpush2.msra.mxu0 %v1099
    %1344 = vmatprep.subr.mxu0 %v1098
    %1345 = vmatpush2.msra.mxu0 %v1097
    %1346 = vmatprep.subr.mxu0 %v1096
    %1347 = vmatpush2.msra.mxu0 %v1095
    %1348 = vmatprep.subr.mxu0 %v1094
    %1349 = vmatpush2.msra.mxu0 %v1093
    %1350 = vmatprep.mubr.f32.mxu0 %v455
    %1351 = vmatmul.mubr.f32.gmra.mxu0 %v454
    %v1352 = vpop.f32.mrf.mxu0
    %v1353 = vadd.f32 %v1192, %v1352
    %v1354 = vpop.f32.mrf.mxu0
    %v1355 = vadd.f32 %v1194, %v1354
    %1356 = vmatprep.mubr.f32.mxu0 %v459
    %1357 = vmatmul.mubr.f32.gmra.mxu0 %v458
    %v1358 = vpop.f32.mrf.mxu0
    %v1359 = vadd.f32 %v1198, %v1358
    %v1360 = vpop.f32.mrf.mxu0
    %v1361 = vadd.f32 %v1200, %v1360
    %1362 = vmatprep.mubr.f32.mxu0 %v463
    %1363 = vmatmul.mubr.f32.gmra.mxu0 %v462
    %v1364 = vpop.f32.mrf.mxu0
    %v1365 = vadd.f32 %v1204, %v1364
    %v1366 = vpop.f32.mrf.mxu0
    %v1367 = vadd.f32 %v1206, %v1366
    %1368 = vmatprep.mubr.f32.mxu0 %v467
    %1369 = vmatmul.mubr.f32.gmra.mxu0 %v466
    %v1370 = vpop.f32.mrf.mxu0
    %v1371 = vadd.f32 %v1210, %v1370
    %v1372 = vpop.f32.mrf.mxu0
    %v1373 = vadd.f32 %v1212, %v1372
    %1374 = vmatprep.mubr.f32.mxu0 %v471
    %1375 = vmatmul.mubr.f32.gmra.mxu0 %v470
    %v1376 = vpop.f32.mrf.mxu0
    %v1377 = vadd.f32 %v1216, %v1376
    %v1378 = vpop.f32.mrf.mxu0
    %v1379 = vadd.f32 %v1218, %v1378
    %1380 = vmatprep.mubr.f32.mxu0 %v475
    %1381 = vmatmul.mubr.f32.gmra.mxu0 %v474
    %v1382 = vpop.f32.mrf.mxu0
    %v1383 = vadd.f32 %v1222, %v1382
    %v1384 = vpop.f32.mrf.mxu0
    %v1385 = vadd.f32 %v1224, %v1384
    %1386 = vmatprep.mubr.f32.mxu0 %v479
    %1387 = vmatmul.mubr.f32.gmra.mxu0 %v478
    %v1388 = vpop.f32.mrf.mxu0
    %v1389 = vadd.f32 %v1228, %v1388
    %v1390 = vpop.f32.mrf.mxu0
    %v1391 = vadd.f32 %v1230, %v1390
    %1392 = vmatprep.mubr.f32.mxu0 %v483
    %1393 = vmatmul.mubr.f32.gmra.mxu0 %v482
    %v1394 = vpop.f32.mrf.mxu0
    %v1395 = vadd.f32 %v1234, %v1394
    %v1396 = vpop.f32.mrf.mxu0
    %v1397 = vadd.f32 %v1236, %v1396
    %1398 = vmatprep.mubr.f32.mxu0 %v487
    %1399 = vmatmul.mubr.f32.gmra.mxu0 %v486
    %v1400 = vpop.f32.mrf.mxu0
    %v1401 = vadd.f32 %v1240, %v1400
    %v1402 = vpop.f32.mrf.mxu0
    %v1403 = vadd.f32 %v1242, %v1402
    %1404 = vmatprep.mubr.f32.mxu0 %v491
    %1405 = vmatmul.mubr.f32.gmra.mxu0 %v490
    %v1406 = vpop.f32.mrf.mxu0
    %v1407 = vadd.f32 %v1246, %v1406
    %v1408 = vpop.f32.mrf.mxu0
    %v1409 = vadd.f32 %v1248, %v1408
    %1410 = vmatprep.mubr.f32.mxu0 %v495
    %1411 = vmatmul.mubr.f32.gmra.mxu0 %v494
    %v1412 = vpop.f32.mrf.mxu0
    %v1413 = vadd.f32 %v1252, %v1412
    %v1414 = vpop.f32.mrf.mxu0
    %v1415 = vadd.f32 %v1254, %v1414
    %1416 = vmatprep.mubr.f32.mxu0 %v499
    %1417 = vmatmul.mubr.f32.gmra.mxu0 %v498
    %v1418 = vpop.f32.mrf.mxu0
    %v1419 = vadd.f32 %v1258, %v1418
    %v1420 = vpop.f32.mrf.mxu0
    %v1421 = vadd.f32 %v1260, %v1420
    %1422 = vmatprep.mubr.f32.mxu0 %v503
    %1423 = vmatmul.mubr.f32.gmra.mxu0 %v502
    %v1424 = vpop.f32.mrf.mxu0
    %v1425 = vadd.f32 %v1264, %v1424
    %v1426 = vpop.f32.mrf.mxu0
    %v1427 = vadd.f32 %v1266, %v1426
    %1428 = vmatprep.mubr.f32.mxu0 %v507
    %1429 = vmatmul.mubr.f32.gmra.mxu0 %v506
    %v1430 = vpop.f32.mrf.mxu0
    %v1431 = vadd.f32 %v1270, %v1430
    %v1432 = vpop.f32.mrf.mxu0
    %v1433 = vadd.f32 %v1272, %v1432
    %1434 = vmatprep.mubr.f32.mxu0 %v511
    %1435 = vmatmul.mubr.f32.gmra.mxu0 %v510
    %v1436 = vpop.f32.mrf.mxu0
    %v1437 = vadd.f32 %v1276, %v1436
    %v1438 = vpop.f32.mrf.mxu0
    %v1439 = vadd.f32 %v1278, %v1438
    %1440 = vmatprep.mubr.f32.mxu0 %v515
    %1441 = vmatmul.mubr.f32.gmra.mxu0 %v514
    %v1442 = vpop.f32.mrf.mxu0
    %v1443 = vadd.f32 %v1282, %v1442
    %v1444 = vpop.f32.mrf.mxu0
    %v1445 = vadd.f32 %v1284, %v1444
    %1446 = vdwg.mxu0
    %1447 = vmatprep.subr.mxu0 %v836
    %1448 = vmatpush1.msra.mxu0 %v835
    %1449 = vmatprep.subr.mxu0 %v834
    %1450 = vmatpush1.msra.mxu0 %v833
    %1451 = vmatprep.subr.mxu0 %v832
    %1452 = vmatpush1.msra.mxu0 %v831
    %1453 = vmatprep.subr.mxu0 %v830
    %1454 = vmatpush1.msra.mxu0 %v829
    %1455 = vmatprep.subr.mxu0 %v828
    %1456 = vmatpush1.msra.mxu0 %v827
    %1457 = vmatprep.subr.mxu0 %v826
    %1458 = vmatpush1.msra.mxu0 %v825
    %1459 = vmatprep.subr.mxu0 %v824
    %1460 = vmatpush1.msra.mxu0 %v823
    %1461 = vmatprep.subr.mxu0 %v822
    %1462 = vmatpush1.msra.mxu0 %v821
    %1463 = vmatprep.subr.mxu0 %v820
    %1464 = vmatpush1.msra.mxu0 %v819
    %1465 = vmatprep.subr.mxu0 %v818
    %1466 = vmatpush1.msra.mxu0 %v817
    %1467 = vmatprep.subr.mxu0 %v816
    %1468 = vmatpush1.msra.mxu0 %v815
    %1469 = vmatprep.subr.mxu0 %v814
    %1470 = vmatpush1.msra.mxu0 %v813
    %1471 = vmatprep.subr.mxu0 %v812
    %1472 = vmatpush1.msra.mxu0 %v811
    %1473 = vmatprep.subr.mxu0 %v810
    %1474 = vmatpush1.msra.mxu0 %v809
    %1475 = vmatprep.subr.mxu0 %v808
    %1476 = vmatpush1.msra.mxu0 %v807
    %1477 = vmatprep.subr.mxu0 %v806
    %1478 = vmatpush1.msra.mxu0 %v805
    %1479 = vmatprep.subr.mxu0 %v868
    %1480 = vmatpush2.msra.mxu0 %v867
    %1481 = vmatprep.subr.mxu0 %v866
    %1482 = vmatpush2.msra.mxu0 %v865
    %1483 = vmatprep.subr.mxu0 %v864
    %1484 = vmatpush2.msra.mxu0 %v863
    %1485 = vmatprep.subr.mxu0 %v862
    %1486 = vmatpush2.msra.mxu0 %v861
    %1487 = vmatprep.subr.mxu0 %v860
    %1488 = vmatpush2.msra.mxu0 %v859
    %1489 = vmatprep.subr.mxu0 %v858
    %1490 = vmatpush2.msra.mxu0 %v857
    %1491 = vmatprep.subr.mxu0 %v856
    %1492 = vmatpush2.msra.mxu0 %v855
    %1493 = vmatprep.subr.mxu0 %v854
    %1494 = vmatpush2.msra.mxu0 %v853
    %1495 = vmatprep.subr.mxu0 %v852
    %1496 = vmatpush2.msra.mxu0 %v851
    %1497 = vmatprep.subr.mxu0 %v850
    %1498 = vmatpush2.msra.mxu0 %v849
    %1499 = vmatprep.subr.mxu0 %v848
    %1500 = vmatpush2.msra.mxu0 %v847
    %1501 = vmatprep.subr.mxu0 %v846
    %1502 = vmatpush2.msra.mxu0 %v845
    %1503 = vmatprep.subr.mxu0 %v844
    %1504 = vmatpush2.msra.mxu0 %v843
    %1505 = vmatprep.subr.mxu0 %v842
    %1506 = vmatpush2.msra.mxu0 %v841
    %1507 = vmatprep.subr.mxu0 %v840
    %1508 = vmatpush2.msra.mxu0 %v839
    %1509 = vmatprep.subr.mxu0 %v838
    %1510 = vmatpush2.msra.mxu0 %v837
    %1511 = vmatprep.mubr.f32.mxu0 %v83
    %1512 = vmatmul.mubr.f32.gmra.mxu0 %v82
    %v1513 = vpop.f32.mrf.mxu0
    %v1514 = vadd.f32 %v1353, %v1513
    %v1515 = vpop.f32.mrf.mxu0
    %v1516 = vadd.f32 %v1355, %v1515
    %1517 = vmatprep.mubr.f32.mxu0 %v85
    %1518 = vmatmul.mubr.f32.gmra.mxu0 %v84
    %v1519 = vpop.f32.mrf.mxu0
    %v1520 = vadd.f32 %v1359, %v1519
    %v1521 = vpop.f32.mrf.mxu0
    %v1522 = vadd.f32 %v1361, %v1521
    %1523 = vmatprep.mubr.f32.mxu0 %v87
    %1524 = vmatmul.mubr.f32.gmra.mxu0 %v86
    %v1525 = vpop.f32.mrf.mxu0
    %v1526 = vadd.f32 %v1365, %v1525
    %v1527 = vpop.f32.mrf.mxu0
    %v1528 = vadd.f32 %v1367, %v1527
    %1529 = vmatprep.mubr.f32.mxu0 %v89
    %1530 = vmatmul.mubr.f32.gmra.mxu0 %v88
    %v1531 = vpop.f32.mrf.mxu0
    %v1532 = vadd.f32 %v1371, %v1531
    %v1533 = vpop.f32.mrf.mxu0
    %v1534 = vadd.f32 %v1373, %v1533
    %1535 = vmatprep.mubr.f32.mxu0 %v91
    %1536 = vmatmul.mubr.f32.gmra.mxu0 %v90
    %v1537 = vpop.f32.mrf.mxu0
    %v1538 = vadd.f32 %v1377, %v1537
    %v1539 = vpop.f32.mrf.mxu0
    %v1540 = vadd.f32 %v1379, %v1539
    %1541 = vmatprep.mubr.f32.mxu0 %v93
    %1542 = vmatmul.mubr.f32.gmra.mxu0 %v92
    %v1543 = vpop.f32.mrf.mxu0
    %v1544 = vadd.f32 %v1383, %v1543
    %v1545 = vpop.f32.mrf.mxu0
    %v1546 = vadd.f32 %v1385, %v1545
    %1547 = vmatprep.mubr.f32.mxu0 %v95
    %1548 = vmatmul.mubr.f32.gmra.mxu0 %v94
    %v1549 = vpop.f32.mrf.mxu0
    %v1550 = vadd.f32 %v1389, %v1549
    %v1551 = vpop.f32.mrf.mxu0
    %v1552 = vadd.f32 %v1391, %v1551
    %1553 = vmatprep.mubr.f32.mxu0 %v97
    %1554 = vmatmul.mubr.f32.gmra.mxu0 %v96
    %v1555 = vpop.f32.mrf.mxu0
    %v1556 = vadd.f32 %v1395, %v1555
    %v1557 = vpop.f32.mrf.mxu0
    %v1558 = vadd.f32 %v1397, %v1557
    %1559 = vmatprep.mubr.f32.mxu0 %v99
    %1560 = vmatmul.mubr.f32.gmra.mxu0 %v98
    %v1561 = vpop.f32.mrf.mxu0
    %v1562 = vadd.f32 %v1401, %v1561
    %v1563 = vpop.f32.mrf.mxu0
    %v1564 = vadd.f32 %v1403, %v1563
    %1565 = vmatprep.mubr.f32.mxu0 %v101
    %1566 = vmatmul.mubr.f32.gmra.mxu0 %v100
    %v1567 = vpop.f32.mrf.mxu0
    %v1568 = vadd.f32 %v1407, %v1567
    %v1569 = vpop.f32.mrf.mxu0
    %v1570 = vadd.f32 %v1409, %v1569
    %1571 = vmatprep.mubr.f32.mxu0 %v103
    %1572 = vmatmul.mubr.f32.gmra.mxu0 %v102
    %v1573 = vpop.f32.mrf.mxu0
    %v1574 = vadd.f32 %v1413, %v1573
    %v1575 = vpop.f32.mrf.mxu0
    %v1576 = vadd.f32 %v1415, %v1575
    %1577 = vmatprep.mubr.f32.mxu0 %v105
    %1578 = vmatmul.mubr.f32.gmra.mxu0 %v104
    %v1579 = vpop.f32.mrf.mxu0
    %v1580 = vadd.f32 %v1419, %v1579
    %v1581 = vpop.f32.mrf.mxu0
    %v1582 = vadd.f32 %v1421, %v1581
    %1583 = vmatprep.mubr.f32.mxu0 %v107
    %1584 = vmatmul.mubr.f32.gmra.mxu0 %v106
    %v1585 = vpop.f32.mrf.mxu0
    %v1586 = vadd.f32 %v1425, %v1585
    %v1587 = vpop.f32.mrf.mxu0
    %v1588 = vadd.f32 %v1427, %v1587
    %1589 = vmatprep.mubr.f32.mxu0 %v109
    %1590 = vmatmul.mubr.f32.gmra.mxu0 %v108
    %v1591 = vpop.f32.mrf.mxu0
    %v1592 = vadd.f32 %v1431, %v1591
    %v1593 = vpop.f32.mrf.mxu0
    %v1594 = vadd.f32 %v1433, %v1593
    %1595 = vmatprep.mubr.f32.mxu0 %v111
    %1596 = vmatmul.mubr.f32.gmra.mxu0 %v110
    %v1597 = vpop.f32.mrf.mxu0
    %v1598 = vadd.f32 %v1437, %v1597
    %v1599 = vpop.f32.mrf.mxu0
    %v1600 = vadd.f32 %v1439, %v1599
    %1601 = vmatprep.mubr.f32.mxu0 %v113
    %1602 = vmatmul.mubr.f32.gmra.mxu0 %v112
    %v1603 = vpop.f32.mrf.mxu0
    %v1604 = vadd.f32 %v1443, %v1603
    %v1605 = vpop.f32.mrf.mxu0
    %v1606 = vadd.f32 %v1445, %v1605
    %1607 = vdwg.mxu0
    %1608 = vmatprep.subr.mxu0 %v900
    %1609 = vmatpush1.msra.mxu0 %v899
    %1610 = vmatprep.subr.mxu0 %v898
    %1611 = vmatpush1.msra.mxu0 %v897
    %1612 = vmatprep.subr.mxu0 %v896
    %1613 = vmatpush1.msra.mxu0 %v895
    %1614 = vmatprep.subr.mxu0 %v894
    %1615 = vmatpush1.msra.mxu0 %v893
    %1616 = vmatprep.subr.mxu0 %v892
    %1617 = vmatpush1.msra.mxu0 %v891
    %1618 = vmatprep.subr.mxu0 %v890
    %1619 = vmatpush1.msra.mxu0 %v889
    %1620 = vmatprep.subr.mxu0 %v888
    %1621 = vmatpush1.msra.mxu0 %v887
    %1622 = vmatprep.subr.mxu0 %v886
    %1623 = vmatpush1.msra.mxu0 %v885
    %1624 = vmatprep.subr.mxu0 %v884
    %1625 = vmatpush1.msra.mxu0 %v883
    %1626 = vmatprep.subr.mxu0 %v882
    %1627 = vmatpush1.msra.mxu0 %v881
    %1628 = vmatprep.subr.mxu0 %v880
    %1629 = vmatpush1.msra.mxu0 %v879
    %1630 = vmatprep.subr.mxu0 %v878
    %1631 = vmatpush1.msra.mxu0 %v877
    %1632 = vmatprep.subr.mxu0 %v876
    %1633 = vmatpush1.msra.mxu0 %v875
    %1634 = vmatprep.subr.mxu0 %v874
    %1635 = vmatpush1.msra.mxu0 %v873
    %1636 = vmatprep.subr.mxu0 %v872
    %1637 = vmatpush1.msra.mxu0 %v871
    %1638 = vmatprep.subr.mxu0 %v870
    %1639 = vmatpush1.msra.mxu0 %v869
    %1640 = vmatprep.subr.mxu0 %v932
    %1641 = vmatpush2.msra.mxu0 %v931
    %1642 = vmatprep.subr.mxu0 %v930
    %1643 = vmatpush2.msra.mxu0 %v929
    %1644 = vmatprep.subr.mxu0 %v928
    %1645 = vmatpush2.msra.mxu0 %v927
    %1646 = vmatprep.subr.mxu0 %v926
    %1647 = vmatpush2.msra.mxu0 %v925
    %1648 = vmatprep.subr.mxu0 %v924
    %1649 = vmatpush2.msra.mxu0 %v923
    %1650 = vmatprep.subr.mxu0 %v922
    %1651 = vmatpush2.msra.mxu0 %v921
    %1652 = vmatprep.subr.mxu0 %v920
    %1653 = vmatpush2.msra.mxu0 %v919
    %1654 = vmatprep.subr.mxu0 %v918
    %1655 = vmatpush2.msra.mxu0 %v917
    %1656 = vmatprep.subr.mxu0 %v916
    %1657 = vmatpush2.msra.mxu0 %v915
    %1658 = vmatprep.subr.mxu0 %v914
    %1659 = vmatpush2.msra.mxu0 %v913
    %1660 = vmatprep.subr.mxu0 %v912
    %1661 = vmatpush2.msra.mxu0 %v911
    %1662 = vmatprep.subr.mxu0 %v910
    %1663 = vmatpush2.msra.mxu0 %v909
    %1664 = vmatprep.subr.mxu0 %v908
    %1665 = vmatpush2.msra.mxu0 %v907
    %1666 = vmatprep.subr.mxu0 %v906
    %1667 = vmatpush2.msra.mxu0 %v905
    %1668 = vmatprep.subr.mxu0 %v904
    %1669 = vmatpush2.msra.mxu0 %v903
    %1670 = vmatprep.subr.mxu0 %v902
    %1671 = vmatpush2.msra.mxu0 %v901
    %1672 = vmatprep.mubr.f32.mxu0 %v260
    %1673 = vmatmul.mubr.f32.gmra.mxu0 %v259
    %v1674 = vpop.f32.mrf.mxu0
    %v1675 = vadd.f32 %v1514, %v1674
    %v1676 = vpop.f32.mrf.mxu0
    %v1677 = vadd.f32 %v1516, %v1676
    %1678 = vmatprep.mubr.f32.mxu0 %v262
    %1679 = vmatmul.mubr.f32.gmra.mxu0 %v261
    %v1680 = vpop.f32.mrf.mxu0
    %v1681 = vadd.f32 %v1520, %v1680
    %v1682 = vpop.f32.mrf.mxu0
    %v1683 = vadd.f32 %v1522, %v1682
    %1684 = vmatprep.mubr.f32.mxu0 %v264
    %1685 = vmatmul.mubr.f32.gmra.mxu0 %v263
    %v1686 = vpop.f32.mrf.mxu0
    %v1687 = vadd.f32 %v1526, %v1686
    %v1688 = vpop.f32.mrf.mxu0
    %v1689 = vadd.f32 %v1528, %v1688
    %1690 = vmatprep.mubr.f32.mxu0 %v266
    %1691 = vmatmul.mubr.f32.gmra.mxu0 %v265
    %v1692 = vpop.f32.mrf.mxu0
    %v1693 = vadd.f32 %v1532, %v1692
    %v1694 = vpop.f32.mrf.mxu0
    %v1695 = vadd.f32 %v1534, %v1694
    %1696 = vmatprep.mubr.f32.mxu0 %v268
    %1697 = vmatmul.mubr.f32.gmra.mxu0 %v267
    %v1698 = vpop.f32.mrf.mxu0
    %v1699 = vadd.f32 %v1538, %v1698
    %v1700 = vpop.f32.mrf.mxu0
    %v1701 = vadd.f32 %v1540, %v1700
    %1702 = vmatprep.mubr.f32.mxu0 %v270
    %1703 = vmatmul.mubr.f32.gmra.mxu0 %v269
    %v1704 = vpop.f32.mrf.mxu0
    %v1705 = vadd.f32 %v1544, %v1704
    %v1706 = vpop.f32.mrf.mxu0
    %v1707 = vadd.f32 %v1546, %v1706
    %1708 = vmatprep.mubr.f32.mxu0 %v272
    %1709 = vmatmul.mubr.f32.gmra.mxu0 %v271
    %v1710 = vpop.f32.mrf.mxu0
    %v1711 = vadd.f32 %v1550, %v1710
    %v1712 = vpop.f32.mrf.mxu0
    %v1713 = vadd.f32 %v1552, %v1712
    %1714 = vmatprep.mubr.f32.mxu0 %v274
    %1715 = vmatmul.mubr.f32.gmra.mxu0 %v273
    %v1716 = vpop.f32.mrf.mxu0
    %v1717 = vadd.f32 %v1556, %v1716
    %v1718 = vpop.f32.mrf.mxu0
    %v1719 = vadd.f32 %v1558, %v1718
    %1720 = vmatprep.mubr.f32.mxu0 %v276
    %1721 = vmatmul.mubr.f32.gmra.mxu0 %v275
    %v1722 = vpop.f32.mrf.mxu0
    %v1723 = vadd.f32 %v1562, %v1722
    %v1724 = vpop.f32.mrf.mxu0
    %v1725 = vadd.f32 %v1564, %v1724
    %1726 = vmatprep.mubr.f32.mxu0 %v278
    %1727 = vmatmul.mubr.f32.gmra.mxu0 %v277
    %v1728 = vpop.f32.mrf.mxu0
    %v1729 = vadd.f32 %v1568, %v1728
    %v1730 = vpop.f32.mrf.mxu0
    %v1731 = vadd.f32 %v1570, %v1730
    %1732 = vmatprep.mubr.f32.mxu0 %v280
    %1733 = vmatmul.mubr.f32.gmra.mxu0 %v279
    %v1734 = vpop.f32.mrf.mxu0
    %v1735 = vadd.f32 %v1574, %v1734
    %v1736 = vpop.f32.mrf.mxu0
    %v1737 = vadd.f32 %v1576, %v1736
    %1738 = vmatprep.mubr.f32.mxu0 %v282
    %1739 = vmatmul.mubr.f32.gmra.mxu0 %v281
    %v1740 = vpop.f32.mrf.mxu0
    %v1741 = vadd.f32 %v1580, %v1740
    %v1742 = vpop.f32.mrf.mxu0
    %v1743 = vadd.f32 %v1582, %v1742
    %1744 = vmatprep.mubr.f32.mxu0 %v284
    %1745 = vmatmul.mubr.f32.gmra.mxu0 %v283
    %v1746 = vpop.f32.mrf.mxu0
    %v1747 = vadd.f32 %v1586, %v1746
    %v1748 = vpop.f32.mrf.mxu0
    %v1749 = vadd.f32 %v1588, %v1748
    %1750 = vmatprep.mubr.f32.mxu0 %v286
    %1751 = vmatmul.mubr.f32.gmra.mxu0 %v285
    %v1752 = vpop.f32.mrf.mxu0
    %v1753 = vadd.f32 %v1592, %v1752
    %v1754 = vpop.f32.mrf.mxu0
    %v1755 = vadd.f32 %v1594, %v1754
    %1756 = vmatprep.mubr.f32.mxu0 %v288
    %1757 = vmatmul.mubr.f32.gmra.mxu0 %v287
    %v1758 = vpop.f32.mrf.mxu0
    %v1759 = vadd.f32 %v1598, %v1758
    %v1760 = vpop.f32.mrf.mxu0
    %v1761 = vadd.f32 %v1600, %v1760
    %1762 = vmatprep.mubr.f32.mxu0 %v290
    %1763 = vmatmul.mubr.f32.gmra.mxu0 %v289
    %v1764 = vpop.f32.mrf.mxu0
    %v1765 = vadd.f32 %v1604, %v1764
    %v1766 = vpop.f32.mrf.mxu0
    %v1767 = vadd.f32 %v1606, %v1766
    %1768 = vdwg.mxu0
    %v1769 = vld [vmem:[#allocation8] sm:$0xff]
    %v1770 = vld [vmem:[#allocation8 + $0x8] sm:$0xff]
    %v1771 = vld [vmem:[#allocation8 + $0x10] sm:$0xff]
    %v1772 = vld [vmem:[#allocation8 + $0x18] sm:$0xff]
    %v1773 = vld [vmem:[#allocation8 + $0x20] sm:$0xff]
    %v1774 = vld [vmem:[#allocation8 + $0x28] sm:$0xff]
    %v1775 = vld [vmem:[#allocation8 + $0x30] sm:$0xff]
    %v1776 = vld [vmem:[#allocation8 + $0x38] sm:$0xff]
    %v1777 = vld [vmem:[#allocation8 + $0x40] sm:$0xff]
    %v1778 = vld [vmem:[#allocation8 + $0x48] sm:$0xff]
    %v1779 = vld [vmem:[#allocation8 + $0x50] sm:$0xff]
    %v1780 = vld [vmem:[#allocation8 + $0x58] sm:$0xff]
    %v1781 = vld [vmem:[#allocation8 + $0x60] sm:$0xff]
    %v1782 = vld [vmem:[#allocation8 + $0x68] sm:$0xff]
    %v1783 = vld [vmem:[#allocation8 + $0x70] sm:$0xff]
    %v1784 = vld [vmem:[#allocation8 + $0x78] sm:$0xff]
    %v1785 = vld [vmem:[#allocation8 + $0x80] sm:$0xff]
    %v1786 = vld [vmem:[#allocation8 + $0x88] sm:$0xff]
    %v1787 = vld [vmem:[#allocation8 + $0x90] sm:$0xff]
    %v1788 = vld [vmem:[#allocation8 + $0x98] sm:$0xff]
    %v1789 = vld [vmem:[#allocation8 + $0xa0] sm:$0xff]
    %v1790 = vld [vmem:[#allocation8 + $0xa8] sm:$0xff]
    %v1791 = vld [vmem:[#allocation8 + $0xb0] sm:$0xff]
    %v1792 = vld [vmem:[#allocation8 + $0xb8] sm:$0xff]
    %v1793 = vld [vmem:[#allocation8 + $0xc0] sm:$0xff]
    %v1794 = vld [vmem:[#allocation8 + $0xc8] sm:$0xff]
    %v1795 = vld [vmem:[#allocation8 + $0xd0] sm:$0xff]
    %v1796 = vld [vmem:[#allocation8 + $0xd8] sm:$0xff]
    %v1797 = vld [vmem:[#allocation8 + $0xe0] sm:$0xff]
    %v1798 = vld [vmem:[#allocation8 + $0xe8] sm:$0xff]
    %v1799 = vld [vmem:[#allocation8 + $0xf0] sm:$0xff]
    %v1800 = vld [vmem:[#allocation8 + $0xf8] sm:$0xff]
    %v1801 = vld [vmem:[#allocation8 + $0x100] sm:$0xff]
    %v1802 = vld [vmem:[#allocation8 + $0x108] sm:$0xff]
    %v1803 = vld [vmem:[#allocation8 + $0x110] sm:$0xff]
    %v1804 = vld [vmem:[#allocation8 + $0x118] sm:$0xff]
    %v1805 = vld [vmem:[#allocation8 + $0x120] sm:$0xff]
    %v1806 = vld [vmem:[#allocation8 + $0x128] sm:$0xff]
    %v1807 = vld [vmem:[#allocation8 + $0x130] sm:$0xff]
    %v1808 = vld [vmem:[#allocation8 + $0x138] sm:$0xff]
    %v1809 = vld [vmem:[#allocation8 + $0x140] sm:$0xff]
    %v1810 = vld [vmem:[#allocation8 + $0x148] sm:$0xff]
    %v1811 = vld [vmem:[#allocation8 + $0x150] sm:$0xff]
    %v1812 = vld [vmem:[#allocation8 + $0x158] sm:$0xff]
    %v1813 = vld [vmem:[#allocation8 + $0x160] sm:$0xff]
    %v1814 = vld [vmem:[#allocation8 + $0x168] sm:$0xff]
    %v1815 = vld [vmem:[#allocation8 + $0x170] sm:$0xff]
    %v1816 = vld [vmem:[#allocation8 + $0x178] sm:$0xff]
    %v1817 = vld [vmem:[#allocation8 + $0x180] sm:$0xff]
    %v1818 = vld [vmem:[#allocation8 + $0x188] sm:$0xff]
    %v1819 = vld [vmem:[#allocation8 + $0x190] sm:$0xff]
    %v1820 = vld [vmem:[#allocation8 + $0x198] sm:$0xff]
    %v1821 = vld [vmem:[#allocation8 + $0x1a0] sm:$0xff]
    %v1822 = vld [vmem:[#allocation8 + $0x1a8] sm:$0xff]
    %v1823 = vld [vmem:[#allocation8 + $0x1b0] sm:$0xff]
    %v1824 = vld [vmem:[#allocation8 + $0x1b8] sm:$0xff]
    %v1825 = vld [vmem:[#allocation8 + $0x1c0] sm:$0xff]
    %v1826 = vld [vmem:[#allocation8 + $0x1c8] sm:$0xff]
    %v1827 = vld [vmem:[#allocation8 + $0x1d0] sm:$0xff]
    %v1828 = vld [vmem:[#allocation8 + $0x1d8] sm:$0xff]
    %v1829 = vld [vmem:[#allocation8 + $0x1e0] sm:$0xff]
    %v1830 = vld [vmem:[#allocation8 + $0x1e8] sm:$0xff]
    %v1831 = vld [vmem:[#allocation8 + $0x1f0] sm:$0xff]
    %v1832 = vld [vmem:[#allocation8 + $0x1f8] sm:$0xff]
    %v1833 = vunpack.c.l.bf16 %v1769
    %v1834 = vunpack.c.h.bf16 %v1769
    %v1835 = vunpack.c.l.bf16 %v1770
    %v1836 = vunpack.c.h.bf16 %v1770
    %v1837 = vunpack.c.l.bf16 %v1771
    %v1838 = vunpack.c.h.bf16 %v1771
    %v1839 = vunpack.c.l.bf16 %v1772
    %v1840 = vunpack.c.h.bf16 %v1772
    %v1841 = vunpack.c.l.bf16 %v1773
    %v1842 = vunpack.c.h.bf16 %v1773
    %v1843 = vunpack.c.l.bf16 %v1774
    %v1844 = vunpack.c.h.bf16 %v1774
    %v1845 = vunpack.c.l.bf16 %v1775
    %v1846 = vunpack.c.h.bf16 %v1775
    %v1847 = vunpack.c.l.bf16 %v1776
    %v1848 = vunpack.c.h.bf16 %v1776
    %v1849 = vunpack.c.l.bf16 %v1777
    %v1850 = vunpack.c.h.bf16 %v1777
    %v1851 = vunpack.c.l.bf16 %v1778
    %v1852 = vunpack.c.h.bf16 %v1778
    %v1853 = vunpack.c.l.bf16 %v1779
    %v1854 = vunpack.c.h.bf16 %v1779
    %v1855 = vunpack.c.l.bf16 %v1780
    %v1856 = vunpack.c.h.bf16 %v1780
    %v1857 = vunpack.c.l.bf16 %v1781
    %v1858 = vunpack.c.h.bf16 %v1781
    %v1859 = vunpack.c.l.bf16 %v1782
    %v1860 = vunpack.c.h.bf16 %v1782
    %v1861 = vunpack.c.l.bf16 %v1783
    %v1862 = vunpack.c.h.bf16 %v1783
    %v1863 = vunpack.c.l.bf16 %v1784
    %v1864 = vunpack.c.h.bf16 %v1784
    %v1865 = vunpack.c.l.bf16 %v1785
    %v1866 = vunpack.c.h.bf16 %v1785
    %v1867 = vunpack.c.l.bf16 %v1786
    %v1868 = vunpack.c.h.bf16 %v1786
    %v1869 = vunpack.c.l.bf16 %v1787
    %v1870 = vunpack.c.h.bf16 %v1787
    %v1871 = vunpack.c.l.bf16 %v1788
    %v1872 = vunpack.c.h.bf16 %v1788
    %v1873 = vunpack.c.l.bf16 %v1789
    %v1874 = vunpack.c.h.bf16 %v1789
    %v1875 = vunpack.c.l.bf16 %v1790
    %v1876 = vunpack.c.h.bf16 %v1790
    %v1877 = vunpack.c.l.bf16 %v1791
    %v1878 = vunpack.c.h.bf16 %v1791
    %v1879 = vunpack.c.l.bf16 %v1792
    %v1880 = vunpack.c.h.bf16 %v1792
    %v1881 = vunpack.c.l.bf16 %v1793
    %v1882 = vunpack.c.h.bf16 %v1793
    %v1883 = vunpack.c.l.bf16 %v1794
    %v1884 = vunpack.c.h.bf16 %v1794
    %v1885 = vunpack.c.l.bf16 %v1795
    %v1886 = vunpack.c.h.bf16 %v1795
    %v1887 = vunpack.c.l.bf16 %v1796
    %v1888 = vunpack.c.h.bf16 %v1796
    %v1889 = vunpack.c.l.bf16 %v1797
    %v1890 = vunpack.c.h.bf16 %v1797
    %v1891 = vunpack.c.l.bf16 %v1798
    %v1892 = vunpack.c.h.bf16 %v1798
    %v1893 = vunpack.c.l.bf16 %v1799
    %v1894 = vunpack.c.h.bf16 %v1799
    %v1895 = vunpack.c.l.bf16 %v1800
    %v1896 = vunpack.c.h.bf16 %v1800
    %v1897 = vunpack.c.l.bf16 %v1801
    %v1898 = vunpack.c.h.bf16 %v1801
    %v1899 = vunpack.c.l.bf16 %v1802
    %v1900 = vunpack.c.h.bf16 %v1802
    %v1901 = vunpack.c.l.bf16 %v1803
    %v1902 = vunpack.c.h.bf16 %v1803
    %v1903 = vunpack.c.l.bf16 %v1804
    %v1904 = vunpack.c.h.bf16 %v1804
    %v1905 = vunpack.c.l.bf16 %v1805
    %v1906 = vunpack.c.h.bf16 %v1805
    %v1907 = vunpack.c.l.bf16 %v1806
    %v1908 = vunpack.c.h.bf16 %v1806
    %v1909 = vunpack.c.l.bf16 %v1807
    %v1910 = vunpack.c.h.bf16 %v1807
    %v1911 = vunpack.c.l.bf16 %v1808
    %v1912 = vunpack.c.h.bf16 %v1808
    %v1913 = vunpack.c.l.bf16 %v1809
    %v1914 = vunpack.c.h.bf16 %v1809
    %v1915 = vunpack.c.l.bf16 %v1810
    %v1916 = vunpack.c.h.bf16 %v1810
    %v1917 = vunpack.c.l.bf16 %v1811
    %v1918 = vunpack.c.h.bf16 %v1811
    %v1919 = vunpack.c.l.bf16 %v1812
    %v1920 = vunpack.c.h.bf16 %v1812
    %v1921 = vunpack.c.l.bf16 %v1813
    %v1922 = vunpack.c.h.bf16 %v1813
    %v1923 = vunpack.c.l.bf16 %v1814
    %v1924 = vunpack.c.h.bf16 %v1814
    %v1925 = vunpack.c.l.bf16 %v1815
    %v1926 = vunpack.c.h.bf16 %v1815
    %v1927 = vunpack.c.l.bf16 %v1816
    %v1928 = vunpack.c.h.bf16 %v1816
    %v1929 = vunpack.c.l.bf16 %v1817
    %v1930 = vunpack.c.h.bf16 %v1817
    %v1931 = vunpack.c.l.bf16 %v1818
    %v1932 = vunpack.c.h.bf16 %v1818
    %v1933 = vunpack.c.l.bf16 %v1819
    %v1934 = vunpack.c.h.bf16 %v1819
    %v1935 = vunpack.c.l.bf16 %v1820
    %v1936 = vunpack.c.h.bf16 %v1820
    %v1937 = vunpack.c.l.bf16 %v1821
    %v1938 = vunpack.c.h.bf16 %v1821
    %v1939 = vunpack.c.l.bf16 %v1822
    %v1940 = vunpack.c.h.bf16 %v1822
    %v1941 = vunpack.c.l.bf16 %v1823
    %v1942 = vunpack.c.h.bf16 %v1823
    %v1943 = vunpack.c.l.bf16 %v1824
    %v1944 = vunpack.c.h.bf16 %v1824
    %v1945 = vunpack.c.l.bf16 %v1825
    %v1946 = vunpack.c.h.bf16 %v1825
    %v1947 = vunpack.c.l.bf16 %v1826
    %v1948 = vunpack.c.h.bf16 %v1826
    %v1949 = vunpack.c.l.bf16 %v1827
    %v1950 = vunpack.c.h.bf16 %v1827
    %v1951 = vunpack.c.l.bf16 %v1828
    %v1952 = vunpack.c.h.bf16 %v1828
    %v1953 = vunpack.c.l.bf16 %v1829
    %v1954 = vunpack.c.h.bf16 %v1829
    %v1955 = vunpack.c.l.bf16 %v1830
    %v1956 = vunpack.c.h.bf16 %v1830
    %v1957 = vunpack.c.l.bf16 %v1831
    %v1958 = vunpack.c.h.bf16 %v1831
    %v1959 = vunpack.c.l.bf16 %v1832
    %v1960 = vunpack.c.h.bf16 %v1832
    %1961 = vmatprep.subr.mxu0 %v1864
    %1962 = vmatpush1.msra.mxu0 %v1863
    %1963 = vmatprep.subr.mxu0 %v1862
    %1964 = vmatpush1.msra.mxu0 %v1861
    %1965 = vmatprep.subr.mxu0 %v1860
    %1966 = vmatpush1.msra.mxu0 %v1859
    %1967 = vmatprep.subr.mxu0 %v1858
    %1968 = vmatpush1.msra.mxu0 %v1857
    %1969 = vmatprep.subr.mxu0 %v1856
    %1970 = vmatpush1.msra.mxu0 %v1855
    %1971 = vmatprep.subr.mxu0 %v1854
    %1972 = vmatpush1.msra.mxu0 %v1853
    %1973 = vmatprep.subr.mxu0 %v1852
    %1974 = vmatpush1.msra.mxu0 %v1851
    %1975 = vmatprep.subr.mxu0 %v1850
    %1976 = vmatpush1.msra.mxu0 %v1849
    %1977 = vmatprep.subr.mxu0 %v1848
    %1978 = vmatpush1.msra.mxu0 %v1847
    %1979 = vmatprep.subr.mxu0 %v1846
    %1980 = vmatpush1.msra.mxu0 %v1845
    %1981 = vmatprep.subr.mxu0 %v1844
    %1982 = vmatpush1.msra.mxu0 %v1843
    %1983 = vmatprep.subr.mxu0 %v1842
    %1984 = vmatpush1.msra.mxu0 %v1841
    %1985 = vmatprep.subr.mxu0 %v1840
    %1986 = vmatpush1.msra.mxu0 %v1839
    %1987 = vmatprep.subr.mxu0 %v1838
    %1988 = vmatpush1.msra.mxu0 %v1837
    %1989 = vmatprep.subr.mxu0 %v1836
    %1990 = vmatpush1.msra.mxu0 %v1835
    %1991 = vmatprep.subr.mxu0 %v1834
    %1992 = vmatpush1.msra.mxu0 %v1833
    %1993 = vmatprep.subr.mxu0 %v1896
    %1994 = vmatpush2.msra.mxu0 %v1895
    %1995 = vmatprep.subr.mxu0 %v1894
    %1996 = vmatpush2.msra.mxu0 %v1893
    %1997 = vmatprep.subr.mxu0 %v1892
    %1998 = vmatpush2.msra.mxu0 %v1891
    %1999 = vmatprep.subr.mxu0 %v1890
    %2000 = vmatpush2.msra.mxu0 %v1889
    %2001 = vmatprep.subr.mxu0 %v1888
    %2002 = vmatpush2.msra.mxu0 %v1887
    %2003 = vmatprep.subr.mxu0 %v1886
    %2004 = vmatpush2.msra.mxu0 %v1885
    %2005 = vmatprep.subr.mxu0 %v1884
    %2006 = vmatpush2.msra.mxu0 %v1883
    %2007 = vmatprep.subr.mxu0 %v1882
    %2008 = vmatpush2.msra.mxu0 %v1881
    %2009 = vmatprep.subr.mxu0 %v1880
    %2010 = vmatpush2.msra.mxu0 %v1879
    %2011 = vmatprep.subr.mxu0 %v1878
    %2012 = vmatpush2.msra.mxu0 %v1877
    %2013 = vmatprep.subr.mxu0 %v1876
    %2014 = vmatpush2.msra.mxu0 %v1875
    %2015 = vmatprep.subr.mxu0 %v1874
    %2016 = vmatpush2.msra.mxu0 %v1873
    %2017 = vmatprep.subr.mxu0 %v1872
    %2018 = vmatpush2.msra.mxu0 %v1871
    %2019 = vmatprep.subr.mxu0 %v1870
    %2020 = vmatpush2.msra.mxu0 %v1869
    %2021 = vmatprep.subr.mxu0 %v1868
    %2022 = vmatpush2.msra.mxu0 %v1867
    %2023 = vmatprep.subr.mxu0 %v1866
    %2024 = vmatpush2.msra.mxu0 %v1865
    %2025 = vmatprep.mubr.f32.mxu0 %v678
    %2026 = vmatmul.mubr.f32.gmra.mxu0 %v677
    %v2027 = vpop.f32.mrf.mxu0
    %v2028 = vadd.f32 0.0, %v2027
    %v2029 = vpop.f32.mrf.mxu0
    %v2030 = vadd.f32 0.0, %v2029
    %2031 = vmatprep.mubr.f32.mxu0 %v682
    %2032 = vmatmul.mubr.f32.gmra.mxu0 %v681
    %v2033 = vpop.f32.mrf.mxu0
    %v2034 = vadd.f32 0.0, %v2033
    %v2035 = vpop.f32.mrf.mxu0
    %v2036 = vadd.f32 0.0, %v2035
    %2037 = vmatprep.mubr.f32.mxu0 %v686
    %2038 = vmatmul.mubr.f32.gmra.mxu0 %v685
    %v2039 = vpop.f32.mrf.mxu0
    %v2040 = vadd.f32 0.0, %v2039
    %v2041 = vpop.f32.mrf.mxu0
    %v2042 = vadd.f32 0.0, %v2041
    %2043 = vmatprep.mubr.f32.mxu0 %v690
    %2044 = vmatmul.mubr.f32.gmra.mxu0 %v689
    %v2045 = vpop.f32.mrf.mxu0
    %v2046 = vadd.f32 0.0, %v2045
    %v2047 = vpop.f32.mrf.mxu0
    %v2048 = vadd.f32 0.0, %v2047
    %2049 = vmatprep.mubr.f32.mxu0 %v694
    %2050 = vmatmul.mubr.f32.gmra.mxu0 %v693
    %v2051 = vpop.f32.mrf.mxu0
    %v2052 = vadd.f32 0.0, %v2051
    %v2053 = vpop.f32.mrf.mxu0
    %v2054 = vadd.f32 0.0, %v2053
    %2055 = vmatprep.mubr.f32.mxu0 %v698
    %2056 = vmatmul.mubr.f32.gmra.mxu0 %v697
    %v2057 = vpop.f32.mrf.mxu0
    %v2058 = vadd.f32 0.0, %v2057
    %v2059 = vpop.f32.mrf.mxu0
    %v2060 = vadd.f32 0.0, %v2059
    %2061 = vmatprep.mubr.f32.mxu0 %v702
    %2062 = vmatmul.mubr.f32.gmra.mxu0 %v701
    %v2063 = vpop.f32.mrf.mxu0
    %v2064 = vadd.f32 0.0, %v2063
    %v2065 = vpop.f32.mrf.mxu0
    %v2066 = vadd.f32 0.0, %v2065
    %2067 = vmatprep.mubr.f32.mxu0 %v706
    %2068 = vmatmul.mubr.f32.gmra.mxu0 %v705
    %v2069 = vpop.f32.mrf.mxu0
    %v2070 = vadd.f32 0.0, %v2069
    %v2071 = vpop.f32.mrf.mxu0
    %v2072 = vadd.f32 0.0, %v2071
    %2073 = vmatprep.mubr.f32.mxu0 %v710
    %2074 = vmatmul.mubr.f32.gmra.mxu0 %v709
    %v2075 = vpop.f32.mrf.mxu0
    %v2076 = vadd.f32 0.0, %v2075
    %v2077 = vpop.f32.mrf.mxu0
    %v2078 = vadd.f32 0.0, %v2077
    %2079 = vmatprep.mubr.f32.mxu0 %v714
    %2080 = vmatmul.mubr.f32.gmra.mxu0 %v713
    %v2081 = vpop.f32.mrf.mxu0
    %v2082 = vadd.f32 0.0, %v2081
    %v2083 = vpop.f32.mrf.mxu0
    %v2084 = vadd.f32 0.0, %v2083
    %2085 = vmatprep.mubr.f32.mxu0 %v718
    %2086 = vmatmul.mubr.f32.gmra.mxu0 %v717
    %v2087 = vpop.f32.mrf.mxu0
    %v2088 = vadd.f32 0.0, %v2087
    %v2089 = vpop.f32.mrf.mxu0
    %v2090 = vadd.f32 0.0, %v2089
    %2091 = vmatprep.mubr.f32.mxu0 %v722
    %2092 = vmatmul.mubr.f32.gmra.mxu0 %v721
    %v2093 = vpop.f32.mrf.mxu0
    %v2094 = vadd.f32 0.0, %v2093
    %v2095 = vpop.f32.mrf.mxu0
    %v2096 = vadd.f32 0.0, %v2095
    %2097 = vmatprep.mubr.f32.mxu0 %v726
    %2098 = vmatmul.mubr.f32.gmra.mxu0 %v725
    %v2099 = vpop.f32.mrf.mxu0
    %v2100 = vadd.f32 0.0, %v2099
    %v2101 = vpop.f32.mrf.mxu0
    %v2102 = vadd.f32 0.0, %v2101
    %2103 = vmatprep.mubr.f32.mxu0 %v730
    %2104 = vmatmul.mubr.f32.gmra.mxu0 %v729
    %v2105 = vpop.f32.mrf.mxu0
    %v2106 = vadd.f32 0.0, %v2105
    %v2107 = vpop.f32.mrf.mxu0
    %v2108 = vadd.f32 0.0, %v2107
    %2109 = vmatprep.mubr.f32.mxu0 %v734
    %2110 = vmatmul.mubr.f32.gmra.mxu0 %v733
    %v2111 = vpop.f32.mrf.mxu0
    %v2112 = vadd.f32 0.0, %v2111
    %v2113 = vpop.f32.mrf.mxu0
    %v2114 = vadd.f32 0.0, %v2113
    %2115 = vmatprep.mubr.f32.mxu0 %v738
    %2116 = vmatmul.mubr.f32.gmra.mxu0 %v737
    %v2117 = vpop.f32.mrf.mxu0
    %v2118 = vadd.f32 0.0, %v2117
    %v2119 = vpop.f32.mrf.mxu0
    %v2120 = vadd.f32 0.0, %v2119
    %2121 = vdwg.mxu0
    %2122 = vmatprep.subr.mxu0 %v1928
    %2123 = vmatpush1.msra.mxu0 %v1927
    %2124 = vmatprep.subr.mxu0 %v1926
    %2125 = vmatpush1.msra.mxu0 %v1925
    %2126 = vmatprep.subr.mxu0 %v1924
    %2127 = vmatpush1.msra.mxu0 %v1923
    %2128 = vmatprep.subr.mxu0 %v1922
    %2129 = vmatpush1.msra.mxu0 %v1921
    %2130 = vmatprep.subr.mxu0 %v1920
    %2131 = vmatpush1.msra.mxu0 %v1919
    %2132 = vmatprep.subr.mxu0 %v1918
    %2133 = vmatpush1.msra.mxu0 %v1917
    %2134 = vmatprep.subr.mxu0 %v1916
    %2135 = vmatpush1.msra.mxu0 %v1915
    %2136 = vmatprep.subr.mxu0 %v1914
    %2137 = vmatpush1.msra.mxu0 %v1913
    %2138 = vmatprep.subr.mxu0 %v1912
    %2139 = vmatpush1.msra.mxu0 %v1911
    %2140 = vmatprep.subr.mxu0 %v1910
    %2141 = vmatpush1.msra.mxu0 %v1909
    %2142 = vmatprep.subr.mxu0 %v1908
    %2143 = vmatpush1.msra.mxu0 %v1907
    %2144 = vmatprep.subr.mxu0 %v1906
    %2145 = vmatpush1.msra.mxu0 %v1905
    %2146 = vmatprep.subr.mxu0 %v1904
    %2147 = vmatpush1.msra.mxu0 %v1903
    %2148 = vmatprep.subr.mxu0 %v1902
    %2149 = vmatpush1.msra.mxu0 %v1901
    %2150 = vmatprep.subr.mxu0 %v1900
    %2151 = vmatpush1.msra.mxu0 %v1899
    %2152 = vmatprep.subr.mxu0 %v1898
    %2153 = vmatpush1.msra.mxu0 %v1897
    %2154 = vmatprep.subr.mxu0 %v1960
    %2155 = vmatpush2.msra.mxu0 %v1959
    %2156 = vmatprep.subr.mxu0 %v1958
    %2157 = vmatpush2.msra.mxu0 %v1957
    %2158 = vmatprep.subr.mxu0 %v1956
    %2159 = vmatpush2.msra.mxu0 %v1955
    %2160 = vmatprep.subr.mxu0 %v1954
    %2161 = vmatpush2.msra.mxu0 %v1953
    %2162 = vmatprep.subr.mxu0 %v1952
    %2163 = vmatpush2.msra.mxu0 %v1951
    %2164 = vmatprep.subr.mxu0 %v1950
    %2165 = vmatpush2.msra.mxu0 %v1949
    %2166 = vmatprep.subr.mxu0 %v1948
    %2167 = vmatpush2.msra.mxu0 %v1947
    %2168 = vmatprep.subr.mxu0 %v1946
    %2169 = vmatpush2.msra.mxu0 %v1945
    %2170 = vmatprep.subr.mxu0 %v1944
    %2171 = vmatpush2.msra.mxu0 %v1943
    %2172 = vmatprep.subr.mxu0 %v1942
    %2173 = vmatpush2.msra.mxu0 %v1941
    %2174 = vmatprep.subr.mxu0 %v1940
    %2175 = vmatpush2.msra.mxu0 %v1939
    %2176 = vmatprep.subr.mxu0 %v1938
    %2177 = vmatpush2.msra.mxu0 %v1937
    %2178 = vmatprep.subr.mxu0 %v1936
    %2179 = vmatpush2.msra.mxu0 %v1935
    %2180 = vmatprep.subr.mxu0 %v1934
    %2181 = vmatpush2.msra.mxu0 %v1933
    %2182 = vmatprep.subr.mxu0 %v1932
    %2183 = vmatpush2.msra.mxu0 %v1931
    %2184 = vmatprep.subr.mxu0 %v1930
    %2185 = vmatpush2.msra.mxu0 %v1929
    %2186 = vmatprep.mubr.f32.mxu0 %v680
    %2187 = vmatmul.mubr.f32.gmra.mxu0 %v679
    %v2188 = vpop.f32.mrf.mxu0
    %v2189 = vadd.f32 %v2028, %v2188
    %v2190 = vpop.f32.mrf.mxu0
    %v2191 = vadd.f32 %v2030, %v2190
    %2192 = vmatprep.mubr.f32.mxu0 %v684
    %2193 = vmatmul.mubr.f32.gmra.mxu0 %v683
    %v2194 = vpop.f32.mrf.mxu0
    %v2195 = vadd.f32 %v2034, %v2194
    %v2196 = vpop.f32.mrf.mxu0
    %v2197 = vadd.f32 %v2036, %v2196
    %2198 = vmatprep.mubr.f32.mxu0 %v688
    %2199 = vmatmul.mubr.f32.gmra.mxu0 %v687
    %v2200 = vpop.f32.mrf.mxu0
    %v2201 = vadd.f32 %v2040, %v2200
    %v2202 = vpop.f32.mrf.mxu0
    %v2203 = vadd.f32 %v2042, %v2202
    %2204 = vmatprep.mubr.f32.mxu0 %v692
    %2205 = vmatmul.mubr.f32.gmra.mxu0 %v691
    %v2206 = vpop.f32.mrf.mxu0
    %v2207 = vadd.f32 %v2046, %v2206
    %v2208 = vpop.f32.mrf.mxu0
    %v2209 = vadd.f32 %v2048, %v2208
    %2210 = vmatprep.mubr.f32.mxu0 %v696
    %2211 = vmatmul.mubr.f32.gmra.mxu0 %v695
    %v2212 = vpop.f32.mrf.mxu0
    %v2213 = vadd.f32 %v2052, %v2212
    %v2214 = vpop.f32.mrf.mxu0
    %v2215 = vadd.f32 %v2054, %v2214
    %2216 = vmatprep.mubr.f32.mxu0 %v700
    %2217 = vmatmul.mubr.f32.gmra.mxu0 %v699
    %v2218 = vpop.f32.mrf.mxu0
    %v2219 = vadd.f32 %v2058, %v2218
    %v2220 = vpop.f32.mrf.mxu0
    %v2221 = vadd.f32 %v2060, %v2220
    %2222 = vmatprep.mubr.f32.mxu0 %v704
    %2223 = vmatmul.mubr.f32.gmra.mxu0 %v703
    %v2224 = vpop.f32.mrf.mxu0
    %v2225 = vadd.f32 %v2064, %v2224
    %v2226 = vpop.f32.mrf.mxu0
    %v2227 = vadd.f32 %v2066, %v2226
    %2228 = vmatprep.mubr.f32.mxu0 %v708
    %2229 = vmatmul.mubr.f32.gmra.mxu0 %v707
    %v2230 = vpop.f32.mrf.mxu0
    %v2231 = vadd.f32 %v2070, %v2230
    %v2232 = vpop.f32.mrf.mxu0
    %v2233 = vadd.f32 %v2072, %v2232
    %2234 = vmatprep.mubr.f32.mxu0 %v712
    %2235 = vmatmul.mubr.f32.gmra.mxu0 %v711
    %v2236 = vpop.f32.mrf.mxu0
    %v2237 = vadd.f32 %v2076, %v2236
    %v2238 = vpop.f32.mrf.mxu0
    %v2239 = vadd.f32 %v2078, %v2238
    %2240 = vmatprep.mubr.f32.mxu0 %v716
    %2241 = vmatmul.mubr.f32.gmra.mxu0 %v715
    %v2242 = vpop.f32.mrf.mxu0
    %v2243 = vadd.f32 %v2082, %v2242
    %v2244 = vpop.f32.mrf.mxu0
    %v2245 = vadd.f32 %v2084, %v2244
    %2246 = vmatprep.mubr.f32.mxu0 %v720
    %2247 = vmatmul.mubr.f32.gmra.mxu0 %v719
    %v2248 = vpop.f32.mrf.mxu0
    %v2249 = vadd.f32 %v2088, %v2248
    %v2250 = vpop.f32.mrf.mxu0
    %v2251 = vadd.f32 %v2090, %v2250
    %2252 = vmatprep.mubr.f32.mxu0 %v724
    %2253 = vmatmul.mubr.f32.gmra.mxu0 %v723
    %v2254 = vpop.f32.mrf.mxu0
    %v2255 = vadd.f32 %v2094, %v2254
    %v2256 = vpop.f32.mrf.mxu0
    %v2257 = vadd.f32 %v2096, %v2256
    %2258 = vmatprep.mubr.f32.mxu0 %v728
    %2259 = vmatmul.mubr.f32.gmra.mxu0 %v727
    %v2260 = vpop.f32.mrf.mxu0
    %v2261 = vadd.f32 %v2100, %v2260
    %v2262 = vpop.f32.mrf.mxu0
    %v2263 = vadd.f32 %v2102, %v2262
    %2264 = vmatprep.mubr.f32.mxu0 %v732
    %2265 = vmatmul.mubr.f32.gmra.mxu0 %v731
    %v2266 = vpop.f32.mrf.mxu0
    %v2267 = vadd.f32 %v2106, %v2266
    %v2268 = vpop.f32.mrf.mxu0
    %v2269 = vadd.f32 %v2108, %v2268
    %2270 = vmatprep.mubr.f32.mxu0 %v736
    %2271 = vmatmul.mubr.f32.gmra.mxu0 %v735
    %v2272 = vpop.f32.mrf.mxu0
    %v2273 = vadd.f32 %v2112, %v2272
    %v2274 = vpop.f32.mrf.mxu0
    %v2275 = vadd.f32 %v2114, %v2274
    %2276 = vmatprep.mubr.f32.mxu0 %v740
    %2277 = vmatmul.mubr.f32.gmra.mxu0 %v739
    %v2278 = vpop.f32.mrf.mxu0
    %v2279 = vadd.f32 %v2118, %v2278
    %v2280 = vpop.f32.mrf.mxu0
    %v2281 = vadd.f32 %v2120, %v2280
    %2282 = vdwg.mxu0
    %v2283 = vadd.f32 %v1675, %v2189
    %v2284 = vadd.f32 %v1677, %v2191
    %v2285 = vadd.f32 %v1681, %v2195
    %v2286 = vadd.f32 %v1683, %v2197
    %v2287 = vadd.f32 %v1687, %v2201
    %v2288 = vadd.f32 %v1689, %v2203
    %v2289 = vadd.f32 %v1693, %v2207
    %v2290 = vadd.f32 %v1695, %v2209
    %v2291 = vadd.f32 %v1699, %v2213
    %v2292 = vadd.f32 %v1701, %v2215
    %v2293 = vadd.f32 %v1705, %v2219
    %v2294 = vadd.f32 %v1707, %v2221
    %v2295 = vadd.f32 %v1711, %v2225
    %v2296 = vadd.f32 %v1713, %v2227
    %v2297 = vadd.f32 %v1717, %v2231
    %v2298 = vadd.f32 %v1719, %v2233
    %v2299 = vadd.f32 %v1723, %v2237
    %v2300 = vadd.f32 %v1725, %v2239
    %v2301 = vadd.f32 %v1729, %v2243
    %v2302 = vadd.f32 %v1731, %v2245
    %v2303 = vadd.f32 %v1735, %v2249
    %v2304 = vadd.f32 %v1737, %v2251
    %v2305 = vadd.f32 %v1741, %v2255
    %v2306 = vadd.f32 %v1743, %v2257
    %v2307 = vadd.f32 %v1747, %v2261
    %v2308 = vadd.f32 %v1749, %v2263
    %v2309 = vadd.f32 %v1753, %v2267
    %v2310 = vadd.f32 %v1755, %v2269
    %v2311 = vadd.f32 %v1759, %v2273
    %v2312 = vadd.f32 %v1761, %v2275
    %v2313 = vadd.f32 %v1765, %v2279
    %v2314 = vadd.f32 %v1767, %v2281
    %v2315 = vld [vmem:[%s4] sm:$0x3]
    %v2317 = vlaneseq
    %v2318 = vshrl.u32 %v2317, 7
    %v2319 = vsub.s32 0, %v2318
    %v2320 = vrot.slane %v2315, %v2319
    %v2321 = vlaneseq
    %v2322 = vshrl.u32 %v2321, 7
    %v2323 = vsub.s32 1, %v2322
    %v2324 = vrot.slane %v2315, %v2323
    %v2327 = vadd.f32 %v2283, %v2320
    %v2328 = vadd.f32 %v2284, %v2324
    %v2329 = vadd.f32 %v2285, %v2320
    %v2330 = vadd.f32 %v2286, %v2324
    %v2331 = vadd.f32 %v2287, %v2320
    %v2332 = vadd.f32 %v2288, %v2324
    %v2333 = vadd.f32 %v2289, %v2320
    %v2334 = vadd.f32 %v2290, %v2324
    %v2335 = vadd.f32 %v2291, %v2320
    %v2336 = vadd.f32 %v2292, %v2324
    %v2337 = vadd.f32 %v2293, %v2320
    %v2338 = vadd.f32 %v2294, %v2324
    %v2339 = vadd.f32 %v2295, %v2320
    %v2340 = vadd.f32 %v2296, %v2324
    %v2341 = vadd.f32 %v2297, %v2320
    %v2342 = vadd.f32 %v2298, %v2324
    %v2343 = vadd.f32 %v2299, %v2320
    %v2344 = vadd.f32 %v2300, %v2324
    %v2345 = vadd.f32 %v2301, %v2320
    %v2346 = vadd.f32 %v2302, %v2324
    %v2347 = vadd.f32 %v2303, %v2320
    %v2348 = vadd.f32 %v2304, %v2324
    %v2349 = vadd.f32 %v2305, %v2320
    %v2350 = vadd.f32 %v2306, %v2324
    %v2351 = vadd.f32 %v2307, %v2320
    %v2352 = vadd.f32 %v2308, %v2324
    %v2353 = vadd.f32 %v2309, %v2320
    %v2354 = vadd.f32 %v2310, %v2324
    %v2355 = vadd.f32 %v2311, %v2320
    %v2356 = vadd.f32 %v2312, %v2324
    %v2357 = vadd.f32 %v2313, %v2320
    %v2358 = vadd.f32 %v2314, %v2324
    %v2359 = vsel %vm211, 1, 0
    %v2360 = vsel %vm212, 1, 0
    %v2361 = vsel %vm213, 1, 0
    %v2362 = vsel %vm214, 1, 0
    %v2363 = vsel %vm215, 1, 0
    %v2364 = vsel %vm216, 1, 0
    %v2365 = vsel %vm217, 1, 0
    %v2366 = vsel %vm218, 1, 0
    %v2367 = vsel %vm219, 1, 0
    %v2368 = vsel %vm220, 1, 0
    %v2369 = vsel %vm221, 1, 0
    %v2370 = vsel %vm222, 1, 0
    %v2371 = vsel %vm223, 1, 0
    %v2372 = vsel %vm224, 1, 0
    %v2373 = vsel %vm225, 1, 0
    %v2374 = vsel %vm226, 1, 0
    %vm2375 = vcmp.eq.s32.totalorder %v2359, 1
    %vm2376 = vcmp.eq.s32.totalorder %v2360, 1
    %vm2377 = vcmp.eq.s32.totalorder %v2361, 1
    %vm2378 = vcmp.eq.s32.totalorder %v2362, 1
    %vm2379 = vcmp.eq.s32.totalorder %v2363, 1
    %vm2380 = vcmp.eq.s32.totalorder %v2364, 1
    %vm2381 = vcmp.eq.s32.totalorder %v2365, 1
    %vm2382 = vcmp.eq.s32.totalorder %v2366, 1
    %vm2383 = vcmp.eq.s32.totalorder %v2367, 1
    %vm2384 = vcmp.eq.s32.totalorder %v2368, 1
    %vm2385 = vcmp.eq.s32.totalorder %v2369, 1
    %vm2386 = vcmp.eq.s32.totalorder %v2370, 1
    %vm2387 = vcmp.eq.s32.totalorder %v2371, 1
    %vm2388 = vcmp.eq.s32.totalorder %v2372, 1
    %vm2389 = vcmp.eq.s32.totalorder %v2373, 1
    %vm2390 = vcmp.eq.s32.totalorder %v2374, 1
    %v2391 = vsel %vm2375, %v84, 0.0
    %v2392 = vsel %vm2375, %v85, 0.0
    %v2393 = vsel %vm2376, %v86, 0.0
    %v2394 = vsel %vm2376, %v87, 0.0
    %v2395 = vsel %vm2377, %v88, 0.0
    %v2396 = vsel %vm2377, %v89, 0.0
    %v2397 = vsel %vm2378, %v90, 0.0
    %v2398 = vsel %vm2378, %v91, 0.0
    %v2399 = vsel %vm2379, %v92, 0.0
    %v2400 = vsel %vm2379, %v93, 0.0
    %v2401 = vsel %vm2380, %v94, 0.0
    %v2402 = vsel %vm2380, %v95, 0.0
    %v2403 = vsel %vm2381, %v96, 0.0
    %v2404 = vsel %vm2381, %v97, 0.0
    %v2405 = vsel %vm2382, %v98, 0.0
    %v2406 = vsel %vm2382, %v99, 0.0
    %v2407 = vsel %vm2383, %v100, 0.0
    %v2408 = vsel %vm2383, %v101, 0.0
    %v2409 = vsel %vm2384, %v102, 0.0
    %v2410 = vsel %vm2384, %v103, 0.0
    %v2411 = vsel %vm2385, %v104, 0.0
    %v2412 = vsel %vm2385, %v105, 0.0
    %v2413 = vsel %vm2386, %v106, 0.0
    %v2414 = vsel %vm2386, %v107, 0.0
    %v2415 = vsel %vm2387, %v108, 0.0
    %v2416 = vsel %vm2387, %v109, 0.0
    %v2417 = vsel %vm2388, %v110, 0.0
    %v2418 = vsel %vm2388, %v111, 0.0
    %v2419 = vsel %vm2389, %v112, 0.0
    %v2420 = vsel %vm2389, %v113, 0.0
    %v2421 = vsel %vm2390, %v82, 0.0
    %v2422 = vsel %vm2390, %v83, 0.0
    %v2423 = vrot.slane %v2391, 7
    %v2424 = vrot.slane %v2392, 7
    %v2425 = vrot.slane %v2393, 7
    %v2426 = vrot.slane %v2394, 7
    %v2427 = vrot.slane %v2395, 7
    %v2428 = vrot.slane %v2396, 7
    %v2429 = vrot.slane %v2397, 7
    %v2430 = vrot.slane %v2398, 7
    %v2431 = vrot.slane %v2399, 7
    %v2432 = vrot.slane %v2400, 7
    %v2433 = vrot.slane %v2401, 7
    %v2434 = vrot.slane %v2402, 7
    %v2435 = vrot.slane %v2403, 7
    %v2436 = vrot.slane %v2404, 7
    %v2437 = vrot.slane %v2405, 7
    %v2438 = vrot.slane %v2406, 7
    %v2439 = vrot.slane %v2407, 7
    %v2440 = vrot.slane %v2408, 7
    %v2441 = vrot.slane %v2409, 7
    %v2442 = vrot.slane %v2410, 7
    %v2443 = vrot.slane %v2411, 7
    %v2444 = vrot.slane %v2412, 7
    %v2445 = vrot.slane %v2413, 7
    %v2446 = vrot.slane %v2414, 7
    %v2447 = vrot.slane %v2415, 7
    %v2448 = vrot.slane %v2416, 7
    %v2449 = vrot.slane %v2417, 7
    %v2450 = vrot.slane %v2418, 7
    %v2451 = vrot.slane %v2419, 7
    %v2452 = vrot.slane %v2420, 7
    %v2453 = vrot.slane %v2421, 7
    %v2454 = vrot.slane %v2422, 7
    %v2455 = vsel %vm355, %v2451, %v2453
    %v2456 = vsel %vm355, %v2452, %v2454
    %v2457 = vsel %vm355, %v2449, %v2451
    %v2458 = vsel %vm355, %v2450, %v2452
    %v2459 = vsel %vm355, %v2447, %v2449
    %v2460 = vsel %vm355, %v2448, %v2450
    %v2461 = vsel %vm355, %v2445, %v2447
    %v2462 = vsel %vm355, %v2446, %v2448
    %v2463 = vsel %vm355, %v2443, %v2445
    %v2464 = vsel %vm355, %v2444, %v2446
    %v2465 = vsel %vm355, %v2441, %v2443
    %v2466 = vsel %vm355, %v2442, %v2444
    %v2467 = vsel %vm355, %v2439, %v2441
    %v2468 = vsel %vm355, %v2440, %v2442
    %v2469 = vsel %vm355, %v2437, %v2439
    %v2470 = vsel %vm355, %v2438, %v2440
    %v2471 = vsel %vm355, %v2435, %v2437
    %v2472 = vsel %vm355, %v2436, %v2438
    %v2473 = vsel %vm355, %v2433, %v2435
    %v2474 = vsel %vm355, %v2434, %v2436
    %v2475 = vsel %vm355, %v2431, %v2433
    %v2476 = vsel %vm355, %v2432, %v2434
    %v2477 = vsel %vm355, %v2429, %v2431
    %v2478 = vsel %vm355, %v2430, %v2432
    %v2479 = vsel %vm355, %v2427, %v2429
    %v2480 = vsel %vm355, %v2428, %v2430
    %v2481 = vsel %vm355, %v2425, %v2427
    %v2482 = vsel %vm355, %v2426, %v2428
    %v2483 = vsel %vm355, %v2423, %v2425
    %v2484 = vsel %vm355, %v2424, %v2426
    %v2485 = vsel %vm355, %v2453, %v2423
    %v2486 = vsel %vm355, %v2454, %v2424
    %v2487 = vsel %vm436, %v2485, 0.0
    %v2488 = vsel %vm436, %v2486, 0.0
    %v2489 = vsel %vm437, %v2483, 0.0
    %v2490 = vsel %vm437, %v2484, 0.0
    %v2491 = vsel %vm438, %v2481, 0.0
    %v2492 = vsel %vm438, %v2482, 0.0
    %v2493 = vsel %vm439, %v2479, 0.0
    %v2494 = vsel %vm439, %v2480, 0.0
    %v2495 = vsel %vm440, %v2477, 0.0
    %v2496 = vsel %vm440, %v2478, 0.0
    %v2497 = vsel %vm441, %v2475, 0.0
    %v2498 = vsel %vm441, %v2476, 0.0
    %v2499 = vsel %vm442, %v2473, 0.0
    %v2500 = vsel %vm442, %v2474, 0.0
    %v2501 = vsel %vm443, %v2471, 0.0
    %v2502 = vsel %vm443, %v2472, 0.0
    %v2503 = vsel %vm444, %v2469, 0.0
    %v2504 = vsel %vm444, %v2470, 0.0
    %v2505 = vsel %vm445, %v2467, 0.0
    %v2506 = vsel %vm445, %v2468, 0.0
    %v2507 = vsel %vm446, %v2465, 0.0
    %v2508 = vsel %vm446, %v2466, 0.0
    %v2509 = vsel %vm447, %v2463, 0.0
    %v2510 = vsel %vm447, %v2464, 0.0
    %v2511 = vsel %vm448, %v2461, 0.0
    %v2512 = vsel %vm448, %v2462, 0.0
    %v2513 = vsel %vm449, %v2459, 0.0
    %v2514 = vsel %vm449, %v2460, 0.0
    %v2515 = vsel %vm450, %v2457, 0.0
    %v2516 = vsel %vm450, %v2458, 0.0
    %v2517 = vsel %vm451, %v2455, 0.0
    %v2518 = vsel %vm451, %v2456, 0.0
    %v2519 = vrot.slane %v2391, 1
    %v2520 = vrot.slane %v2392, 1
    %v2521 = vrot.slane %v2393, 1
    %v2522 = vrot.slane %v2394, 1
    %v2523 = vrot.slane %v2395, 1
    %v2524 = vrot.slane %v2396, 1
    %v2525 = vrot.slane %v2397, 1
    %v2526 = vrot.slane %v2398, 1
    %v2527 = vrot.slane %v2399, 1
    %v2528 = vrot.slane %v2400, 1
    %v2529 = vrot.slane %v2401, 1
    %v2530 = vrot.slane %v2402, 1
    %v2531 = vrot.slane %v2403, 1
    %v2532 = vrot.slane %v2404, 1
    %v2533 = vrot.slane %v2405, 1
    %v2534 = vrot.slane %v2406, 1
    %v2535 = vrot.slane %v2407, 1
    %v2536 = vrot.slane %v2408, 1
    %v2537 = vrot.slane %v2409, 1
    %v2538 = vrot.slane %v2410, 1
    %v2539 = vrot.slane %v2411, 1
    %v2540 = vrot.slane %v2412, 1
    %v2541 = vrot.slane %v2413, 1
    %v2542 = vrot.slane %v2414, 1
    %v2543 = vrot.slane %v2415, 1
    %v2544 = vrot.slane %v2416, 1
    %v2545 = vrot.slane %v2417, 1
    %v2546 = vrot.slane %v2418, 1
    %v2547 = vrot.slane %v2419, 1
    %v2548 = vrot.slane %v2420, 1
    %v2549 = vrot.slane %v2421, 1
    %v2550 = vrot.slane %v2422, 1
    %v2551 = vsel %vm580, %v2547, %v2549
    %v2552 = vsel %vm580, %v2548, %v2550
    %v2553 = vsel %vm580, %v2545, %v2547
    %v2554 = vsel %vm580, %v2546, %v2548
    %v2555 = vsel %vm580, %v2543, %v2545
    %v2556 = vsel %vm580, %v2544, %v2546
    %v2557 = vsel %vm580, %v2541, %v2543
    %v2558 = vsel %vm580, %v2542, %v2544
    %v2559 = vsel %vm580, %v2539, %v2541
    %v2560 = vsel %vm580, %v2540, %v2542
    %v2561 = vsel %vm580, %v2537, %v2539
    %v2562 = vsel %vm580, %v2538, %v2540
    %v2563 = vsel %vm580, %v2535, %v2537
    %v2564 = vsel %vm580, %v2536, %v2538
    %v2565 = vsel %vm580, %v2533, %v2535
    %v2566 = vsel %vm580, %v2534, %v2536
    %v2567 = vsel %vm580, %v2531, %v2533
    %v2568 = vsel %vm580, %v2532, %v2534
    %v2569 = vsel %vm580, %v2529, %v2531
    %v2570 = vsel %vm580, %v2530, %v2532
    %v2571 = vsel %vm580, %v2527, %v2529
    %v2572 = vsel %vm580, %v2528, %v2530
    %v2573 = vsel %vm580, %v2525, %v2527
    %v2574 = vsel %vm580, %v2526, %v2528
    %v2575 = vsel %vm580, %v2523, %v2525
    %v2576 = vsel %vm580, %v2524, %v2526
    %v2577 = vsel %vm580, %v2521, %v2523
    %v2578 = vsel %vm580, %v2522, %v2524
    %v2579 = vsel %vm580, %v2519, %v2521
    %v2580 = vsel %vm580, %v2520, %v2522
    %v2581 = vsel %vm580, %v2549, %v2519
    %v2582 = vsel %vm580, %v2550, %v2520
    %v2583 = vsel %vm661, %v2579, 0.0
    %v2584 = vsel %vm661, %v2580, 0.0
    %v2585 = vsel %vm662, %v2577, 0.0
    %v2586 = vsel %vm662, %v2578, 0.0
    %v2587 = vsel %vm663, %v2575, 0.0
    %v2588 = vsel %vm663, %v2576, 0.0
    %v2589 = vsel %vm664, %v2573, 0.0
    %v2590 = vsel %vm664, %v2574, 0.0
    %v2591 = vsel %vm665, %v2571, 0.0
    %v2592 = vsel %vm665, %v2572, 0.0
    %v2593 = vsel %vm666, %v2569, 0.0
    %v2594 = vsel %vm666, %v2570, 0.0
    %v2595 = vsel %vm667, %v2567, 0.0
    %v2596 = vsel %vm667, %v2568, 0.0
    %v2597 = vsel %vm668, %v2565, 0.0
    %v2598 = vsel %vm668, %v2566, 0.0
    %v2599 = vsel %vm669, %v2563, 0.0
    %v2600 = vsel %vm669, %v2564, 0.0
    %v2601 = vsel %vm670, %v2561, 0.0
    %v2602 = vsel %vm670, %v2562, 0.0
    %v2603 = vsel %vm671, %v2559, 0.0
    %v2604 = vsel %vm671, %v2560, 0.0
    %v2605 = vsel %vm672, %v2557, 0.0
    %v2606 = vsel %vm672, %v2558, 0.0
    %v2607 = vsel %vm673, %v2555, 0.0
    %v2608 = vsel %vm673, %v2556, 0.0
    %v2609 = vsel %vm674, %v2553, 0.0
    %v2610 = vsel %vm674, %v2554, 0.0
    %v2611 = vsel %vm675, %v2551, 0.0
    %v2612 = vsel %vm675, %v2552, 0.0
    %v2613 = vsel %vm676, %v2581, 0.0
    %v2614 = vsel %vm676, %v2582, 0.0
    %s2615 = scalar_lea.vmem [#allocation5], 512
    %v2616 = vld [vmem:[%s2615] sm:$0xff]
    %v2617 = vld [vmem:[%s2615 + $0x8] sm:$0xff]
    %v2618 = vld [vmem:[%s2615 + $0x10] sm:$0xff]
    %v2619 = vld [vmem:[%s2615 + $0x18] sm:$0xff]
    %v2620 = vld [vmem:[%s2615 + $0x20] sm:$0xff]
    %v2621 = vld [vmem:[%s2615 + $0x28] sm:$0xff]
    %v2622 = vld [vmem:[%s2615 + $0x30] sm:$0xff]
    %v2623 = vld [vmem:[%s2615 + $0x38] sm:$0xff]
    %v2624 = vld [vmem:[%s2615 + $0x40] sm:$0xff]
    %v2625 = vld [vmem:[%s2615 + $0x48] sm:$0xff]
    %v2626 = vld [vmem:[%s2615 + $0x50] sm:$0xff]
    %v2627 = vld [vmem:[%s2615 + $0x58] sm:$0xff]
    %v2628 = vld [vmem:[%s2615 + $0x60] sm:$0xff]
    %v2629 = vld [vmem:[%s2615 + $0x68] sm:$0xff]
    %v2630 = vld [vmem:[%s2615 + $0x70] sm:$0xff]
    %v2631 = vld [vmem:[%s2615 + $0x78] sm:$0xff]
    %v2632 = vld [vmem:[%s2615 + $0x80] sm:$0xff]
    %v2633 = vld [vmem:[%s2615 + $0x88] sm:$0xff]
    %v2634 = vld [vmem:[%s2615 + $0x90] sm:$0xff]
    %v2635 = vld [vmem:[%s2615 + $0x98] sm:$0xff]
    %v2636 = vld [vmem:[%s2615 + $0xa0] sm:$0xff]
    %v2637 = vld [vmem:[%s2615 + $0xa8] sm:$0xff]
    %v2638 = vld [vmem:[%s2615 + $0xb0] sm:$0xff]
    %v2639 = vld [vmem:[%s2615 + $0xb8] sm:$0xff]
    %v2640 = vld [vmem:[%s2615 + $0xc0] sm:$0xff]
    %v2641 = vld [vmem:[%s2615 + $0xc8] sm:$0xff]
    %v2642 = vld [vmem:[%s2615 + $0xd0] sm:$0xff]
    %v2643 = vld [vmem:[%s2615 + $0xd8] sm:$0xff]
    %v2644 = vld [vmem:[%s2615 + $0xe0] sm:$0xff]
    %v2645 = vld [vmem:[%s2615 + $0xe8] sm:$0xff]
    %v2646 = vld [vmem:[%s2615 + $0xf0] sm:$0xff]
    %v2647 = vld [vmem:[%s2615 + $0xf8] sm:$0xff]
    %v2648 = vld [vmem:[%s2615 + $0x100] sm:$0xff]
    %v2649 = vld [vmem:[%s2615 + $0x108] sm:$0xff]
    %v2650 = vld [vmem:[%s2615 + $0x110] sm:$0xff]
    %v2651 = vld [vmem:[%s2615 + $0x118] sm:$0xff]
    %v2652 = vld [vmem:[%s2615 + $0x120] sm:$0xff]
    %v2653 = vld [vmem:[%s2615 + $0x128] sm:$0xff]
    %v2654 = vld [vmem:[%s2615 + $0x130] sm:$0xff]
    %v2655 = vld [vmem:[%s2615 + $0x138] sm:$0xff]
    %v2656 = vld [vmem:[%s2615 + $0x140] sm:$0xff]
    %v2657 = vld [vmem:[%s2615 + $0x148] sm:$0xff]
    %v2658 = vld [vmem:[%s2615 + $0x150] sm:$0xff]
    %v2659 = vld [vmem:[%s2615 + $0x158] sm:$0xff]
    %v2660 = vld [vmem:[%s2615 + $0x160] sm:$0xff]
    %v2661 = vld [vmem:[%s2615 + $0x168] sm:$0xff]
    %v2662 = vld [vmem:[%s2615 + $0x170] sm:$0xff]
    %v2663 = vld [vmem:[%s2615 + $0x178] sm:$0xff]
    %v2664 = vld [vmem:[%s2615 + $0x180] sm:$0xff]
    %v2665 = vld [vmem:[%s2615 + $0x188] sm:$0xff]
    %v2666 = vld [vmem:[%s2615 + $0x190] sm:$0xff]
    %v2667 = vld [vmem:[%s2615 + $0x198] sm:$0xff]
    %v2668 = vld [vmem:[%s2615 + $0x1a0] sm:$0xff]
    %v2669 = vld [vmem:[%s2615 + $0x1a8] sm:$0xff]
    %v2670 = vld [vmem:[%s2615 + $0x1b0] sm:$0xff]
    %v2671 = vld [vmem:[%s2615 + $0x1b8] sm:$0xff]
    %v2672 = vld [vmem:[%s2615 + $0x1c0] sm:$0xff]
    %v2673 = vld [vmem:[%s2615 + $0x1c8] sm:$0xff]
    %v2674 = vld [vmem:[%s2615 + $0x1d0] sm:$0xff]
    %v2675 = vld [vmem:[%s2615 + $0x1d8] sm:$0xff]
    %v2676 = vld [vmem:[%s2615 + $0x1e0] sm:$0xff]
    %v2677 = vld [vmem:[%s2615 + $0x1e8] sm:$0xff]
    %v2678 = vld [vmem:[%s2615 + $0x1f0] sm:$0xff]
    %v2679 = vld [vmem:[%s2615 + $0x1f8] sm:$0xff]
    %v2680 = vunpack.c.l.bf16 %v2616
    %v2681 = vunpack.c.h.bf16 %v2616
    %v2682 = vunpack.c.l.bf16 %v2617
    %v2683 = vunpack.c.h.bf16 %v2617
    %v2684 = vunpack.c.l.bf16 %v2618
    %v2685 = vunpack.c.h.bf16 %v2618
    %v2686 = vunpack.c.l.bf16 %v2619
    %v2687 = vunpack.c.h.bf16 %v2619
    %v2688 = vunpack.c.l.bf16 %v2620
    %v2689 = vunpack.c.h.bf16 %v2620
    %v2690 = vunpack.c.l.bf16 %v2621
    %v2691 = vunpack.c.h.bf16 %v2621
    %v2692 = vunpack.c.l.bf16 %v2622
    %v2693 = vunpack.c.h.bf16 %v2622
    %v2694 = vunpack.c.l.bf16 %v2623
    %v2695 = vunpack.c.h.bf16 %v2623
    %v2696 = vunpack.c.l.bf16 %v2624
    %v2697 = vunpack.c.h.bf16 %v2624
    %v2698 = vunpack.c.l.bf16 %v2625
    %v2699 = vunpack.c.h.bf16 %v2625
    %v2700 = vunpack.c.l.bf16 %v2626
    %v2701 = vunpack.c.h.bf16 %v2626
    %v2702 = vunpack.c.l.bf16 %v2627
    %v2703 = vunpack.c.h.bf16 %v2627
    %v2704 = vunpack.c.l.bf16 %v2628
    %v2705 = vunpack.c.h.bf16 %v2628
    %v2706 = vunpack.c.l.bf16 %v2629
    %v2707 = vunpack.c.h.bf16 %v2629
    %v2708 = vunpack.c.l.bf16 %v2630
    %v2709 = vunpack.c.h.bf16 %v2630
    %v2710 = vunpack.c.l.bf16 %v2631
    %v2711 = vunpack.c.h.bf16 %v2631
    %v2712 = vunpack.c.l.bf16 %v2632
    %v2713 = vunpack.c.h.bf16 %v2632
    %v2714 = vunpack.c.l.bf16 %v2633
    %v2715 = vunpack.c.h.bf16 %v2633
    %v2716 = vunpack.c.l.bf16 %v2634
    %v2717 = vunpack.c.h.bf16 %v2634
    %v2718 = vunpack.c.l.bf16 %v2635
    %v2719 = vunpack.c.h.bf16 %v2635
    %v2720 = vunpack.c.l.bf16 %v2636
    %v2721 = vunpack.c.h.bf16 %v2636
    %v2722 = vunpack.c.l.bf16 %v2637
    %v2723 = vunpack.c.h.bf16 %v2637
    %v2724 = vunpack.c.l.bf16 %v2638
    %v2725 = vunpack.c.h.bf16 %v2638
    %v2726 = vunpack.c.l.bf16 %v2639
    %v2727 = vunpack.c.h.bf16 %v2639
    %v2728 = vunpack.c.l.bf16 %v2640
    %v2729 = vunpack.c.h.bf16 %v2640
    %v2730 = vunpack.c.l.bf16 %v2641
    %v2731 = vunpack.c.h.bf16 %v2641
    %v2732 = vunpack.c.l.bf16 %v2642
    %v2733 = vunpack.c.h.bf16 %v2642
    %v2734 = vunpack.c.l.bf16 %v2643
    %v2735 = vunpack.c.h.bf16 %v2643
    %v2736 = vunpack.c.l.bf16 %v2644
    %v2737 = vunpack.c.h.bf16 %v2644
    %v2738 = vunpack.c.l.bf16 %v2645
    %v2739 = vunpack.c.h.bf16 %v2645
    %v2740 = vunpack.c.l.bf16 %v2646
    %v2741 = vunpack.c.h.bf16 %v2646
    %v2742 = vunpack.c.l.bf16 %v2647
    %v2743 = vunpack.c.h.bf16 %v2647
    %v2744 = vunpack.c.l.bf16 %v2648
    %v2745 = vunpack.c.h.bf16 %v2648
    %v2746 = vunpack.c.l.bf16 %v2649
    %v2747 = vunpack.c.h.bf16 %v2649
    %v2748 = vunpack.c.l.bf16 %v2650
    %v2749 = vunpack.c.h.bf16 %v2650
    %v2750 = vunpack.c.l.bf16 %v2651
    %v2751 = vunpack.c.h.bf16 %v2651
    %v2752 = vunpack.c.l.bf16 %v2652
    %v2753 = vunpack.c.h.bf16 %v2652
    %v2754 = vunpack.c.l.bf16 %v2653
    %v2755 = vunpack.c.h.bf16 %v2653
    %v2756 = vunpack.c.l.bf16 %v2654
    %v2757 = vunpack.c.h.bf16 %v2654
    %v2758 = vunpack.c.l.bf16 %v2655
    %v2759 = vunpack.c.h.bf16 %v2655
    %v2760 = vunpack.c.l.bf16 %v2656
    %v2761 = vunpack.c.h.bf16 %v2656
    %v2762 = vunpack.c.l.bf16 %v2657
    %v2763 = vunpack.c.h.bf16 %v2657
    %v2764 = vunpack.c.l.bf16 %v2658
    %v2765 = vunpack.c.h.bf16 %v2658
    %v2766 = vunpack.c.l.bf16 %v2659
    %v2767 = vunpack.c.h.bf16 %v2659
    %v2768 = vunpack.c.l.bf16 %v2660
    %v2769 = vunpack.c.h.bf16 %v2660
    %v2770 = vunpack.c.l.bf16 %v2661
    %v2771 = vunpack.c.h.bf16 %v2661
    %v2772 = vunpack.c.l.bf16 %v2662
    %v2773 = vunpack.c.h.bf16 %v2662
    %v2774 = vunpack.c.l.bf16 %v2663
    %v2775 = vunpack.c.h.bf16 %v2663
    %v2776 = vunpack.c.l.bf16 %v2664
    %v2777 = vunpack.c.h.bf16 %v2664
    %v2778 = vunpack.c.l.bf16 %v2665
    %v2779 = vunpack.c.h.bf16 %v2665
    %v2780 = vunpack.c.l.bf16 %v2666
    %v2781 = vunpack.c.h.bf16 %v2666
    %v2782 = vunpack.c.l.bf16 %v2667
    %v2783 = vunpack.c.h.bf16 %v2667
    %v2784 = vunpack.c.l.bf16 %v2668
    %v2785 = vunpack.c.h.bf16 %v2668
    %v2786 = vunpack.c.l.bf16 %v2669
    %v2787 = vunpack.c.h.bf16 %v2669
    %v2788 = vunpack.c.l.bf16 %v2670
    %v2789 = vunpack.c.h.bf16 %v2670
    %v2790 = vunpack.c.l.bf16 %v2671
    %v2791 = vunpack.c.h.bf16 %v2671
    %v2792 = vunpack.c.l.bf16 %v2672
    %v2793 = vunpack.c.h.bf16 %v2672
    %v2794 = vunpack.c.l.bf16 %v2673
    %v2795 = vunpack.c.h.bf16 %v2673
    %v2796 = vunpack.c.l.bf16 %v2674
    %v2797 = vunpack.c.h.bf16 %v2674
    %v2798 = vunpack.c.l.bf16 %v2675
    %v2799 = vunpack.c.h.bf16 %v2675
    %v2800 = vunpack.c.l.bf16 %v2676
    %v2801 = vunpack.c.h.bf16 %v2676
    %v2802 = vunpack.c.l.bf16 %v2677
    %v2803 = vunpack.c.h.bf16 %v2677
    %v2804 = vunpack.c.l.bf16 %v2678
    %v2805 = vunpack.c.h.bf16 %v2678
    %v2806 = vunpack.c.l.bf16 %v2679
    %v2807 = vunpack.c.h.bf16 %v2679
    %s2808 = scalar_lea.vmem [#allocation7], 512
    %v2809 = vld [vmem:[%s2808] sm:$0xff]
    %v2810 = vld [vmem:[%s2808 + $0x8] sm:$0xff]
    %v2811 = vld [vmem:[%s2808 + $0x10] sm:$0xff]
    %v2812 = vld [vmem:[%s2808 + $0x18] sm:$0xff]
    %v2813 = vld [vmem:[%s2808 + $0x20] sm:$0xff]
    %v2814 = vld [vmem:[%s2808 + $0x28] sm:$0xff]
    %v2815 = vld [vmem:[%s2808 + $0x30] sm:$0xff]
    %v2816 = vld [vmem:[%s2808 + $0x38] sm:$0xff]
    %v2817 = vld [vmem:[%s2808 + $0x40] sm:$0xff]
    %v2818 = vld [vmem:[%s2808 + $0x48] sm:$0xff]
    %v2819 = vld [vmem:[%s2808 + $0x50] sm:$0xff]
    %v2820 = vld [vmem:[%s2808 + $0x58] sm:$0xff]
    %v2821 = vld [vmem:[%s2808 + $0x60] sm:$0xff]
    %v2822 = vld [vmem:[%s2808 + $0x68] sm:$0xff]
    %v2823 = vld [vmem:[%s2808 + $0x70] sm:$0xff]
    %v2824 = vld [vmem:[%s2808 + $0x78] sm:$0xff]
    %v2825 = vld [vmem:[%s2808 + $0x80] sm:$0xff]
    %v2826 = vld [vmem:[%s2808 + $0x88] sm:$0xff]
    %v2827 = vld [vmem:[%s2808 + $0x90] sm:$0xff]
    %v2828 = vld [vmem:[%s2808 + $0x98] sm:$0xff]
    %v2829 = vld [vmem:[%s2808 + $0xa0] sm:$0xff]
    %v2830 = vld [vmem:[%s2808 + $0xa8] sm:$0xff]
    %v2831 = vld [vmem:[%s2808 + $0xb0] sm:$0xff]
    %v2832 = vld [vmem:[%s2808 + $0xb8] sm:$0xff]
    %v2833 = vld [vmem:[%s2808 + $0xc0] sm:$0xff]
    %v2834 = vld [vmem:[%s2808 + $0xc8] sm:$0xff]
    %v2835 = vld [vmem:[%s2808 + $0xd0] sm:$0xff]
    %v2836 = vld [vmem:[%s2808 + $0xd8] sm:$0xff]
    %v2837 = vld [vmem:[%s2808 + $0xe0] sm:$0xff]
    %v2838 = vld [vmem:[%s2808 + $0xe8] sm:$0xff]
    %v2839 = vld [vmem:[%s2808 + $0xf0] sm:$0xff]
    %v2840 = vld [vmem:[%s2808 + $0xf8] sm:$0xff]
    %v2841 = vld [vmem:[%s2808 + $0x100] sm:$0xff]
    %v2842 = vld [vmem:[%s2808 + $0x108] sm:$0xff]
    %v2843 = vld [vmem:[%s2808 + $0x110] sm:$0xff]
    %v2844 = vld [vmem:[%s2808 + $0x118] sm:$0xff]
    %v2845 = vld [vmem:[%s2808 + $0x120] sm:$0xff]
    %v2846 = vld [vmem:[%s2808 + $0x128] sm:$0xff]
    %v2847 = vld [vmem:[%s2808 + $0x130] sm:$0xff]
    %v2848 = vld [vmem:[%s2808 + $0x138] sm:$0xff]
    %v2849 = vld [vmem:[%s2808 + $0x140] sm:$0xff]
    %v2850 = vld [vmem:[%s2808 + $0x148] sm:$0xff]
    %v2851 = vld [vmem:[%s2808 + $0x150] sm:$0xff]
    %v2852 = vld [vmem:[%s2808 + $0x158] sm:$0xff]
    %v2853 = vld [vmem:[%s2808 + $0x160] sm:$0xff]
    %v2854 = vld [vmem:[%s2808 + $0x168] sm:$0xff]
    %v2855 = vld [vmem:[%s2808 + $0x170] sm:$0xff]
    %v2856 = vld [vmem:[%s2808 + $0x178] sm:$0xff]
    %v2857 = vld [vmem:[%s2808 + $0x180] sm:$0xff]
    %v2858 = vld [vmem:[%s2808 + $0x188] sm:$0xff]
    %v2859 = vld [vmem:[%s2808 + $0x190] sm:$0xff]
    %v2860 = vld [vmem:[%s2808 + $0x198] sm:$0xff]
    %v2861 = vld [vmem:[%s2808 + $0x1a0] sm:$0xff]
    %v2862 = vld [vmem:[%s2808 + $0x1a8] sm:$0xff]
    %v2863 = vld [vmem:[%s2808 + $0x1b0] sm:$0xff]
    %v2864 = vld [vmem:[%s2808 + $0x1b8] sm:$0xff]
    %v2865 = vld [vmem:[%s2808 + $0x1c0] sm:$0xff]
    %v2866 = vld [vmem:[%s2808 + $0x1c8] sm:$0xff]
    %v2867 = vld [vmem:[%s2808 + $0x1d0] sm:$0xff]
    %v2868 = vld [vmem:[%s2808 + $0x1d8] sm:$0xff]
    %v2869 = vld [vmem:[%s2808 + $0x1e0] sm:$0xff]
    %v2870 = vld [vmem:[%s2808 + $0x1e8] sm:$0xff]
    %v2871 = vld [vmem:[%s2808 + $0x1f0] sm:$0xff]
    %v2872 = vld [vmem:[%s2808 + $0x1f8] sm:$0xff]
    %v2873 = vunpack.c.l.bf16 %v2809
    %v2874 = vunpack.c.h.bf16 %v2809
    %v2875 = vunpack.c.l.bf16 %v2810
    %v2876 = vunpack.c.h.bf16 %v2810
    %v2877 = vunpack.c.l.bf16 %v2811
    %v2878 = vunpack.c.h.bf16 %v2811
    %v2879 = vunpack.c.l.bf16 %v2812
    %v2880 = vunpack.c.h.bf16 %v2812
    %v2881 = vunpack.c.l.bf16 %v2813
    %v2882 = vunpack.c.h.bf16 %v2813
    %v2883 = vunpack.c.l.bf16 %v2814
    %v2884 = vunpack.c.h.bf16 %v2814
    %v2885 = vunpack.c.l.bf16 %v2815
    %v2886 = vunpack.c.h.bf16 %v2815
    %v2887 = vunpack.c.l.bf16 %v2816
    %v2888 = vunpack.c.h.bf16 %v2816
    %v2889 = vunpack.c.l.bf16 %v2817
    %v2890 = vunpack.c.h.bf16 %v2817
    %v2891 = vunpack.c.l.bf16 %v2818
    %v2892 = vunpack.c.h.bf16 %v2818
    %v2893 = vunpack.c.l.bf16 %v2819
    %v2894 = vunpack.c.h.bf16 %v2819
    %v2895 = vunpack.c.l.bf16 %v2820
    %v2896 = vunpack.c.h.bf16 %v2820
    %v2897 = vunpack.c.l.bf16 %v2821
    %v2898 = vunpack.c.h.bf16 %v2821
    %v2899 = vunpack.c.l.bf16 %v2822
    %v2900 = vunpack.c.h.bf16 %v2822
    %v2901 = vunpack.c.l.bf16 %v2823
    %v2902 = vunpack.c.h.bf16 %v2823
    %v2903 = vunpack.c.l.bf16 %v2824
    %v2904 = vunpack.c.h.bf16 %v2824
    %v2905 = vunpack.c.l.bf16 %v2825
    %v2906 = vunpack.c.h.bf16 %v2825
    %v2907 = vunpack.c.l.bf16 %v2826
    %v2908 = vunpack.c.h.bf16 %v2826
    %v2909 = vunpack.c.l.bf16 %v2827
    %v2910 = vunpack.c.h.bf16 %v2827
    %v2911 = vunpack.c.l.bf16 %v2828
    %v2912 = vunpack.c.h.bf16 %v2828
    %v2913 = vunpack.c.l.bf16 %v2829
    %v2914 = vunpack.c.h.bf16 %v2829
    %v2915 = vunpack.c.l.bf16 %v2830
    %v2916 = vunpack.c.h.bf16 %v2830
    %v2917 = vunpack.c.l.bf16 %v2831
    %v2918 = vunpack.c.h.bf16 %v2831
    %v2919 = vunpack.c.l.bf16 %v2832
    %v2920 = vunpack.c.h.bf16 %v2832
    %v2921 = vunpack.c.l.bf16 %v2833
    %v2922 = vunpack.c.h.bf16 %v2833
    %v2923 = vunpack.c.l.bf16 %v2834
    %v2924 = vunpack.c.h.bf16 %v2834
    %v2925 = vunpack.c.l.bf16 %v2835
    %v2926 = vunpack.c.h.bf16 %v2835
    %v2927 = vunpack.c.l.bf16 %v2836
    %v2928 = vunpack.c.h.bf16 %v2836
    %v2929 = vunpack.c.l.bf16 %v2837
    %v2930 = vunpack.c.h.bf16 %v2837
    %v2931 = vunpack.c.l.bf16 %v2838
    %v2932 = vunpack.c.h.bf16 %v2838
    %v2933 = vunpack.c.l.bf16 %v2839
    %v2934 = vunpack.c.h.bf16 %v2839
    %v2935 = vunpack.c.l.bf16 %v2840
    %v2936 = vunpack.c.h.bf16 %v2840
    %v2937 = vunpack.c.l.bf16 %v2841
    %v2938 = vunpack.c.h.bf16 %v2841
    %v2939 = vunpack.c.l.bf16 %v2842
    %v2940 = vunpack.c.h.bf16 %v2842
    %v2941 = vunpack.c.l.bf16 %v2843
    %v2942 = vunpack.c.h.bf16 %v2843
    %v2943 = vunpack.c.l.bf16 %v2844
    %v2944 = vunpack.c.h.bf16 %v2844
    %v2945 = vunpack.c.l.bf16 %v2845
    %v2946 = vunpack.c.h.bf16 %v2845
    %v2947 = vunpack.c.l.bf16 %v2846
    %v2948 = vunpack.c.h.bf16 %v2846
    %v2949 = vunpack.c.l.bf16 %v2847
    %v2950 = vunpack.c.h.bf16 %v2847
    %v2951 = vunpack.c.l.bf16 %v2848
    %v2952 = vunpack.c.h.bf16 %v2848
    %v2953 = vunpack.c.l.bf16 %v2849
    %v2954 = vunpack.c.h.bf16 %v2849
    %v2955 = vunpack.c.l.bf16 %v2850
    %v2956 = vunpack.c.h.bf16 %v2850
    %v2957 = vunpack.c.l.bf16 %v2851
    %v2958 = vunpack.c.h.bf16 %v2851
    %v2959 = vunpack.c.l.bf16 %v2852
    %v2960 = vunpack.c.h.bf16 %v2852
    %v2961 = vunpack.c.l.bf16 %v2853
    %v2962 = vunpack.c.h.bf16 %v2853
    %v2963 = vunpack.c.l.bf16 %v2854
    %v2964 = vunpack.c.h.bf16 %v2854
    %v2965 = vunpack.c.l.bf16 %v2855
    %v2966 = vunpack.c.h.bf16 %v2855
    %v2967 = vunpack.c.l.bf16 %v2856
    %v2968 = vunpack.c.h.bf16 %v2856
    %v2969 = vunpack.c.l.bf16 %v2857
    %v2970 = vunpack.c.h.bf16 %v2857
    %v2971 = vunpack.c.l.bf16 %v2858
    %v2972 = vunpack.c.h.bf16 %v2858
    %v2973 = vunpack.c.l.bf16 %v2859
    %v2974 = vunpack.c.h.bf16 %v2859
    %v2975 = vunpack.c.l.bf16 %v2860
    %v2976 = vunpack.c.h.bf16 %v2860
    %v2977 = vunpack.c.l.bf16 %v2861
    %v2978 = vunpack.c.h.bf16 %v2861
    %v2979 = vunpack.c.l.bf16 %v2862
    %v2980 = vunpack.c.h.bf16 %v2862
    %v2981 = vunpack.c.l.bf16 %v2863
    %v2982 = vunpack.c.h.bf16 %v2863
    %v2983 = vunpack.c.l.bf16 %v2864
    %v2984 = vunpack.c.h.bf16 %v2864
    %v2985 = vunpack.c.l.bf16 %v2865
    %v2986 = vunpack.c.h.bf16 %v2865
    %v2987 = vunpack.c.l.bf16 %v2866
    %v2988 = vunpack.c.h.bf16 %v2866
    %v2989 = vunpack.c.l.bf16 %v2867
    %v2990 = vunpack.c.h.bf16 %v2867
    %v2991 = vunpack.c.l.bf16 %v2868
    %v2992 = vunpack.c.h.bf16 %v2868
    %v2993 = vunpack.c.l.bf16 %v2869
    %v2994 = vunpack.c.h.bf16 %v2869
    %v2995 = vunpack.c.l.bf16 %v2870
    %v2996 = vunpack.c.h.bf16 %v2870
    %v2997 = vunpack.c.l.bf16 %v2871
    %v2998 = vunpack.c.h.bf16 %v2871
    %v2999 = vunpack.c.l.bf16 %v2872
    %v3000 = vunpack.c.h.bf16 %v2872
    %3001 = vmatprep.subr.mxu0 %v2904
    %3002 = vmatpush1.msra.mxu0 %v2903
    %3003 = vmatprep.subr.mxu0 %v2902
    %3004 = vmatpush1.msra.mxu0 %v2901
    %3005 = vmatprep.subr.mxu0 %v2900
    %3006 = vmatpush1.msra.mxu0 %v2899
    %3007 = vmatprep.subr.mxu0 %v2898
    %3008 = vmatpush1.msra.mxu0 %v2897
    %3009 = vmatprep.subr.mxu0 %v2896
    %3010 = vmatpush1.msra.mxu0 %v2895
    %3011 = vmatprep.subr.mxu0 %v2894
    %3012 = vmatpush1.msra.mxu0 %v2893
    %3013 = vmatprep.subr.mxu0 %v2892
    %3014 = vmatpush1.msra.mxu0 %v2891
    %3015 = vmatprep.subr.mxu0 %v2890
    %3016 = vmatpush1.msra.mxu0 %v2889
    %3017 = vmatprep.subr.mxu0 %v2888
    %3018 = vmatpush1.msra.mxu0 %v2887
    %3019 = vmatprep.subr.mxu0 %v2886
    %3020 = vmatpush1.msra.mxu0 %v2885
    %3021 = vmatprep.subr.mxu0 %v2884
    %3022 = vmatpush1.msra.mxu0 %v2883
    %3023 = vmatprep.subr.mxu0 %v2882
    %3024 = vmatpush1.msra.mxu0 %v2881
    %3025 = vmatprep.subr.mxu0 %v2880
    %3026 = vmatpush1.msra.mxu0 %v2879
    %3027 = vmatprep.subr.mxu0 %v2878
    %3028 = vmatpush1.msra.mxu0 %v2877
    %3029 = vmatprep.subr.mxu0 %v2876
    %3030 = vmatpush1.msra.mxu0 %v2875
    %3031 = vmatprep.subr.mxu0 %v2874
    %3032 = vmatpush1.msra.mxu0 %v2873
    %3033 = vmatprep.subr.mxu0 %v2936
    %3034 = vmatpush2.msra.mxu0 %v2935
    %3035 = vmatprep.subr.mxu0 %v2934
    %3036 = vmatpush2.msra.mxu0 %v2933
    %3037 = vmatprep.subr.mxu0 %v2932
    %3038 = vmatpush2.msra.mxu0 %v2931
    %3039 = vmatprep.subr.mxu0 %v2930
    %3040 = vmatpush2.msra.mxu0 %v2929
    %3041 = vmatprep.subr.mxu0 %v2928
    %3042 = vmatpush2.msra.mxu0 %v2927
    %3043 = vmatprep.subr.mxu0 %v2926
    %3044 = vmatpush2.msra.mxu0 %v2925
    %3045 = vmatprep.subr.mxu0 %v2924
    %3046 = vmatpush2.msra.mxu0 %v2923
    %3047 = vmatprep.subr.mxu0 %v2922
    %3048 = vmatpush2.msra.mxu0 %v2921
    %3049 = vmatprep.subr.mxu0 %v2920
    %3050 = vmatpush2.msra.mxu0 %v2919
    %3051 = vmatprep.subr.mxu0 %v2918
    %3052 = vmatpush2.msra.mxu0 %v2917
    %3053 = vmatprep.subr.mxu0 %v2916
    %3054 = vmatpush2.msra.mxu0 %v2915
    %3055 = vmatprep.subr.mxu0 %v2914
    %3056 = vmatpush2.msra.mxu0 %v2913
    %3057 = vmatprep.subr.mxu0 %v2912
    %3058 = vmatpush2.msra.mxu0 %v2911
    %3059 = vmatprep.subr.mxu0 %v2910
    %3060 = vmatpush2.msra.mxu0 %v2909
    %3061 = vmatprep.subr.mxu0 %v2908
    %3062 = vmatpush2.msra.mxu0 %v2907
    %3063 = vmatprep.subr.mxu0 %v2906
    %3064 = vmatpush2.msra.mxu0 %v2905
    %3065 = vmatprep.mubr.f32.mxu0 %v453
    %3066 = vmatmul.mubr.f32.gmra.mxu0 %v452
    %v3067 = vpop.f32.mrf.mxu0
    %v3068 = vadd.f32 0.0, %v3067
    %v3069 = vpop.f32.mrf.mxu0
    %v3070 = vadd.f32 0.0, %v3069
    %3071 = vmatprep.mubr.f32.mxu0 %v457
    %3072 = vmatmul.mubr.f32.gmra.mxu0 %v456
    %v3073 = vpop.f32.mrf.mxu0
    %v3074 = vadd.f32 0.0, %v3073
    %v3075 = vpop.f32.mrf.mxu0
    %v3076 = vadd.f32 0.0, %v3075
    %3077 = vmatprep.mubr.f32.mxu0 %v461
    %3078 = vmatmul.mubr.f32.gmra.mxu0 %v460
    %v3079 = vpop.f32.mrf.mxu0
    %v3080 = vadd.f32 0.0, %v3079
    %v3081 = vpop.f32.mrf.mxu0
    %v3082 = vadd.f32 0.0, %v3081
    %3083 = vmatprep.mubr.f32.mxu0 %v465
    %3084 = vmatmul.mubr.f32.gmra.mxu0 %v464
    %v3085 = vpop.f32.mrf.mxu0
    %v3086 = vadd.f32 0.0, %v3085
    %v3087 = vpop.f32.mrf.mxu0
    %v3088 = vadd.f32 0.0, %v3087
    %3089 = vmatprep.mubr.f32.mxu0 %v469
    %3090 = vmatmul.mubr.f32.gmra.mxu0 %v468
    %v3091 = vpop.f32.mrf.mxu0
    %v3092 = vadd.f32 0.0, %v3091
    %v3093 = vpop.f32.mrf.mxu0
    %v3094 = vadd.f32 0.0, %v3093
    %3095 = vmatprep.mubr.f32.mxu0 %v473
    %3096 = vmatmul.mubr.f32.gmra.mxu0 %v472
    %v3097 = vpop.f32.mrf.mxu0
    %v3098 = vadd.f32 0.0, %v3097
    %v3099 = vpop.f32.mrf.mxu0
    %v3100 = vadd.f32 0.0, %v3099
    %3101 = vmatprep.mubr.f32.mxu0 %v477
    %3102 = vmatmul.mubr.f32.gmra.mxu0 %v476
    %v3103 = vpop.f32.mrf.mxu0
    %v3104 = vadd.f32 0.0, %v3103
    %v3105 = vpop.f32.mrf.mxu0
    %v3106 = vadd.f32 0.0, %v3105
    %3107 = vmatprep.mubr.f32.mxu0 %v481
    %3108 = vmatmul.mubr.f32.gmra.mxu0 %v480
    %v3109 = vpop.f32.mrf.mxu0
    %v3110 = vadd.f32 0.0, %v3109
    %v3111 = vpop.f32.mrf.mxu0
    %v3112 = vadd.f32 0.0, %v3111
    %3113 = vmatprep.mubr.f32.mxu0 %v485
    %3114 = vmatmul.mubr.f32.gmra.mxu0 %v484
    %v3115 = vpop.f32.mrf.mxu0
    %v3116 = vadd.f32 0.0, %v3115
    %v3117 = vpop.f32.mrf.mxu0
    %v3118 = vadd.f32 0.0, %v3117
    %3119 = vmatprep.mubr.f32.mxu0 %v489
    %3120 = vmatmul.mubr.f32.gmra.mxu0 %v488
    %v3121 = vpop.f32.mrf.mxu0
    %v3122 = vadd.f32 0.0, %v3121
    %v3123 = vpop.f32.mrf.mxu0
    %v3124 = vadd.f32 0.0, %v3123
    %3125 = vmatprep.mubr.f32.mxu0 %v493
    %3126 = vmatmul.mubr.f32.gmra.mxu0 %v492
    %v3127 = vpop.f32.mrf.mxu0
    %v3128 = vadd.f32 0.0, %v3127
    %v3129 = vpop.f32.mrf.mxu0
    %v3130 = vadd.f32 0.0, %v3129
    %3131 = vmatprep.mubr.f32.mxu0 %v497
    %3132 = vmatmul.mubr.f32.gmra.mxu0 %v496
    %v3133 = vpop.f32.mrf.mxu0
    %v3134 = vadd.f32 0.0, %v3133
    %v3135 = vpop.f32.mrf.mxu0
    %v3136 = vadd.f32 0.0, %v3135
    %3137 = vmatprep.mubr.f32.mxu0 %v501
    %3138 = vmatmul.mubr.f32.gmra.mxu0 %v500
    %v3139 = vpop.f32.mrf.mxu0
    %v3140 = vadd.f32 0.0, %v3139
    %v3141 = vpop.f32.mrf.mxu0
    %v3142 = vadd.f32 0.0, %v3141
    %3143 = vmatprep.mubr.f32.mxu0 %v505
    %3144 = vmatmul.mubr.f32.gmra.mxu0 %v504
    %v3145 = vpop.f32.mrf.mxu0
    %v3146 = vadd.f32 0.0, %v3145
    %v3147 = vpop.f32.mrf.mxu0
    %v3148 = vadd.f32 0.0, %v3147
    %3149 = vmatprep.mubr.f32.mxu0 %v509
    %3150 = vmatmul.mubr.f32.gmra.mxu0 %v508
    %v3151 = vpop.f32.mrf.mxu0
    %v3152 = vadd.f32 0.0, %v3151
    %v3153 = vpop.f32.mrf.mxu0
    %v3154 = vadd.f32 0.0, %v3153
    %3155 = vmatprep.mubr.f32.mxu0 %v513
    %3156 = vmatmul.mubr.f32.gmra.mxu0 %v512
    %v3157 = vpop.f32.mrf.mxu0
    %v3158 = vadd.f32 0.0, %v3157
    %v3159 = vpop.f32.mrf.mxu0
    %v3160 = vadd.f32 0.0, %v3159
    %3161 = vdwg.mxu0
    %3162 = vmatprep.subr.mxu0 %v2968
    %3163 = vmatpush1.msra.mxu0 %v2967
    %3164 = vmatprep.subr.mxu0 %v2966
    %3165 = vmatpush1.msra.mxu0 %v2965
    %3166 = vmatprep.subr.mxu0 %v2964
    %3167 = vmatpush1.msra.mxu0 %v2963
    %3168 = vmatprep.subr.mxu0 %v2962
    %3169 = vmatpush1.msra.mxu0 %v2961
    %3170 = vmatprep.subr.mxu0 %v2960
    %3171 = vmatpush1.msra.mxu0 %v2959
    %3172 = vmatprep.subr.mxu0 %v2958
    %3173 = vmatpush1.msra.mxu0 %v2957
    %3174 = vmatprep.subr.mxu0 %v2956
    %3175 = vmatpush1.msra.mxu0 %v2955
    %3176 = vmatprep.subr.mxu0 %v2954
    %3177 = vmatpush1.msra.mxu0 %v2953
    %3178 = vmatprep.subr.mxu0 %v2952
    %3179 = vmatpush1.msra.mxu0 %v2951
    %3180 = vmatprep.subr.mxu0 %v2950
    %3181 = vmatpush1.msra.mxu0 %v2949
    %3182 = vmatprep.subr.mxu0 %v2948
    %3183 = vmatpush1.msra.mxu0 %v2947
    %3184 = vmatprep.subr.mxu0 %v2946
    %3185 = vmatpush1.msra.mxu0 %v2945
    %3186 = vmatprep.subr.mxu0 %v2944
    %3187 = vmatpush1.msra.mxu0 %v2943
    %3188 = vmatprep.subr.mxu0 %v2942
    %3189 = vmatpush1.msra.mxu0 %v2941
    %3190 = vmatprep.subr.mxu0 %v2940
    %3191 = vmatpush1.msra.mxu0 %v2939
    %3192 = vmatprep.subr.mxu0 %v2938
    %3193 = vmatpush1.msra.mxu0 %v2937
    %3194 = vmatprep.subr.mxu0 %v3000
    %3195 = vmatpush2.msra.mxu0 %v2999
    %3196 = vmatprep.subr.mxu0 %v2998
    %3197 = vmatpush2.msra.mxu0 %v2997
    %3198 = vmatprep.subr.mxu0 %v2996
    %3199 = vmatpush2.msra.mxu0 %v2995
    %3200 = vmatprep.subr.mxu0 %v2994
    %3201 = vmatpush2.msra.mxu0 %v2993
    %3202 = vmatprep.subr.mxu0 %v2992
    %3203 = vmatpush2.msra.mxu0 %v2991
    %3204 = vmatprep.subr.mxu0 %v2990
    %3205 = vmatpush2.msra.mxu0 %v2989
    %3206 = vmatprep.subr.mxu0 %v2988
    %3207 = vmatpush2.msra.mxu0 %v2987
    %3208 = vmatprep.subr.mxu0 %v2986
    %3209 = vmatpush2.msra.mxu0 %v2985
    %3210 = vmatprep.subr.mxu0 %v2984
    %3211 = vmatpush2.msra.mxu0 %v2983
    %3212 = vmatprep.subr.mxu0 %v2982
    %3213 = vmatpush2.msra.mxu0 %v2981
    %3214 = vmatprep.subr.mxu0 %v2980
    %3215 = vmatpush2.msra.mxu0 %v2979
    %3216 = vmatprep.subr.mxu0 %v2978
    %3217 = vmatpush2.msra.mxu0 %v2977
    %3218 = vmatprep.subr.mxu0 %v2976
    %3219 = vmatpush2.msra.mxu0 %v2975
    %3220 = vmatprep.subr.mxu0 %v2974
    %3221 = vmatpush2.msra.mxu0 %v2973
    %3222 = vmatprep.subr.mxu0 %v2972
    %3223 = vmatpush2.msra.mxu0 %v2971
    %3224 = vmatprep.subr.mxu0 %v2970
    %3225 = vmatpush2.msra.mxu0 %v2969
    %3226 = vmatprep.mubr.f32.mxu0 %v2488
    %3227 = vmatmul.mubr.f32.gmra.mxu0 %v2487
    %v3228 = vpop.f32.mrf.mxu0
    %v3229 = vadd.f32 %v3068, %v3228
    %v3230 = vpop.f32.mrf.mxu0
    %v3231 = vadd.f32 %v3070, %v3230
    %3232 = vmatprep.mubr.f32.mxu0 %v2490
    %3233 = vmatmul.mubr.f32.gmra.mxu0 %v2489
    %v3234 = vpop.f32.mrf.mxu0
    %v3235 = vadd.f32 %v3074, %v3234
    %v3236 = vpop.f32.mrf.mxu0
    %v3237 = vadd.f32 %v3076, %v3236
    %3238 = vmatprep.mubr.f32.mxu0 %v2492
    %3239 = vmatmul.mubr.f32.gmra.mxu0 %v2491
    %v3240 = vpop.f32.mrf.mxu0
    %v3241 = vadd.f32 %v3080, %v3240
    %v3242 = vpop.f32.mrf.mxu0
    %v3243 = vadd.f32 %v3082, %v3242
    %3244 = vmatprep.mubr.f32.mxu0 %v2494
    %3245 = vmatmul.mubr.f32.gmra.mxu0 %v2493
    %v3246 = vpop.f32.mrf.mxu0
    %v3247 = vadd.f32 %v3086, %v3246
    %v3248 = vpop.f32.mrf.mxu0
    %v3249 = vadd.f32 %v3088, %v3248
    %3250 = vmatprep.mubr.f32.mxu0 %v2496
    %3251 = vmatmul.mubr.f32.gmra.mxu0 %v2495
    %v3252 = vpop.f32.mrf.mxu0
    %v3253 = vadd.f32 %v3092, %v3252
    %v3254 = vpop.f32.mrf.mxu0
    %v3255 = vadd.f32 %v3094, %v3254
    %3256 = vmatprep.mubr.f32.mxu0 %v2498
    %3257 = vmatmul.mubr.f32.gmra.mxu0 %v2497
    %v3258 = vpop.f32.mrf.mxu0
    %v3259 = vadd.f32 %v3098, %v3258
    %v3260 = vpop.f32.mrf.mxu0
    %v3261 = vadd.f32 %v3100, %v3260
    %3262 = vmatprep.mubr.f32.mxu0 %v2500
    %3263 = vmatmul.mubr.f32.gmra.mxu0 %v2499
    %v3264 = vpop.f32.mrf.mxu0
    %v3265 = vadd.f32 %v3104, %v3264
    %v3266 = vpop.f32.mrf.mxu0
    %v3267 = vadd.f32 %v3106, %v3266
    %3268 = vmatprep.mubr.f32.mxu0 %v2502
    %3269 = vmatmul.mubr.f32.gmra.mxu0 %v2501
    %v3270 = vpop.f32.mrf.mxu0
    %v3271 = vadd.f32 %v3110, %v3270
    %v3272 = vpop.f32.mrf.mxu0
    %v3273 = vadd.f32 %v3112, %v3272
    %3274 = vmatprep.mubr.f32.mxu0 %v2504
    %3275 = vmatmul.mubr.f32.gmra.mxu0 %v2503
    %v3276 = vpop.f32.mrf.mxu0
    %v3277 = vadd.f32 %v3116, %v3276
    %v3278 = vpop.f32.mrf.mxu0
    %v3279 = vadd.f32 %v3118, %v3278
    %3280 = vmatprep.mubr.f32.mxu0 %v2506
    %3281 = vmatmul.mubr.f32.gmra.mxu0 %v2505
    %v3282 = vpop.f32.mrf.mxu0
    %v3283 = vadd.f32 %v3122, %v3282
    %v3284 = vpop.f32.mrf.mxu0
    %v3285 = vadd.f32 %v3124, %v3284
    %3286 = vmatprep.mubr.f32.mxu0 %v2508
    %3287 = vmatmul.mubr.f32.gmra.mxu0 %v2507
    %v3288 = vpop.f32.mrf.mxu0
    %v3289 = vadd.f32 %v3128, %v3288
    %v3290 = vpop.f32.mrf.mxu0
    %v3291 = vadd.f32 %v3130, %v3290
    %3292 = vmatprep.mubr.f32.mxu0 %v2510
    %3293 = vmatmul.mubr.f32.gmra.mxu0 %v2509
    %v3294 = vpop.f32.mrf.mxu0
    %v3295 = vadd.f32 %v3134, %v3294
    %v3296 = vpop.f32.mrf.mxu0
    %v3297 = vadd.f32 %v3136, %v3296
    %3298 = vmatprep.mubr.f32.mxu0 %v2512
    %3299 = vmatmul.mubr.f32.gmra.mxu0 %v2511
    %v3300 = vpop.f32.mrf.mxu0
    %v3301 = vadd.f32 %v3140, %v3300
    %v3302 = vpop.f32.mrf.mxu0
    %v3303 = vadd.f32 %v3142, %v3302
    %3304 = vmatprep.mubr.f32.mxu0 %v2514
    %3305 = vmatmul.mubr.f32.gmra.mxu0 %v2513
    %v3306 = vpop.f32.mrf.mxu0
    %v3307 = vadd.f32 %v3146, %v3306
    %v3308 = vpop.f32.mrf.mxu0
    %v3309 = vadd.f32 %v3148, %v3308
    %3310 = vmatprep.mubr.f32.mxu0 %v2516
    %3311 = vmatmul.mubr.f32.gmra.mxu0 %v2515
    %v3312 = vpop.f32.mrf.mxu0
    %v3313 = vadd.f32 %v3152, %v3312
    %v3314 = vpop.f32.mrf.mxu0
    %v3315 = vadd.f32 %v3154, %v3314
    %3316 = vmatprep.mubr.f32.mxu0 %v2518
    %3317 = vmatmul.mubr.f32.gmra.mxu0 %v2517
    %v3318 = vpop.f32.mrf.mxu0
    %v3319 = vadd.f32 %v3158, %v3318
    %v3320 = vpop.f32.mrf.mxu0
    %v3321 = vadd.f32 %v3160, %v3320
    %3322 = vdwg.mxu0
    %3323 = vmatprep.subr.mxu0 %v2711
    %3324 = vmatpush1.msra.mxu0 %v2710
    %3325 = vmatprep.subr.mxu0 %v2709
    %3326 = vmatpush1.msra.mxu0 %v2708
    %3327 = vmatprep.subr.mxu0 %v2707
    %3328 = vmatpush1.msra.mxu0 %v2706
    %3329 = vmatprep.subr.mxu0 %v2705
    %3330 = vmatpush1.msra.mxu0 %v2704
    %3331 = vmatprep.subr.mxu0 %v2703
    %3332 = vmatpush1.msra.mxu0 %v2702
    %3333 = vmatprep.subr.mxu0 %v2701
    %3334 = vmatpush1.msra.mxu0 %v2700
    %3335 = vmatprep.subr.mxu0 %v2699
    %3336 = vmatpush1.msra.mxu0 %v2698
    %3337 = vmatprep.subr.mxu0 %v2697
    %3338 = vmatpush1.msra.mxu0 %v2696
    %3339 = vmatprep.subr.mxu0 %v2695
    %3340 = vmatpush1.msra.mxu0 %v2694
    %3341 = vmatprep.subr.mxu0 %v2693
    %3342 = vmatpush1.msra.mxu0 %v2692
    %3343 = vmatprep.subr.mxu0 %v2691
    %3344 = vmatpush1.msra.mxu0 %v2690
    %3345 = vmatprep.subr.mxu0 %v2689
    %3346 = vmatpush1.msra.mxu0 %v2688
    %3347 = vmatprep.subr.mxu0 %v2687
    %3348 = vmatpush1.msra.mxu0 %v2686
    %3349 = vmatprep.subr.mxu0 %v2685
    %3350 = vmatpush1.msra.mxu0 %v2684
    %3351 = vmatprep.subr.mxu0 %v2683
    %3352 = vmatpush1.msra.mxu0 %v2682
    %3353 = vmatprep.subr.mxu0 %v2681
    %3354 = vmatpush1.msra.mxu0 %v2680
    %3355 = vmatprep.subr.mxu0 %v2743
    %3356 = vmatpush2.msra.mxu0 %v2742
    %3357 = vmatprep.subr.mxu0 %v2741
    %3358 = vmatpush2.msra.mxu0 %v2740
    %3359 = vmatprep.subr.mxu0 %v2739
    %3360 = vmatpush2.msra.mxu0 %v2738
    %3361 = vmatprep.subr.mxu0 %v2737
    %3362 = vmatpush2.msra.mxu0 %v2736
    %3363 = vmatprep.subr.mxu0 %v2735
    %3364 = vmatpush2.msra.mxu0 %v2734
    %3365 = vmatprep.subr.mxu0 %v2733
    %3366 = vmatpush2.msra.mxu0 %v2732
    %3367 = vmatprep.subr.mxu0 %v2731
    %3368 = vmatpush2.msra.mxu0 %v2730
    %3369 = vmatprep.subr.mxu0 %v2729
    %3370 = vmatpush2.msra.mxu0 %v2728
    %3371 = vmatprep.subr.mxu0 %v2727
    %3372 = vmatpush2.msra.mxu0 %v2726
    %3373 = vmatprep.subr.mxu0 %v2725
    %3374 = vmatpush2.msra.mxu0 %v2724
    %3375 = vmatprep.subr.mxu0 %v2723
    %3376 = vmatpush2.msra.mxu0 %v2722
    %3377 = vmatprep.subr.mxu0 %v2721
    %3378 = vmatpush2.msra.mxu0 %v2720
    %3379 = vmatprep.subr.mxu0 %v2719
    %3380 = vmatpush2.msra.mxu0 %v2718
    %3381 = vmatprep.subr.mxu0 %v2717
    %3382 = vmatpush2.msra.mxu0 %v2716
    %3383 = vmatprep.subr.mxu0 %v2715
    %3384 = vmatpush2.msra.mxu0 %v2714
    %3385 = vmatprep.subr.mxu0 %v2713
    %3386 = vmatpush2.msra.mxu0 %v2712
    %3387 = vmatprep.mubr.f32.mxu0 %v83
    %3388 = vmatmul.mubr.f32.gmra.mxu0 %v82
    %v3389 = vpop.f32.mrf.mxu0
    %v3390 = vadd.f32 %v3229, %v3389
    %v3391 = vpop.f32.mrf.mxu0
    %v3392 = vadd.f32 %v3231, %v3391
    %3393 = vmatprep.mubr.f32.mxu0 %v85
    %3394 = vmatmul.mubr.f32.gmra.mxu0 %v84
    %v3395 = vpop.f32.mrf.mxu0
    %v3396 = vadd.f32 %v3235, %v3395
    %v3397 = vpop.f32.mrf.mxu0
    %v3398 = vadd.f32 %v3237, %v3397
    %3399 = vmatprep.mubr.f32.mxu0 %v87
    %3400 = vmatmul.mubr.f32.gmra.mxu0 %v86
    %v3401 = vpop.f32.mrf.mxu0
    %v3402 = vadd.f32 %v3241, %v3401
    %v3403 = vpop.f32.mrf.mxu0
    %v3404 = vadd.f32 %v3243, %v3403
    %3405 = vmatprep.mubr.f32.mxu0 %v89
    %3406 = vmatmul.mubr.f32.gmra.mxu0 %v88
    %v3407 = vpop.f32.mrf.mxu0
    %v3408 = vadd.f32 %v3247, %v3407
    %v3409 = vpop.f32.mrf.mxu0
    %v3410 = vadd.f32 %v3249, %v3409
    %3411 = vmatprep.mubr.f32.mxu0 %v91
    %3412 = vmatmul.mubr.f32.gmra.mxu0 %v90
    %v3413 = vpop.f32.mrf.mxu0
    %v3414 = vadd.f32 %v3253, %v3413
    %v3415 = vpop.f32.mrf.mxu0
    %v3416 = vadd.f32 %v3255, %v3415
    %3417 = vmatprep.mubr.f32.mxu0 %v93
    %3418 = vmatmul.mubr.f32.gmra.mxu0 %v92
    %v3419 = vpop.f32.mrf.mxu0
    %v3420 = vadd.f32 %v3259, %v3419
    %v3421 = vpop.f32.mrf.mxu0
    %v3422 = vadd.f32 %v3261, %v3421
    %3423 = vmatprep.mubr.f32.mxu0 %v95
    %3424 = vmatmul.mubr.f32.gmra.mxu0 %v94
    %v3425 = vpop.f32.mrf.mxu0
    %v3426 = vadd.f32 %v3265, %v3425
    %v3427 = vpop.f32.mrf.mxu0
    %v3428 = vadd.f32 %v3267, %v3427
    %3429 = vmatprep.mubr.f32.mxu0 %v97
    %3430 = vmatmul.mubr.f32.gmra.mxu0 %v96
    %v3431 = vpop.f32.mrf.mxu0
    %v3432 = vadd.f32 %v3271, %v3431
    %v3433 = vpop.f32.mrf.mxu0
    %v3434 = vadd.f32 %v3273, %v3433
    %3435 = vmatprep.mubr.f32.mxu0 %v99
    %3436 = vmatmul.mubr.f32.gmra.mxu0 %v98
    %v3437 = vpop.f32.mrf.mxu0
    %v3438 = vadd.f32 %v3277, %v3437
    %v3439 = vpop.f32.mrf.mxu0
    %v3440 = vadd.f32 %v3279, %v3439
    %3441 = vmatprep.mubr.f32.mxu0 %v101
    %3442 = vmatmul.mubr.f32.gmra.mxu0 %v100
    %v3443 = vpop.f32.mrf.mxu0
    %v3444 = vadd.f32 %v3283, %v3443
    %v3445 = vpop.f32.mrf.mxu0
    %v3446 = vadd.f32 %v3285, %v3445
    %3447 = vmatprep.mubr.f32.mxu0 %v103
    %3448 = vmatmul.mubr.f32.gmra.mxu0 %v102
    %v3449 = vpop.f32.mrf.mxu0
    %v3450 = vadd.f32 %v3289, %v3449
    %v3451 = vpop.f32.mrf.mxu0
    %v3452 = vadd.f32 %v3291, %v3451
    %3453 = vmatprep.mubr.f32.mxu0 %v105
    %3454 = vmatmul.mubr.f32.gmra.mxu0 %v104
    %v3455 = vpop.f32.mrf.mxu0
    %v3456 = vadd.f32 %v3295, %v3455
    %v3457 = vpop.f32.mrf.mxu0
    %v3458 = vadd.f32 %v3297, %v3457
    %3459 = vmatprep.mubr.f32.mxu0 %v107
    %3460 = vmatmul.mubr.f32.gmra.mxu0 %v106
    %v3461 = vpop.f32.mrf.mxu0
    %v3462 = vadd.f32 %v3301, %v3461
    %v3463 = vpop.f32.mrf.mxu0
    %v3464 = vadd.f32 %v3303, %v3463
    %3465 = vmatprep.mubr.f32.mxu0 %v109
    %3466 = vmatmul.mubr.f32.gmra.mxu0 %v108
    %v3467 = vpop.f32.mrf.mxu0
    %v3468 = vadd.f32 %v3307, %v3467
    %v3469 = vpop.f32.mrf.mxu0
    %v3470 = vadd.f32 %v3309, %v3469
    %3471 = vmatprep.mubr.f32.mxu0 %v111
    %3472 = vmatmul.mubr.f32.gmra.mxu0 %v110
    %v3473 = vpop.f32.mrf.mxu0
    %v3474 = vadd.f32 %v3313, %v3473
    %v3475 = vpop.f32.mrf.mxu0
    %v3476 = vadd.f32 %v3315, %v3475
    %3477 = vmatprep.mubr.f32.mxu0 %v113
    %3478 = vmatmul.mubr.f32.gmra.mxu0 %v112
    %v3479 = vpop.f32.mrf.mxu0
    %v3480 = vadd.f32 %v3319, %v3479
    %v3481 = vpop.f32.mrf.mxu0
    %v3482 = vadd.f32 %v3321, %v3481
    %3483 = vdwg.mxu0
    %3484 = vmatprep.subr.mxu0 %v2775
    %3485 = vmatpush1.msra.mxu0 %v2774
    %3486 = vmatprep.subr.mxu0 %v2773
    %3487 = vmatpush1.msra.mxu0 %v2772
    %3488 = vmatprep.subr.mxu0 %v2771
    %3489 = vmatpush1.msra.mxu0 %v2770
    %3490 = vmatprep.subr.mxu0 %v2769
    %3491 = vmatpush1.msra.mxu0 %v2768
    %3492 = vmatprep.subr.mxu0 %v2767
    %3493 = vmatpush1.msra.mxu0 %v2766
    %3494 = vmatprep.subr.mxu0 %v2765
    %3495 = vmatpush1.msra.mxu0 %v2764
    %3496 = vmatprep.subr.mxu0 %v2763
    %3497 = vmatpush1.msra.mxu0 %v2762
    %3498 = vmatprep.subr.mxu0 %v2761
    %3499 = vmatpush1.msra.mxu0 %v2760
    %3500 = vmatprep.subr.mxu0 %v2759
    %3501 = vmatpush1.msra.mxu0 %v2758
    %3502 = vmatprep.subr.mxu0 %v2757
    %3503 = vmatpush1.msra.mxu0 %v2756
    %3504 = vmatprep.subr.mxu0 %v2755
    %3505 = vmatpush1.msra.mxu0 %v2754
    %3506 = vmatprep.subr.mxu0 %v2753
    %3507 = vmatpush1.msra.mxu0 %v2752
    %3508 = vmatprep.subr.mxu0 %v2751
    %3509 = vmatpush1.msra.mxu0 %v2750
    %3510 = vmatprep.subr.mxu0 %v2749
    %3511 = vmatpush1.msra.mxu0 %v2748
    %3512 = vmatprep.subr.mxu0 %v2747
    %3513 = vmatpush1.msra.mxu0 %v2746
    %3514 = vmatprep.subr.mxu0 %v2745
    %3515 = vmatpush1.msra.mxu0 %v2744
    %3516 = vmatprep.subr.mxu0 %v2807
    %3517 = vmatpush2.msra.mxu0 %v2806
    %3518 = vmatprep.subr.mxu0 %v2805
    %3519 = vmatpush2.msra.mxu0 %v2804
    %3520 = vmatprep.subr.mxu0 %v2803
    %3521 = vmatpush2.msra.mxu0 %v2802
    %3522 = vmatprep.subr.mxu0 %v2801
    %3523 = vmatpush2.msra.mxu0 %v2800
    %3524 = vmatprep.subr.mxu0 %v2799
    %3525 = vmatpush2.msra.mxu0 %v2798
    %3526 = vmatprep.subr.mxu0 %v2797
    %3527 = vmatpush2.msra.mxu0 %v2796
    %3528 = vmatprep.subr.mxu0 %v2795
    %3529 = vmatpush2.msra.mxu0 %v2794
    %3530 = vmatprep.subr.mxu0 %v2793
    %3531 = vmatpush2.msra.mxu0 %v2792
    %3532 = vmatprep.subr.mxu0 %v2791
    %3533 = vmatpush2.msra.mxu0 %v2790
    %3534 = vmatprep.subr.mxu0 %v2789
    %3535 = vmatpush2.msra.mxu0 %v2788
    %3536 = vmatprep.subr.mxu0 %v2787
    %3537 = vmatpush2.msra.mxu0 %v2786
    %3538 = vmatprep.subr.mxu0 %v2785
    %3539 = vmatpush2.msra.mxu0 %v2784
    %3540 = vmatprep.subr.mxu0 %v2783
    %3541 = vmatpush2.msra.mxu0 %v2782
    %3542 = vmatprep.subr.mxu0 %v2781
    %3543 = vmatpush2.msra.mxu0 %v2780
    %3544 = vmatprep.subr.mxu0 %v2779
    %3545 = vmatpush2.msra.mxu0 %v2778
    %3546 = vmatprep.subr.mxu0 %v2777
    %3547 = vmatpush2.msra.mxu0 %v2776
    %3548 = vmatprep.mubr.f32.mxu0 %v2392
    %3549 = vmatmul.mubr.f32.gmra.mxu0 %v2391
    %v3550 = vpop.f32.mrf.mxu0
    %v3551 = vadd.f32 %v3390, %v3550
    %v3552 = vpop.f32.mrf.mxu0
    %v3553 = vadd.f32 %v3392, %v3552
    %3554 = vmatprep.mubr.f32.mxu0 %v2394
    %3555 = vmatmul.mubr.f32.gmra.mxu0 %v2393
    %v3556 = vpop.f32.mrf.mxu0
    %v3557 = vadd.f32 %v3396, %v3556
    %v3558 = vpop.f32.mrf.mxu0
    %v3559 = vadd.f32 %v3398, %v3558
    %3560 = vmatprep.mubr.f32.mxu0 %v2396
    %3561 = vmatmul.mubr.f32.gmra.mxu0 %v2395
    %v3562 = vpop.f32.mrf.mxu0
    %v3563 = vadd.f32 %v3402, %v3562
    %v3564 = vpop.f32.mrf.mxu0
    %v3565 = vadd.f32 %v3404, %v3564
    %3566 = vmatprep.mubr.f32.mxu0 %v2398
    %3567 = vmatmul.mubr.f32.gmra.mxu0 %v2397
    %v3568 = vpop.f32.mrf.mxu0
    %v3569 = vadd.f32 %v3408, %v3568
    %v3570 = vpop.f32.mrf.mxu0
    %v3571 = vadd.f32 %v3410, %v3570
    %3572 = vmatprep.mubr.f32.mxu0 %v2400
    %3573 = vmatmul.mubr.f32.gmra.mxu0 %v2399
    %v3574 = vpop.f32.mrf.mxu0
    %v3575 = vadd.f32 %v3414, %v3574
    %v3576 = vpop.f32.mrf.mxu0
    %v3577 = vadd.f32 %v3416, %v3576
    %3578 = vmatprep.mubr.f32.mxu0 %v2402
    %3579 = vmatmul.mubr.f32.gmra.mxu0 %v2401
    %v3580 = vpop.f32.mrf.mxu0
    %v3581 = vadd.f32 %v3420, %v3580
    %v3582 = vpop.f32.mrf.mxu0
    %v3583 = vadd.f32 %v3422, %v3582
    %3584 = vmatprep.mubr.f32.mxu0 %v2404
    %3585 = vmatmul.mubr.f32.gmra.mxu0 %v2403
    %v3586 = vpop.f32.mrf.mxu0
    %v3587 = vadd.f32 %v3426, %v3586
    %v3588 = vpop.f32.mrf.mxu0
    %v3589 = vadd.f32 %v3428, %v3588
    %3590 = vmatprep.mubr.f32.mxu0 %v2406
    %3591 = vmatmul.mubr.f32.gmra.mxu0 %v2405
    %v3592 = vpop.f32.mrf.mxu0
    %v3593 = vadd.f32 %v3432, %v3592
    %v3594 = vpop.f32.mrf.mxu0
    %v3595 = vadd.f32 %v3434, %v3594
    %3596 = vmatprep.mubr.f32.mxu0 %v2408
    %3597 = vmatmul.mubr.f32.gmra.mxu0 %v2407
    %v3598 = vpop.f32.mrf.mxu0
    %v3599 = vadd.f32 %v3438, %v3598
    %v3600 = vpop.f32.mrf.mxu0
    %v3601 = vadd.f32 %v3440, %v3600
    %3602 = vmatprep.mubr.f32.mxu0 %v2410
    %3603 = vmatmul.mubr.f32.gmra.mxu0 %v2409
    %v3604 = vpop.f32.mrf.mxu0
    %v3605 = vadd.f32 %v3444, %v3604
    %v3606 = vpop.f32.mrf.mxu0
    %v3607 = vadd.f32 %v3446, %v3606
    %3608 = vmatprep.mubr.f32.mxu0 %v2412
    %3609 = vmatmul.mubr.f32.gmra.mxu0 %v2411
    %v3610 = vpop.f32.mrf.mxu0
    %v3611 = vadd.f32 %v3450, %v3610
    %v3612 = vpop.f32.mrf.mxu0
    %v3613 = vadd.f32 %v3452, %v3612
    %3614 = vmatprep.mubr.f32.mxu0 %v2414
    %3615 = vmatmul.mubr.f32.gmra.mxu0 %v2413
    %v3616 = vpop.f32.mrf.mxu0
    %v3617 = vadd.f32 %v3456, %v3616
    %v3618 = vpop.f32.mrf.mxu0
    %v3619 = vadd.f32 %v3458, %v3618
    %3620 = vmatprep.mubr.f32.mxu0 %v2416
    %3621 = vmatmul.mubr.f32.gmra.mxu0 %v2415
    %v3622 = vpop.f32.mrf.mxu0
    %v3623 = vadd.f32 %v3462, %v3622
    %v3624 = vpop.f32.mrf.mxu0
    %v3625 = vadd.f32 %v3464, %v3624
    %3626 = vmatprep.mubr.f32.mxu0 %v2418
    %3627 = vmatmul.mubr.f32.gmra.mxu0 %v2417
    %v3628 = vpop.f32.mrf.mxu0
    %v3629 = vadd.f32 %v3468, %v3628
    %v3630 = vpop.f32.mrf.mxu0
    %v3631 = vadd.f32 %v3470, %v3630
    %3632 = vmatprep.mubr.f32.mxu0 %v2420
    %3633 = vmatmul.mubr.f32.gmra.mxu0 %v2419
    %v3634 = vpop.f32.mrf.mxu0
    %v3635 = vadd.f32 %v3474, %v3634
    %v3636 = vpop.f32.mrf.mxu0
    %v3637 = vadd.f32 %v3476, %v3636
    %3638 = vmatprep.mubr.f32.mxu0 %v2422
    %3639 = vmatmul.mubr.f32.gmra.mxu0 %v2421
    %v3640 = vpop.f32.mrf.mxu0
    %v3641 = vadd.f32 %v3480, %v3640
    %v3642 = vpop.f32.mrf.mxu0
    %v3643 = vadd.f32 %v3482, %v3642
    %3644 = vdwg.mxu0
    %s3645 = scalar_lea.vmem [#allocation8], 512
    %v3646 = vld [vmem:[%s3645] sm:$0xff]
    %v3647 = vld [vmem:[%s3645 + $0x8] sm:$0xff]
    %v3648 = vld [vmem:[%s3645 + $0x10] sm:$0xff]
    %v3649 = vld [vmem:[%s3645 + $0x18] sm:$0xff]
    %v3650 = vld [vmem:[%s3645 + $0x20] sm:$0xff]
    %v3651 = vld [vmem:[%s3645 + $0x28] sm:$0xff]
    %v3652 = vld [vmem:[%s3645 + $0x30] sm:$0xff]
    %v3653 = vld [vmem:[%s3645 + $0x38] sm:$0xff]
    %v3654 = vld [vmem:[%s3645 + $0x40] sm:$0xff]
    %v3655 = vld [vmem:[%s3645 + $0x48] sm:$0xff]
    %v3656 = vld [vmem:[%s3645 + $0x50] sm:$0xff]
    %v3657 = vld [vmem:[%s3645 + $0x58] sm:$0xff]
    %v3658 = vld [vmem:[%s3645 + $0x60] sm:$0xff]
    %v3659 = vld [vmem:[%s3645 + $0x68] sm:$0xff]
    %v3660 = vld [vmem:[%s3645 + $0x70] sm:$0xff]
    %v3661 = vld [vmem:[%s3645 + $0x78] sm:$0xff]
    %v3662 = vld [vmem:[%s3645 + $0x80] sm:$0xff]
    %v3663 = vld [vmem:[%s3645 + $0x88] sm:$0xff]
    %v3664 = vld [vmem:[%s3645 + $0x90] sm:$0xff]
    %v3665 = vld [vmem:[%s3645 + $0x98] sm:$0xff]
    %v3666 = vld [vmem:[%s3645 + $0xa0] sm:$0xff]
    %v3667 = vld [vmem:[%s3645 + $0xa8] sm:$0xff]
    %v3668 = vld [vmem:[%s3645 + $0xb0] sm:$0xff]
    %v3669 = vld [vmem:[%s3645 + $0xb8] sm:$0xff]
    %v3670 = vld [vmem:[%s3645 + $0xc0] sm:$0xff]
    %v3671 = vld [vmem:[%s3645 + $0xc8] sm:$0xff]
    %v3672 = vld [vmem:[%s3645 + $0xd0] sm:$0xff]
    %v3673 = vld [vmem:[%s3645 + $0xd8] sm:$0xff]
    %v3674 = vld [vmem:[%s3645 + $0xe0] sm:$0xff]
    %v3675 = vld [vmem:[%s3645 + $0xe8] sm:$0xff]
    %v3676 = vld [vmem:[%s3645 + $0xf0] sm:$0xff]
    %v3677 = vld [vmem:[%s3645 + $0xf8] sm:$0xff]
    %v3678 = vld [vmem:[%s3645 + $0x100] sm:$0xff]
    %v3679 = vld [vmem:[%s3645 + $0x108] sm:$0xff]
    %v3680 = vld [vmem:[%s3645 + $0x110] sm:$0xff]
    %v3681 = vld [vmem:[%s3645 + $0x118] sm:$0xff]
    %v3682 = vld [vmem:[%s3645 + $0x120] sm:$0xff]
    %v3683 = vld [vmem:[%s3645 + $0x128] sm:$0xff]
    %v3684 = vld [vmem:[%s3645 + $0x130] sm:$0xff]
    %v3685 = vld [vmem:[%s3645 + $0x138] sm:$0xff]
    %v3686 = vld [vmem:[%s3645 + $0x140] sm:$0xff]
    %v3687 = vld [vmem:[%s3645 + $0x148] sm:$0xff]
    %v3688 = vld [vmem:[%s3645 + $0x150] sm:$0xff]
    %v3689 = vld [vmem:[%s3645 + $0x158] sm:$0xff]
    %v3690 = vld [vmem:[%s3645 + $0x160] sm:$0xff]
    %v3691 = vld [vmem:[%s3645 + $0x168] sm:$0xff]
    %v3692 = vld [vmem:[%s3645 + $0x170] sm:$0xff]
    %v3693 = vld [vmem:[%s3645 + $0x178] sm:$0xff]
    %v3694 = vld [vmem:[%s3645 + $0x180] sm:$0xff]
    %v3695 = vld [vmem:[%s3645 + $0x188] sm:$0xff]
    %v3696 = vld [vmem:[%s3645 + $0x190] sm:$0xff]
    %v3697 = vld [vmem:[%s3645 + $0x198] sm:$0xff]
    %v3698 = vld [vmem:[%s3645 + $0x1a0] sm:$0xff]
    %v3699 = vld [vmem:[%s3645 + $0x1a8] sm:$0xff]
    %v3700 = vld [vmem:[%s3645 + $0x1b0] sm:$0xff]
    %v3701 = vld [vmem:[%s3645 + $0x1b8] sm:$0xff]
    %v3702 = vld [vmem:[%s3645 + $0x1c0] sm:$0xff]
    %v3703 = vld [vmem:[%s3645 + $0x1c8] sm:$0xff]
    %v3704 = vld [vmem:[%s3645 + $0x1d0] sm:$0xff]
    %v3705 = vld [vmem:[%s3645 + $0x1d8] sm:$0xff]
    %v3706 = vld [vmem:[%s3645 + $0x1e0] sm:$0xff]
    %v3707 = vld [vmem:[%s3645 + $0x1e8] sm:$0xff]
    %v3708 = vld [vmem:[%s3645 + $0x1f0] sm:$0xff]
    %v3709 = vld [vmem:[%s3645 + $0x1f8] sm:$0xff]
    %v3710 = vunpack.c.l.bf16 %v3646
    %v3711 = vunpack.c.h.bf16 %v3646
    %v3712 = vunpack.c.l.bf16 %v3647
    %v3713 = vunpack.c.h.bf16 %v3647
    %v3714 = vunpack.c.l.bf16 %v3648
    %v3715 = vunpack.c.h.bf16 %v3648
    %v3716 = vunpack.c.l.bf16 %v3649
    %v3717 = vunpack.c.h.bf16 %v3649
    %v3718 = vunpack.c.l.bf16 %v3650
    %v3719 = vunpack.c.h.bf16 %v3650
    %v3720 = vunpack.c.l.bf16 %v3651
    %v3721 = vunpack.c.h.bf16 %v3651
    %v3722 = vunpack.c.l.bf16 %v3652
    %v3723 = vunpack.c.h.bf16 %v3652
    %v3724 = vunpack.c.l.bf16 %v3653
    %v3725 = vunpack.c.h.bf16 %v3653
    %v3726 = vunpack.c.l.bf16 %v3654
    %v3727 = vunpack.c.h.bf16 %v3654
    %v3728 = vunpack.c.l.bf16 %v3655
    %v3729 = vunpack.c.h.bf16 %v3655
    %v3730 = vunpack.c.l.bf16 %v3656
    %v3731 = vunpack.c.h.bf16 %v3656
    %v3732 = vunpack.c.l.bf16 %v3657
    %v3733 = vunpack.c.h.bf16 %v3657
    %v3734 = vunpack.c.l.bf16 %v3658
    %v3735 = vunpack.c.h.bf16 %v3658
    %v3736 = vunpack.c.l.bf16 %v3659
    %v3737 = vunpack.c.h.bf16 %v3659
    %v3738 = vunpack.c.l.bf16 %v3660
    %v3739 = vunpack.c.h.bf16 %v3660
    %v3740 = vunpack.c.l.bf16 %v3661
    %v3741 = vunpack.c.h.bf16 %v3661
    %v3742 = vunpack.c.l.bf16 %v3662
    %v3743 = vunpack.c.h.bf16 %v3662
    %v3744 = vunpack.c.l.bf16 %v3663
    %v3745 = vunpack.c.h.bf16 %v3663
    %v3746 = vunpack.c.l.bf16 %v3664
    %v3747 = vunpack.c.h.bf16 %v3664
    %v3748 = vunpack.c.l.bf16 %v3665
    %v3749 = vunpack.c.h.bf16 %v3665
    %v3750 = vunpack.c.l.bf16 %v3666
    %v3751 = vunpack.c.h.bf16 %v3666
    %v3752 = vunpack.c.l.bf16 %v3667
    %v3753 = vunpack.c.h.bf16 %v3667
    %v3754 = vunpack.c.l.bf16 %v3668
    %v3755 = vunpack.c.h.bf16 %v3668
    %v3756 = vunpack.c.l.bf16 %v3669
    %v3757 = vunpack.c.h.bf16 %v3669
    %v3758 = vunpack.c.l.bf16 %v3670
    %v3759 = vunpack.c.h.bf16 %v3670
    %v3760 = vunpack.c.l.bf16 %v3671
    %v3761 = vunpack.c.h.bf16 %v3671
    %v3762 = vunpack.c.l.bf16 %v3672
    %v3763 = vunpack.c.h.bf16 %v3672
    %v3764 = vunpack.c.l.bf16 %v3673
    %v3765 = vunpack.c.h.bf16 %v3673
    %v3766 = vunpack.c.l.bf16 %v3674
    %v3767 = vunpack.c.h.bf16 %v3674
    %v3768 = vunpack.c.l.bf16 %v3675
    %v3769 = vunpack.c.h.bf16 %v3675
    %v3770 = vunpack.c.l.bf16 %v3676
    %v3771 = vunpack.c.h.bf16 %v3676
    %v3772 = vunpack.c.l.bf16 %v3677
    %v3773 = vunpack.c.h.bf16 %v3677
    %v3774 = vunpack.c.l.bf16 %v3678
    %v3775 = vunpack.c.h.bf16 %v3678
    %v3776 = vunpack.c.l.bf16 %v3679
    %v3777 = vunpack.c.h.bf16 %v3679
    %v3778 = vunpack.c.l.bf16 %v3680
    %v3779 = vunpack.c.h.bf16 %v3680
    %v3780 = vunpack.c.l.bf16 %v3681
    %v3781 = vunpack.c.h.bf16 %v3681
    %v3782 = vunpack.c.l.bf16 %v3682
    %v3783 = vunpack.c.h.bf16 %v3682
    %v3784 = vunpack.c.l.bf16 %v3683
    %v3785 = vunpack.c.h.bf16 %v3683
    %v3786 = vunpack.c.l.bf16 %v3684
    %v3787 = vunpack.c.h.bf16 %v3684
    %v3788 = vunpack.c.l.bf16 %v3685
    %v3789 = vunpack.c.h.bf16 %v3685
    %v3790 = vunpack.c.l.bf16 %v3686
    %v3791 = vunpack.c.h.bf16 %v3686
    %v3792 = vunpack.c.l.bf16 %v3687
    %v3793 = vunpack.c.h.bf16 %v3687
    %v3794 = vunpack.c.l.bf16 %v3688
    %v3795 = vunpack.c.h.bf16 %v3688
    %v3796 = vunpack.c.l.bf16 %v3689
    %v3797 = vunpack.c.h.bf16 %v3689
    %v3798 = vunpack.c.l.bf16 %v3690
    %v3799 = vunpack.c.h.bf16 %v3690
    %v3800 = vunpack.c.l.bf16 %v3691
    %v3801 = vunpack.c.h.bf16 %v3691
    %v3802 = vunpack.c.l.bf16 %v3692
    %v3803 = vunpack.c.h.bf16 %v3692
    %v3804 = vunpack.c.l.bf16 %v3693
    %v3805 = vunpack.c.h.bf16 %v3693
    %v3806 = vunpack.c.l.bf16 %v3694
    %v3807 = vunpack.c.h.bf16 %v3694
    %v3808 = vunpack.c.l.bf16 %v3695
    %v3809 = vunpack.c.h.bf16 %v3695
    %v3810 = vunpack.c.l.bf16 %v3696
    %v3811 = vunpack.c.h.bf16 %v3696
    %v3812 = vunpack.c.l.bf16 %v3697
    %v3813 = vunpack.c.h.bf16 %v3697
    %v3814 = vunpack.c.l.bf16 %v3698
    %v3815 = vunpack.c.h.bf16 %v3698
    %v3816 = vunpack.c.l.bf16 %v3699
    %v3817 = vunpack.c.h.bf16 %v3699
    %v3818 = vunpack.c.l.bf16 %v3700
    %v3819 = vunpack.c.h.bf16 %v3700
    %v3820 = vunpack.c.l.bf16 %v3701
    %v3821 = vunpack.c.h.bf16 %v3701
    %v3822 = vunpack.c.l.bf16 %v3702
    %v3823 = vunpack.c.h.bf16 %v3702
    %v3824 = vunpack.c.l.bf16 %v3703
    %v3825 = vunpack.c.h.bf16 %v3703
    %v3826 = vunpack.c.l.bf16 %v3704
    %v3827 = vunpack.c.h.bf16 %v3704
    %v3828 = vunpack.c.l.bf16 %v3705
    %v3829 = vunpack.c.h.bf16 %v3705
    %v3830 = vunpack.c.l.bf16 %v3706
    %v3831 = vunpack.c.h.bf16 %v3706
    %v3832 = vunpack.c.l.bf16 %v3707
    %v3833 = vunpack.c.h.bf16 %v3707
    %v3834 = vunpack.c.l.bf16 %v3708
    %v3835 = vunpack.c.h.bf16 %v3708
    %v3836 = vunpack.c.l.bf16 %v3709
    %v3837 = vunpack.c.h.bf16 %v3709
    %3838 = vmatprep.subr.mxu0 %v3741
    %3839 = vmatpush1.msra.mxu0 %v3740
    %3840 = vmatprep.subr.mxu0 %v3739
    %3841 = vmatpush1.msra.mxu0 %v3738
    %3842 = vmatprep.subr.mxu0 %v3737
    %3843 = vmatpush1.msra.mxu0 %v3736
    %3844 = vmatprep.subr.mxu0 %v3735
    %3845 = vmatpush1.msra.mxu0 %v3734
    %3846 = vmatprep.subr.mxu0 %v3733
    %3847 = vmatpush1.msra.mxu0 %v3732
    %3848 = vmatprep.subr.mxu0 %v3731
    %3849 = vmatpush1.msra.mxu0 %v3730
    %3850 = vmatprep.subr.mxu0 %v3729
    %3851 = vmatpush1.msra.mxu0 %v3728
    %3852 = vmatprep.subr.mxu0 %v3727
    %3853 = vmatpush1.msra.mxu0 %v3726
    %3854 = vmatprep.subr.mxu0 %v3725
    %3855 = vmatpush1.msra.mxu0 %v3724
    %3856 = vmatprep.subr.mxu0 %v3723
    %3857 = vmatpush1.msra.mxu0 %v3722
    %3858 = vmatprep.subr.mxu0 %v3721
    %3859 = vmatpush1.msra.mxu0 %v3720
    %3860 = vmatprep.subr.mxu0 %v3719
    %3861 = vmatpush1.msra.mxu0 %v3718
    %3862 = vmatprep.subr.mxu0 %v3717
    %3863 = vmatpush1.msra.mxu0 %v3716
    %3864 = vmatprep.subr.mxu0 %v3715
    %3865 = vmatpush1.msra.mxu0 %v3714
    %3866 = vmatprep.subr.mxu0 %v3713
    %3867 = vmatpush1.msra.mxu0 %v3712
    %3868 = vmatprep.subr.mxu0 %v3711
    %3869 = vmatpush1.msra.mxu0 %v3710
    %3870 = vmatprep.subr.mxu0 %v3773
    %3871 = vmatpush2.msra.mxu0 %v3772
    %3872 = vmatprep.subr.mxu0 %v3771
    %3873 = vmatpush2.msra.mxu0 %v3770
    %3874 = vmatprep.subr.mxu0 %v3769
    %3875 = vmatpush2.msra.mxu0 %v3768
    %3876 = vmatprep.subr.mxu0 %v3767
    %3877 = vmatpush2.msra.mxu0 %v3766
    %3878 = vmatprep.subr.mxu0 %v3765
    %3879 = vmatpush2.msra.mxu0 %v3764
    %3880 = vmatprep.subr.mxu0 %v3763
    %3881 = vmatpush2.msra.mxu0 %v3762
    %3882 = vmatprep.subr.mxu0 %v3761
    %3883 = vmatpush2.msra.mxu0 %v3760
    %3884 = vmatprep.subr.mxu0 %v3759
    %3885 = vmatpush2.msra.mxu0 %v3758
    %3886 = vmatprep.subr.mxu0 %v3757
    %3887 = vmatpush2.msra.mxu0 %v3756
    %3888 = vmatprep.subr.mxu0 %v3755
    %3889 = vmatpush2.msra.mxu0 %v3754
    %3890 = vmatprep.subr.mxu0 %v3753
    %3891 = vmatpush2.msra.mxu0 %v3752
    %3892 = vmatprep.subr.mxu0 %v3751
    %3893 = vmatpush2.msra.mxu0 %v3750
    %3894 = vmatprep.subr.mxu0 %v3749
    %3895 = vmatpush2.msra.mxu0 %v3748
    %3896 = vmatprep.subr.mxu0 %v3747
    %3897 = vmatpush2.msra.mxu0 %v3746
    %3898 = vmatprep.subr.mxu0 %v3745
    %3899 = vmatpush2.msra.mxu0 %v3744
    %3900 = vmatprep.subr.mxu0 %v3743
    %3901 = vmatpush2.msra.mxu0 %v3742
    %3902 = vmatprep.mubr.f32.mxu0 %v678
    %3903 = vmatmul.mubr.f32.gmra.mxu0 %v677
    %v3904 = vpop.f32.mrf.mxu0
    %v3905 = vadd.f32 0.0, %v3904
    %v3906 = vpop.f32.mrf.mxu0
    %v3907 = vadd.f32 0.0, %v3906
    %3908 = vmatprep.mubr.f32.mxu0 %v682
    %3909 = vmatmul.mubr.f32.gmra.mxu0 %v681
    %v3910 = vpop.f32.mrf.mxu0
    %v3911 = vadd.f32 0.0, %v3910
    %v3912 = vpop.f32.mrf.mxu0
    %v3913 = vadd.f32 0.0, %v3912
    %3914 = vmatprep.mubr.f32.mxu0 %v686
    %3915 = vmatmul.mubr.f32.gmra.mxu0 %v685
    %v3916 = vpop.f32.mrf.mxu0
    %v3917 = vadd.f32 0.0, %v3916
    %v3918 = vpop.f32.mrf.mxu0
    %v3919 = vadd.f32 0.0, %v3918
    %3920 = vmatprep.mubr.f32.mxu0 %v690
    %3921 = vmatmul.mubr.f32.gmra.mxu0 %v689
    %v3922 = vpop.f32.mrf.mxu0
    %v3923 = vadd.f32 0.0, %v3922
    %v3924 = vpop.f32.mrf.mxu0
    %v3925 = vadd.f32 0.0, %v3924
    %3926 = vmatprep.mubr.f32.mxu0 %v694
    %3927 = vmatmul.mubr.f32.gmra.mxu0 %v693
    %v3928 = vpop.f32.mrf.mxu0
    %v3929 = vadd.f32 0.0, %v3928
    %v3930 = vpop.f32.mrf.mxu0
    %v3931 = vadd.f32 0.0, %v3930
    %3932 = vmatprep.mubr.f32.mxu0 %v698
    %3933 = vmatmul.mubr.f32.gmra.mxu0 %v697
    %v3934 = vpop.f32.mrf.mxu0
    %v3935 = vadd.f32 0.0, %v3934
    %v3936 = vpop.f32.mrf.mxu0
    %v3937 = vadd.f32 0.0, %v3936
    %3938 = vmatprep.mubr.f32.mxu0 %v702
    %3939 = vmatmul.mubr.f32.gmra.mxu0 %v701
    %v3940 = vpop.f32.mrf.mxu0
    %v3941 = vadd.f32 0.0, %v3940
    %v3942 = vpop.f32.mrf.mxu0
    %v3943 = vadd.f32 0.0, %v3942
    %3944 = vmatprep.mubr.f32.mxu0 %v706
    %3945 = vmatmul.mubr.f32.gmra.mxu0 %v705
    %v3946 = vpop.f32.mrf.mxu0
    %v3947 = vadd.f32 0.0, %v3946
    %v3948 = vpop.f32.mrf.mxu0
    %v3949 = vadd.f32 0.0, %v3948
    %3950 = vmatprep.mubr.f32.mxu0 %v710
    %3951 = vmatmul.mubr.f32.gmra.mxu0 %v709
    %v3952 = vpop.f32.mrf.mxu0
    %v3953 = vadd.f32 0.0, %v3952
    %v3954 = vpop.f32.mrf.mxu0
    %v3955 = vadd.f32 0.0, %v3954
    %3956 = vmatprep.mubr.f32.mxu0 %v714
    %3957 = vmatmul.mubr.f32.gmra.mxu0 %v713
    %v3958 = vpop.f32.mrf.mxu0
    %v3959 = vadd.f32 0.0, %v3958
    %v3960 = vpop.f32.mrf.mxu0
    %v3961 = vadd.f32 0.0, %v3960
    %3962 = vmatprep.mubr.f32.mxu0 %v718
    %3963 = vmatmul.mubr.f32.gmra.mxu0 %v717
    %v3964 = vpop.f32.mrf.mxu0
    %v3965 = vadd.f32 0.0, %v3964
    %v3966 = vpop.f32.mrf.mxu0
    %v3967 = vadd.f32 0.0, %v3966
    %3968 = vmatprep.mubr.f32.mxu0 %v722
    %3969 = vmatmul.mubr.f32.gmra.mxu0 %v721
    %v3970 = vpop.f32.mrf.mxu0
    %v3971 = vadd.f32 0.0, %v3970
    %v3972 = vpop.f32.mrf.mxu0
    %v3973 = vadd.f32 0.0, %v3972
    %3974 = vmatprep.mubr.f32.mxu0 %v726
    %3975 = vmatmul.mubr.f32.gmra.mxu0 %v725
    %v3976 = vpop.f32.mrf.mxu0
    %v3977 = vadd.f32 0.0, %v3976
    %v3978 = vpop.f32.mrf.mxu0
    %v3979 = vadd.f32 0.0, %v3978
    %3980 = vmatprep.mubr.f32.mxu0 %v730
    %3981 = vmatmul.mubr.f32.gmra.mxu0 %v729
    %v3982 = vpop.f32.mrf.mxu0
    %v3983 = vadd.f32 0.0, %v3982
    %v3984 = vpop.f32.mrf.mxu0
    %v3985 = vadd.f32 0.0, %v3984
    %3986 = vmatprep.mubr.f32.mxu0 %v734
    %3987 = vmatmul.mubr.f32.gmra.mxu0 %v733
    %v3988 = vpop.f32.mrf.mxu0
    %v3989 = vadd.f32 0.0, %v3988
    %v3990 = vpop.f32.mrf.mxu0
    %v3991 = vadd.f32 0.0, %v3990
    %3992 = vmatprep.mubr.f32.mxu0 %v738
    %3993 = vmatmul.mubr.f32.gmra.mxu0 %v737
    %v3994 = vpop.f32.mrf.mxu0
    %v3995 = vadd.f32 0.0, %v3994
    %v3996 = vpop.f32.mrf.mxu0
    %v3997 = vadd.f32 0.0, %v3996
    %3998 = vdwg.mxu0
    %3999 = vmatprep.subr.mxu0 %v3805
    %4000 = vmatpush1.msra.mxu0 %v3804
    %4001 = vmatprep.subr.mxu0 %v3803
    %4002 = vmatpush1.msra.mxu0 %v3802
    %4003 = vmatprep.subr.mxu0 %v3801
    %4004 = vmatpush1.msra.mxu0 %v3800
    %4005 = vmatprep.subr.mxu0 %v3799
    %4006 = vmatpush1.msra.mxu0 %v3798
    %4007 = vmatprep.subr.mxu0 %v3797
    %4008 = vmatpush1.msra.mxu0 %v3796
    %4009 = vmatprep.subr.mxu0 %v3795
    %4010 = vmatpush1.msra.mxu0 %v3794
    %4011 = vmatprep.subr.mxu0 %v3793
    %4012 = vmatpush1.msra.mxu0 %v3792
    %4013 = vmatprep.subr.mxu0 %v3791
    %4014 = vmatpush1.msra.mxu0 %v3790
    %4015 = vmatprep.subr.mxu0 %v3789
    %4016 = vmatpush1.msra.mxu0 %v3788
    %4017 = vmatprep.subr.mxu0 %v3787
    %4018 = vmatpush1.msra.mxu0 %v3786
    %4019 = vmatprep.subr.mxu0 %v3785
    %4020 = vmatpush1.msra.mxu0 %v3784
    %4021 = vmatprep.subr.mxu0 %v3783
    %4022 = vmatpush1.msra.mxu0 %v3782
    %4023 = vmatprep.subr.mxu0 %v3781
    %4024 = vmatpush1.msra.mxu0 %v3780
    %4025 = vmatprep.subr.mxu0 %v3779
    %4026 = vmatpush1.msra.mxu0 %v3778
    %4027 = vmatprep.subr.mxu0 %v3777
    %4028 = vmatpush1.msra.mxu0 %v3776
    %4029 = vmatprep.subr.mxu0 %v3775
    %4030 = vmatpush1.msra.mxu0 %v3774
    %4031 = vmatprep.subr.mxu0 %v3837
    %4032 = vmatpush2.msra.mxu0 %v3836
    %4033 = vmatprep.subr.mxu0 %v3835
    %4034 = vmatpush2.msra.mxu0 %v3834
    %4035 = vmatprep.subr.mxu0 %v3833
    %4036 = vmatpush2.msra.mxu0 %v3832
    %4037 = vmatprep.subr.mxu0 %v3831
    %4038 = vmatpush2.msra.mxu0 %v3830
    %4039 = vmatprep.subr.mxu0 %v3829
    %4040 = vmatpush2.msra.mxu0 %v3828
    %4041 = vmatprep.subr.mxu0 %v3827
    %4042 = vmatpush2.msra.mxu0 %v3826
    %4043 = vmatprep.subr.mxu0 %v3825
    %4044 = vmatpush2.msra.mxu0 %v3824
    %4045 = vmatprep.subr.mxu0 %v3823
    %4046 = vmatpush2.msra.mxu0 %v3822
    %4047 = vmatprep.subr.mxu0 %v3821
    %4048 = vmatpush2.msra.mxu0 %v3820
    %4049 = vmatprep.subr.mxu0 %v3819
    %4050 = vmatpush2.msra.mxu0 %v3818
    %4051 = vmatprep.subr.mxu0 %v3817
    %4052 = vmatpush2.msra.mxu0 %v3816
    %4053 = vmatprep.subr.mxu0 %v3815
    %4054 = vmatpush2.msra.mxu0 %v3814
    %4055 = vmatprep.subr.mxu0 %v3813
    %4056 = vmatpush2.msra.mxu0 %v3812
    %4057 = vmatprep.subr.mxu0 %v3811
    %4058 = vmatpush2.msra.mxu0 %v3810
    %4059 = vmatprep.subr.mxu0 %v3809
    %4060 = vmatpush2.msra.mxu0 %v3808
    %4061 = vmatprep.subr.mxu0 %v3807
    %4062 = vmatpush2.msra.mxu0 %v3806
    %4063 = vmatprep.mubr.f32.mxu0 %v2584
    %4064 = vmatmul.mubr.f32.gmra.mxu0 %v2583
    %v4065 = vpop.f32.mrf.mxu0
    %v4066 = vadd.f32 %v3905, %v4065
    %v4067 = vpop.f32.mrf.mxu0
    %v4068 = vadd.f32 %v3907, %v4067
    %4069 = vmatprep.mubr.f32.mxu0 %v2586
    %4070 = vmatmul.mubr.f32.gmra.mxu0 %v2585
    %v4071 = vpop.f32.mrf.mxu0
    %v4072 = vadd.f32 %v3911, %v4071
    %v4073 = vpop.f32.mrf.mxu0
    %v4074 = vadd.f32 %v3913, %v4073
    %4075 = vmatprep.mubr.f32.mxu0 %v2588
    %4076 = vmatmul.mubr.f32.gmra.mxu0 %v2587
    %v4077 = vpop.f32.mrf.mxu0
    %v4078 = vadd.f32 %v3917, %v4077
    %v4079 = vpop.f32.mrf.mxu0
    %v4080 = vadd.f32 %v3919, %v4079
    %4081 = vmatprep.mubr.f32.mxu0 %v2590
    %4082 = vmatmul.mubr.f32.gmra.mxu0 %v2589
    %v4083 = vpop.f32.mrf.mxu0
    %v4084 = vadd.f32 %v3923, %v4083
    %v4085 = vpop.f32.mrf.mxu0
    %v4086 = vadd.f32 %v3925, %v4085
    %4087 = vmatprep.mubr.f32.mxu0 %v2592
    %4088 = vmatmul.mubr.f32.gmra.mxu0 %v2591
    %v4089 = vpop.f32.mrf.mxu0
    %v4090 = vadd.f32 %v3929, %v4089
    %v4091 = vpop.f32.mrf.mxu0
    %v4092 = vadd.f32 %v3931, %v4091
    %4093 = vmatprep.mubr.f32.mxu0 %v2594
    %4094 = vmatmul.mubr.f32.gmra.mxu0 %v2593
    %v4095 = vpop.f32.mrf.mxu0
    %v4096 = vadd.f32 %v3935, %v4095
    %v4097 = vpop.f32.mrf.mxu0
    %v4098 = vadd.f32 %v3937, %v4097
    %4099 = vmatprep.mubr.f32.mxu0 %v2596
    %4100 = vmatmul.mubr.f32.gmra.mxu0 %v2595
    %v4101 = vpop.f32.mrf.mxu0
    %v4102 = vadd.f32 %v3941, %v4101
    %v4103 = vpop.f32.mrf.mxu0
    %v4104 = vadd.f32 %v3943, %v4103
    %4105 = vmatprep.mubr.f32.mxu0 %v2598
    %4106 = vmatmul.mubr.f32.gmra.mxu0 %v2597
    %v4107 = vpop.f32.mrf.mxu0
    %v4108 = vadd.f32 %v3947, %v4107
    %v4109 = vpop.f32.mrf.mxu0
    %v4110 = vadd.f32 %v3949, %v4109
    %4111 = vmatprep.mubr.f32.mxu0 %v2600
    %4112 = vmatmul.mubr.f32.gmra.mxu0 %v2599
    %v4113 = vpop.f32.mrf.mxu0
    %v4114 = vadd.f32 %v3953, %v4113
    %v4115 = vpop.f32.mrf.mxu0
    %v4116 = vadd.f32 %v3955, %v4115
    %4117 = vmatprep.mubr.f32.mxu0 %v2602
    %4118 = vmatmul.mubr.f32.gmra.mxu0 %v2601
    %v4119 = vpop.f32.mrf.mxu0
    %v4120 = vadd.f32 %v3959, %v4119
    %v4121 = vpop.f32.mrf.mxu0
    %v4122 = vadd.f32 %v3961, %v4121
    %4123 = vmatprep.mubr.f32.mxu0 %v2604
    %4124 = vmatmul.mubr.f32.gmra.mxu0 %v2603
    %v4125 = vpop.f32.mrf.mxu0
    %v4126 = vadd.f32 %v3965, %v4125
    %v4127 = vpop.f32.mrf.mxu0
    %v4128 = vadd.f32 %v3967, %v4127
    %4129 = vmatprep.mubr.f32.mxu0 %v2606
    %4130 = vmatmul.mubr.f32.gmra.mxu0 %v2605
    %v4131 = vpop.f32.mrf.mxu0
    %v4132 = vadd.f32 %v3971, %v4131
    %v4133 = vpop.f32.mrf.mxu0
    %v4134 = vadd.f32 %v3973, %v4133
    %4135 = vmatprep.mubr.f32.mxu0 %v2608
    %4136 = vmatmul.mubr.f32.gmra.mxu0 %v2607
    %v4137 = vpop.f32.mrf.mxu0
    %v4138 = vadd.f32 %v3977, %v4137
    %v4139 = vpop.f32.mrf.mxu0
    %v4140 = vadd.f32 %v3979, %v4139
    %4141 = vmatprep.mubr.f32.mxu0 %v2610
    %4142 = vmatmul.mubr.f32.gmra.mxu0 %v2609
    %v4143 = vpop.f32.mrf.mxu0
    %v4144 = vadd.f32 %v3983, %v4143
    %v4145 = vpop.f32.mrf.mxu0
    %v4146 = vadd.f32 %v3985, %v4145
    %4147 = vmatprep.mubr.f32.mxu0 %v2612
    %4148 = vmatmul.mubr.f32.gmra.mxu0 %v2611
    %v4149 = vpop.f32.mrf.mxu0
    %v4150 = vadd.f32 %v3989, %v4149
    %v4151 = vpop.f32.mrf.mxu0
    %v4152 = vadd.f32 %v3991, %v4151
    %4153 = vmatprep.mubr.f32.mxu0 %v2614
    %4154 = vmatmul.mubr.f32.gmra.mxu0 %v2613
    %v4155 = vpop.f32.mrf.mxu0
    %v4156 = vadd.f32 %v3995, %v4155
    %v4157 = vpop.f32.mrf.mxu0
    %v4158 = vadd.f32 %v3997, %v4157
    %4159 = vdwg.mxu0
    %v4160 = vadd.f32 %v3551, %v4066
    %v4161 = vadd.f32 %v3553, %v4068
    %v4162 = vadd.f32 %v3557, %v4072
    %v4163 = vadd.f32 %v3559, %v4074
    %v4164 = vadd.f32 %v3563, %v4078
    %v4165 = vadd.f32 %v3565, %v4080
    %v4166 = vadd.f32 %v3569, %v4084
    %v4167 = vadd.f32 %v3571, %v4086
    %v4168 = vadd.f32 %v3575, %v4090
    %v4169 = vadd.f32 %v3577, %v4092
    %v4170 = vadd.f32 %v3581, %v4096
    %v4171 = vadd.f32 %v3583, %v4098
    %v4172 = vadd.f32 %v3587, %v4102
    %v4173 = vadd.f32 %v3589, %v4104
    %v4174 = vadd.f32 %v3593, %v4108
    %v4175 = vadd.f32 %v3595, %v4110
    %v4176 = vadd.f32 %v3599, %v4114
    %v4177 = vadd.f32 %v3601, %v4116
    %v4178 = vadd.f32 %v3605, %v4120
    %v4179 = vadd.f32 %v3607, %v4122
    %v4180 = vadd.f32 %v3611, %v4126
    %v4181 = vadd.f32 %v3613, %v4128
    %v4182 = vadd.f32 %v3617, %v4132
    %v4183 = vadd.f32 %v3619, %v4134
    %v4184 = vadd.f32 %v3623, %v4138
    %v4185 = vadd.f32 %v3625, %v4140
    %v4186 = vadd.f32 %v3629, %v4144
    %v4187 = vadd.f32 %v3631, %v4146
    %v4188 = vadd.f32 %v3635, %v4150
    %v4189 = vadd.f32 %v3637, %v4152
    %v4190 = vadd.f32 %v3641, %v4156
    %v4191 = vadd.f32 %v3643, %v4158
    %v4192 = vadd.f32 %v4160, %v2320
    %v4193 = vadd.f32 %v4161, %v2324
    %v4194 = vadd.f32 %v4162, %v2320
    %v4195 = vadd.f32 %v4163, %v2324
    %v4196 = vadd.f32 %v4164, %v2320
    %v4197 = vadd.f32 %v4165, %v2324
    %v4198 = vadd.f32 %v4166, %v2320
    %v4199 = vadd.f32 %v4167, %v2324
    %v4200 = vadd.f32 %v4168, %v2320
    %v4201 = vadd.f32 %v4169, %v2324
    %v4202 = vadd.f32 %v4170, %v2320
    %v4203 = vadd.f32 %v4171, %v2324
    %v4204 = vadd.f32 %v4172, %v2320
    %v4205 = vadd.f32 %v4173, %v2324
    %v4206 = vadd.f32 %v4174, %v2320
    %v4207 = vadd.f32 %v4175, %v2324
    %v4208 = vadd.f32 %v4176, %v2320
    %v4209 = vadd.f32 %v4177, %v2324
    %v4210 = vadd.f32 %v4178, %v2320
    %v4211 = vadd.f32 %v4179, %v2324
    %v4212 = vadd.f32 %v4180, %v2320
    %v4213 = vadd.f32 %v4181, %v2324
    %v4214 = vadd.f32 %v4182, %v2320
    %v4215 = vadd.f32 %v4183, %v2324
    %v4216 = vadd.f32 %v4184, %v2320
    %v4217 = vadd.f32 %v4185, %v2324
    %v4218 = vadd.f32 %v4186, %v2320
    %v4219 = vadd.f32 %v4187, %v2324
    %v4220 = vadd.f32 %v4188, %v2320
    %v4221 = vadd.f32 %v4189, %v2324
    %v4222 = vadd.f32 %v4190, %v2320
    %v4223 = vadd.f32 %v4191, %v2324
    %v4224 = vmax.f32 %v2327, 0.0
    %v4225 = vmax.f32 %v2328, 0.0
    %v4226 = vmax.f32 %v2329, 0.0
    %v4227 = vmax.f32 %v2330, 0.0
    %v4228 = vmax.f32 %v2331, 0.0
    %v4229 = vmax.f32 %v2332, 0.0
    %v4230 = vmax.f32 %v2333, 0.0
    %v4231 = vmax.f32 %v2334, 0.0
    %v4232 = vmax.f32 %v2335, 0.0
    %v4233 = vmax.f32 %v2336, 0.0
    %v4234 = vmax.f32 %v2337, 0.0
    %v4235 = vmax.f32 %v2338, 0.0
    %v4236 = vmax.f32 %v2339, 0.0
    %v4237 = vmax.f32 %v2340, 0.0
    %v4238 = vmax.f32 %v2341, 0.0
    %v4239 = vmax.f32 %v2342, 0.0
    %v4240 = vmax.f32 %v2343, 0.0
    %v4241 = vmax.f32 %v2344, 0.0
    %v4242 = vmax.f32 %v2345, 0.0
    %v4243 = vmax.f32 %v2346, 0.0
    %v4244 = vmax.f32 %v2347, 0.0
    %v4245 = vmax.f32 %v2348, 0.0
    %v4246 = vmax.f32 %v2349, 0.0
    %v4247 = vmax.f32 %v2350, 0.0
    %v4248 = vmax.f32 %v2351, 0.0
    %v4249 = vmax.f32 %v2352, 0.0
    %v4250 = vmax.f32 %v2353, 0.0
    %v4251 = vmax.f32 %v2354, 0.0
    %v4252 = vmax.f32 %v2355, 0.0
    %v4253 = vmax.f32 %v2356, 0.0
    %v4254 = vmax.f32 %v2357, 0.0
    %v4255 = vmax.f32 %v2358, 0.0
    %v4256 = vmax.f32 %v4192, 0.0
    %v4257 = vmax.f32 %v4193, 0.0
    %v4258 = vmax.f32 %v4194, 0.0
    %v4259 = vmax.f32 %v4195, 0.0
    %v4260 = vmax.f32 %v4196, 0.0
    %v4261 = vmax.f32 %v4197, 0.0
    %v4262 = vmax.f32 %v4198, 0.0
    %v4263 = vmax.f32 %v4199, 0.0
    %v4264 = vmax.f32 %v4200, 0.0
    %v4265 = vmax.f32 %v4201, 0.0
    %v4266 = vmax.f32 %v4202, 0.0
    %v4267 = vmax.f32 %v4203, 0.0
    %v4268 = vmax.f32 %v4204, 0.0
    %v4269 = vmax.f32 %v4205, 0.0
    %v4270 = vmax.f32 %v4206, 0.0
    %v4271 = vmax.f32 %v4207, 0.0
    %v4272 = vmax.f32 %v4208, 0.0
    %v4273 = vmax.f32 %v4209, 0.0
    %v4274 = vmax.f32 %v4210, 0.0
    %v4275 = vmax.f32 %v4211, 0.0
    %v4276 = vmax.f32 %v4212, 0.0
    %v4277 = vmax.f32 %v4213, 0.0
    %v4278 = vmax.f32 %v4214, 0.0
    %v4279 = vmax.f32 %v4215, 0.0
    %v4280 = vmax.f32 %v4216, 0.0
    %v4281 = vmax.f32 %v4217, 0.0
    %v4282 = vmax.f32 %v4218, 0.0
    %v4283 = vmax.f32 %v4219, 0.0
    %v4284 = vmax.f32 %v4220, 0.0
    %v4285 = vmax.f32 %v4221, 0.0
    %v4286 = vmax.f32 %v4222, 0.0
    %v4287 = vmax.f32 %v4223, 0.0
    %v4288 = vadd.f32 %v4224, %v4226
    %v4289 = vadd.f32 %v4288, %v4228
    %v4290 = vadd.f32 %v4289, %v4230
    %v4291 = vadd.f32 %v4290, %v4232
    %v4292 = vadd.f32 %v4291, %v4234
    %v4293 = vadd.f32 %v4292, %v4236
    %v4294 = vadd.f32 %v4293, %v4238
    %v4295 = vadd.f32 %v4294, %v4240
    %v4296 = vadd.f32 %v4295, %v4242
    %v4297 = vadd.f32 %v4296, %v4244
    %v4298 = vadd.f32 %v4297, %v4246
    %v4299 = vadd.f32 %v4298, %v4248
    %v4300 = vadd.f32 %v4299, %v4250
    %v4301 = vadd.f32 %v4300, %v4252
    %v4302 = vadd.f32 %v4301, %v4254
    %v4303 = vrot.slane %v4302, 4
    %v4304 = vadd.f32 %v4302, %v4303
    %v4305 = vrot.slane %v4304, 2
    %v4306 = vadd.f32 %v4304, %v4305
    %v4307 = vrot.slane %v4306, 1
    %v4308 = vadd.f32 %v4306, %v4307
    %v4309 = vadd.f32 %v4225, %v4227
    %v4310 = vadd.f32 %v4309, %v4229
    %v4311 = vadd.f32 %v4310, %v4231
    %v4312 = vadd.f32 %v4311, %v4233
    %v4313 = vadd.f32 %v4312, %v4235
    %v4314 = vadd.f32 %v4313, %v4237
    %v4315 = vadd.f32 %v4314, %v4239
    %v4316 = vadd.f32 %v4315, %v4241
    %v4317 = vadd.f32 %v4316, %v4243
    %v4318 = vadd.f32 %v4317, %v4245
    %v4319 = vadd.f32 %v4318, %v4247
    %v4320 = vadd.f32 %v4319, %v4249
    %v4321 = vadd.f32 %v4320, %v4251
    %v4322 = vadd.f32 %v4321, %v4253
    %v4323 = vadd.f32 %v4322, %v4255
    %v4324 = vrot.slane %v4323, 4
    %v4325 = vadd.f32 %v4323, %v4324
    %v4326 = vrot.slane %v4325, 2
    %v4327 = vadd.f32 %v4325, %v4326
    %v4328 = vrot.slane %v4327, 1
    %v4329 = vadd.f32 %v4327, %v4328
    %v4330 = vadd.f32 %v4256, %v4258
    %v4331 = vadd.f32 %v4330, %v4260
    %v4332 = vadd.f32 %v4331, %v4262
    %v4333 = vadd.f32 %v4332, %v4264
    %v4334 = vadd.f32 %v4333, %v4266
    %v4335 = vadd.f32 %v4334, %v4268
    %v4336 = vadd.f32 %v4335, %v4270
    %v4337 = vadd.f32 %v4336, %v4272
    %v4338 = vadd.f32 %v4337, %v4274
    %v4339 = vadd.f32 %v4338, %v4276
    %v4340 = vadd.f32 %v4339, %v4278
    %v4341 = vadd.f32 %v4340, %v4280
    %v4342 = vadd.f32 %v4341, %v4282
    %v4343 = vadd.f32 %v4342, %v4284
    %v4344 = vadd.f32 %v4343, %v4286
    %v4345 = vrot.slane %v4344, 4
    %v4346 = vadd.f32 %v4344, %v4345
    %v4347 = vrot.slane %v4346, 2
    %v4348 = vadd.f32 %v4346, %v4347
    %v4349 = vrot.slane %v4348, 1
    %v4350 = vadd.f32 %v4348, %v4349
    %v4351 = vadd.f32 %v4257, %v4259
    %v4352 = vadd.f32 %v4351, %v4261
    %v4353 = vadd.f32 %v4352, %v4263
    %v4354 = vadd.f32 %v4353, %v4265
    %v4355 = vadd.f32 %v4354, %v4267
    %v4356 = vadd.f32 %v4355, %v4269
    %v4357 = vadd.f32 %v4356, %v4271
    %v4358 = vadd.f32 %v4357, %v4273
    %v4359 = vadd.f32 %v4358, %v4275
    %v4360 = vadd.f32 %v4359, %v4277
    %v4361 = vadd.f32 %v4360, %v4279
    %v4362 = vadd.f32 %v4361, %v4281
    %v4363 = vadd.f32 %v4362, %v4283
    %v4364 = vadd.f32 %v4363, %v4285
    %v4365 = vadd.f32 %v4364, %v4287
    %v4366 = vrot.slane %v4365, 4
    %v4367 = vadd.f32 %v4365, %v4366
    %v4368 = vrot.slane %v4367, 2
    %v4369 = vadd.f32 %v4367, %v4368
    %v4370 = vrot.slane %v4369, 1
    %v4371 = vadd.f32 %v4369, %v4370
    %v4372 = vadd.f32 %v4308, %v4350
    %v4373 = vadd.f32 %v4329, %v4371
    %v4374 = vmul.f32 %v4224, %v4224
    %v4375 = vmul.f32 %v4225, %v4225
    %v4376 = vmul.f32 %v4226, %v4226
    %v4377 = vmul.f32 %v4227, %v4227
    %v4378 = vmul.f32 %v4228, %v4228
    %v4379 = vmul.f32 %v4229, %v4229
    %v4380 = vmul.f32 %v4230, %v4230
    %v4381 = vmul.f32 %v4231, %v4231
    %v4382 = vmul.f32 %v4232, %v4232
    %v4383 = vmul.f32 %v4233, %v4233
    %v4384 = vmul.f32 %v4234, %v4234
    %v4385 = vmul.f32 %v4235, %v4235
    %v4386 = vmul.f32 %v4236, %v4236
    %v4387 = vmul.f32 %v4237, %v4237
    %v4388 = vmul.f32 %v4238, %v4238
    %v4389 = vmul.f32 %v4239, %v4239
    %v4390 = vmul.f32 %v4240, %v4240
    %v4391 = vmul.f32 %v4241, %v4241
    %v4392 = vmul.f32 %v4242, %v4242
    %v4393 = vmul.f32 %v4243, %v4243
    %v4394 = vmul.f32 %v4244, %v4244
    %v4395 = vmul.f32 %v4245, %v4245
    %v4396 = vmul.f32 %v4246, %v4246
    %v4397 = vmul.f32 %v4247, %v4247
    %v4398 = vmul.f32 %v4248, %v4248
    %v4399 = vmul.f32 %v4249, %v4249
    %v4400 = vmul.f32 %v4250, %v4250
    %v4401 = vmul.f32 %v4251, %v4251
    %v4402 = vmul.f32 %v4252, %v4252
    %v4403 = vmul.f32 %v4253, %v4253
    %v4404 = vmul.f32 %v4254, %v4254
    %v4405 = vmul.f32 %v4255, %v4255
    %v4406 = vadd.f32 %v4374, %v4376
    %v4407 = vadd.f32 %v4406, %v4378
    %v4408 = vadd.f32 %v4407, %v4380
    %v4409 = vadd.f32 %v4408, %v4382
    %v4410 = vadd.f32 %v4409, %v4384
    %v4411 = vadd.f32 %v4410, %v4386
    %v4412 = vadd.f32 %v4411, %v4388
    %v4413 = vadd.f32 %v4412, %v4390
    %v4414 = vadd.f32 %v4413, %v4392
    %v4415 = vadd.f32 %v4414, %v4394
    %v4416 = vadd.f32 %v4415, %v4396
    %v4417 = vadd.f32 %v4416, %v4398
    %v4418 = vadd.f32 %v4417, %v4400
    %v4419 = vadd.f32 %v4418, %v4402
    %v4420 = vadd.f32 %v4419, %v4404
    %v4421 = vrot.slane %v4420, 4
    %v4422 = vadd.f32 %v4420, %v4421
    %v4423 = vrot.slane %v4422, 2
    %v4424 = vadd.f32 %v4422, %v4423
    %v4425 = vrot.slane %v4424, 1
    %v4426 = vadd.f32 %v4424, %v4425
    %v4427 = vadd.f32 %v4375, %v4377
    %v4428 = vadd.f32 %v4427, %v4379
    %v4429 = vadd.f32 %v4428, %v4381
    %v4430 = vadd.f32 %v4429, %v4383
    %v4431 = vadd.f32 %v4430, %v4385
    %v4432 = vadd.f32 %v4431, %v4387
    %v4433 = vadd.f32 %v4432, %v4389
    %v4434 = vadd.f32 %v4433, %v4391
    %v4435 = vadd.f32 %v4434, %v4393
    %v4436 = vadd.f32 %v4435, %v4395
    %v4437 = vadd.f32 %v4436, %v4397
    %v4438 = vadd.f32 %v4437, %v4399
    %v4439 = vadd.f32 %v4438, %v4401
    %v4440 = vadd.f32 %v4439, %v4403
    %v4441 = vadd.f32 %v4440, %v4405
    %v4442 = vrot.slane %v4441, 4
    %v4443 = vadd.f32 %v4441, %v4442
    %v4444 = vrot.slane %v4443, 2
    %v4445 = vadd.f32 %v4443, %v4444
    %v4446 = vrot.slane %v4445, 1
    %v4447 = vadd.f32 %v4445, %v4446
    %v4448 = vmul.f32 %v4256, %v4256
    %v4449 = vmul.f32 %v4257, %v4257
    %v4450 = vmul.f32 %v4258, %v4258
    %v4451 = vmul.f32 %v4259, %v4259
    %v4452 = vmul.f32 %v4260, %v4260
    %v4453 = vmul.f32 %v4261, %v4261
    %v4454 = vmul.f32 %v4262, %v4262
    %v4455 = vmul.f32 %v4263, %v4263
    %v4456 = vmul.f32 %v4264, %v4264
    %v4457 = vmul.f32 %v4265, %v4265
    %v4458 = vmul.f32 %v4266, %v4266
    %v4459 = vmul.f32 %v4267, %v4267
    %v4460 = vmul.f32 %v4268, %v4268
    %v4461 = vmul.f32 %v4269, %v4269
    %v4462 = vmul.f32 %v4270, %v4270
    %v4463 = vmul.f32 %v4271, %v4271
    %v4464 = vmul.f32 %v4272, %v4272
    %v4465 = vmul.f32 %v4273, %v4273
    %v4466 = vmul.f32 %v4274, %v4274
    %v4467 = vmul.f32 %v4275, %v4275
    %v4468 = vmul.f32 %v4276, %v4276
    %v4469 = vmul.f32 %v4277, %v4277
    %v4470 = vmul.f32 %v4278, %v4278
    %v4471 = vmul.f32 %v4279, %v4279
    %v4472 = vmul.f32 %v4280, %v4280
    %v4473 = vmul.f32 %v4281, %v4281
    %v4474 = vmul.f32 %v4282, %v4282
    %v4475 = vmul.f32 %v4283, %v4283
    %v4476 = vmul.f32 %v4284, %v4284
    %v4477 = vmul.f32 %v4285, %v4285
    %v4478 = vmul.f32 %v4286, %v4286
    %v4479 = vmul.f32 %v4287, %v4287
    %v4480 = vadd.f32 %v4448, %v4450
    %v4481 = vadd.f32 %v4480, %v4452
    %v4482 = vadd.f32 %v4481, %v4454
    %v4483 = vadd.f32 %v4482, %v4456
    %v4484 = vadd.f32 %v4483, %v4458
    %v4485 = vadd.f32 %v4484, %v4460
    %v4486 = vadd.f32 %v4485, %v4462
    %v4487 = vadd.f32 %v4486, %v4464
    %v4488 = vadd.f32 %v4487, %v4466
    %v4489 = vadd.f32 %v4488, %v4468
    %v4490 = vadd.f32 %v4489, %v4470
    %v4491 = vadd.f32 %v4490, %v4472
    %v4492 = vadd.f32 %v4491, %v4474
    %v4493 = vadd.f32 %v4492, %v4476
    %v4494 = vadd.f32 %v4493, %v4478
    %v4495 = vrot.slane %v4494, 4
    %v4496 = vadd.f32 %v4494, %v4495
    %v4497 = vrot.slane %v4496, 2
    %v4498 = vadd.f32 %v4496, %v4497
    %v4499 = vrot.slane %v4498, 1
    %v4500 = vadd.f32 %v4498, %v4499
    %v4501 = vadd.f32 %v4449, %v4451
    %v4502 = vadd.f32 %v4501, %v4453
    %v4503 = vadd.f32 %v4502, %v4455
    %v4504 = vadd.f32 %v4503, %v4457
    %v4505 = vadd.f32 %v4504, %v4459
    %v4506 = vadd.f32 %v4505, %v4461
    %v4507 = vadd.f32 %v4506, %v4463
    %v4508 = vadd.f32 %v4507, %v4465
    %v4509 = vadd.f32 %v4508, %v4467
    %v4510 = vadd.f32 %v4509, %v4469
    %v4511 = vadd.f32 %v4510, %v4471
    %v4512 = vadd.f32 %v4511, %v4473
    %v4513 = vadd.f32 %v4512, %v4475
    %v4514 = vadd.f32 %v4513, %v4477
    %v4515 = vadd.f32 %v4514, %v4479
    %v4516 = vrot.slane %v4515, 4
    %v4517 = vadd.f32 %v4515, %v4516
    %v4518 = vrot.slane %v4517, 2
    %v4519 = vadd.f32 %v4517, %v4518
    %v4520 = vrot.slane %v4519, 1
    %v4521 = vadd.f32 %v4519, %v4520
    %v4522 = vadd.f32 %v4426, %v4500
    %v4523 = vadd.f32 %v4447, %v4521
    %v4524 = vadd.f32 %v4372, %v4373
    %v4525 = vrcp.pop 512.0
    %v4526 = vmul.f32 %v4524, %v4525
    %v4527 = vadd.f32 %v4522, %v4523
    %v4528 = vmul.f32 %v4527, %v4525
    %v4529 = vmul.f32 %v4526, %v4526
    %v4530 = vsub.f32 %v4528, %v4529
    %v4531 = vmax.f32 %v4530, 0.0
    %v4532 = vadd.f32 %v4531, 1e-05
    %v4533 = vrsqrt.pop %v4532
    %v4534 = vld [vmem:[%s5] sm:$0x3]
    %v4536 = vlaneseq
    %v4537 = vshrl.u32 %v4536, 7
    %v4538 = vsub.s32 0, %v4537
    %v4539 = vrot.slane %v4534, %v4538
    %v4540 = vlaneseq
    %v4541 = vshrl.u32 %v4540, 7
    %v4542 = vsub.s32 1, %v4541
    %v4543 = vrot.slane %v4534, %v4542
    %v4546 = vmul.f32 %v4533, %v4539
    %v4547 = vmul.f32 %v4533, %v4543
    %v4548 = vld [vmem:[%s6] sm:$0x3]
    %v4549 = vmul.f32 %v4526, %v4546
    %v4550 = vmul.f32 %v4526, %v4547
    %v4553 = vcombine.low %v4549, %v4550
    %v4555 = vunpack.c.l.s4 1966171168
    %v4556 = vunpack.c.0.s8 %v4555
    %v4557 = vlaneseq
    %v4558 = vshrl.u32 %v4557, 7
    %v4559 = vsub.s32 %v4556, %v4558
    %v4560 = vrot.slane %v4553, %v4559
    %v4562 = vunpack.c.l.s4 1966171168
    %v4563 = vunpack.c.0.s8 %v4562
    %v4564 = vlaneseq
    %v4565 = vshrl.u32 %v4564, 7
    %v4566 = vsub.s32 %v4563, %v4565
    %v4567 = vrot.slane %v4560, %v4566
    %v4569 = vsub.f32 %v4548, %v4567
    %v4570 = vlaneseq
    %v4571 = vshrl.u32 %v4570, 7
    %v4572 = vsub.s32 0, %v4571
    %v4573 = vrot.slane %v4546, %v4572
    %v4574 = vlaneseq
    %v4575 = vshrl.u32 %v4574, 7
    %v4576 = vsub.s32 0, %v4575
    %v4577 = vrot.slane %v4547, %v4576
    %v4578 = vmul.f32 %v4224, %v4573
    %v4579 = vmul.f32 %v4225, %v4577
    %v4580 = vmul.f32 %v4226, %v4573
    %v4581 = vmul.f32 %v4227, %v4577
    %v4582 = vmul.f32 %v4228, %v4573
    %v4583 = vmul.f32 %v4229, %v4577
    %v4584 = vmul.f32 %v4230, %v4573
    %v4585 = vmul.f32 %v4231, %v4577
    %v4586 = vmul.f32 %v4232, %v4573
    %v4587 = vmul.f32 %v4233, %v4577
    %v4588 = vmul.f32 %v4234, %v4573
    %v4589 = vmul.f32 %v4235, %v4577
    %v4590 = vmul.f32 %v4236, %v4573
    %v4591 = vmul.f32 %v4237, %v4577
    %v4592 = vmul.f32 %v4238, %v4573
    %v4593 = vmul.f32 %v4239, %v4577
    %v4594 = vmul.f32 %v4240, %v4573
    %v4595 = vmul.f32 %v4241, %v4577
    %v4596 = vmul.f32 %v4242, %v4573
    %v4597 = vmul.f32 %v4243, %v4577
    %v4598 = vmul.f32 %v4244, %v4573
    %v4599 = vmul.f32 %v4245, %v4577
    %v4600 = vmul.f32 %v4246, %v4573
    %v4601 = vmul.f32 %v4247, %v4577
    %v4602 = vmul.f32 %v4248, %v4573
    %v4603 = vmul.f32 %v4249, %v4577
    %v4604 = vmul.f32 %v4250, %v4573
    %v4605 = vmul.f32 %v4251, %v4577
    %v4606 = vmul.f32 %v4252, %v4573
    %v4607 = vmul.f32 %v4253, %v4577
    %v4608 = vmul.f32 %v4254, %v4573
    %v4609 = vmul.f32 %v4255, %v4577
    %v4611 = vlaneseq
    %v4612 = vshrl.u32 %v4611, 7
    %v4613 = vsub.s32 0, %v4612
    %v4614 = vrot.slane %v4569, %v4613
    %v4615 = vlaneseq
    %v4616 = vshrl.u32 %v4615, 7
    %v4617 = vsub.s32 1, %v4616
    %v4618 = vrot.slane %v4569, %v4617
    %v4621 = vadd.f32 %v4578, %v4614
    %v4622 = vadd.f32 %v4579, %v4618
    %v4623 = vadd.f32 %v4580, %v4614
    %v4624 = vadd.f32 %v4581, %v4618
    %v4625 = vadd.f32 %v4582, %v4614
    %v4626 = vadd.f32 %v4583, %v4618
    %v4627 = vadd.f32 %v4584, %v4614
    %v4628 = vadd.f32 %v4585, %v4618
    %v4629 = vadd.f32 %v4586, %v4614
    %v4630 = vadd.f32 %v4587, %v4618
    %v4631 = vadd.f32 %v4588, %v4614
    %v4632 = vadd.f32 %v4589, %v4618
    %v4633 = vadd.f32 %v4590, %v4614
    %v4634 = vadd.f32 %v4591, %v4618
    %v4635 = vadd.f32 %v4592, %v4614
    %v4636 = vadd.f32 %v4593, %v4618
    %v4637 = vadd.f32 %v4594, %v4614
    %v4638 = vadd.f32 %v4595, %v4618
    %v4639 = vadd.f32 %v4596, %v4614
    %v4640 = vadd.f32 %v4597, %v4618
    %v4641 = vadd.f32 %v4598, %v4614
    %v4642 = vadd.f32 %v4599, %v4618
    %v4643 = vadd.f32 %v4600, %v4614
    %v4644 = vadd.f32 %v4601, %v4618
    %v4645 = vadd.f32 %v4602, %v4614
    %v4646 = vadd.f32 %v4603, %v4618
    %v4647 = vadd.f32 %v4604, %v4614
    %v4648 = vadd.f32 %v4605, %v4618
    %v4649 = vadd.f32 %v4606, %v4614
    %v4650 = vadd.f32 %v4607, %v4618
    %v4651 = vadd.f32 %v4608, %v4614
    %v4652 = vadd.f32 %v4609, %v4618
    %v4653 = vmul.f32 %v4256, %v4573
    %v4654 = vmul.f32 %v4257, %v4577
    %v4655 = vmul.f32 %v4258, %v4573
    %v4656 = vmul.f32 %v4259, %v4577
    %v4657 = vmul.f32 %v4260, %v4573
    %v4658 = vmul.f32 %v4261, %v4577
    %v4659 = vmul.f32 %v4262, %v4573
    %v4660 = vmul.f32 %v4263, %v4577
    %v4661 = vmul.f32 %v4264, %v4573
    %v4662 = vmul.f32 %v4265, %v4577
    %v4663 = vmul.f32 %v4266, %v4573
    %v4664 = vmul.f32 %v4267, %v4577
    %v4665 = vmul.f32 %v4268, %v4573
    %v4666 = vmul.f32 %v4269, %v4577
    %v4667 = vmul.f32 %v4270, %v4573
    %v4668 = vmul.f32 %v4271, %v4577
    %v4669 = vmul.f32 %v4272, %v4573
    %v4670 = vmul.f32 %v4273, %v4577
    %v4671 = vmul.f32 %v4274, %v4573
    %v4672 = vmul.f32 %v4275, %v4577
    %v4673 = vmul.f32 %v4276, %v4573
    %v4674 = vmul.f32 %v4277, %v4577
    %v4675 = vmul.f32 %v4278, %v4573
    %v4676 = vmul.f32 %v4279, %v4577
    %v4677 = vmul.f32 %v4280, %v4573
    %v4678 = vmul.f32 %v4281, %v4577
    %v4679 = vmul.f32 %v4282, %v4573
    %v4680 = vmul.f32 %v4283, %v4577
    %v4681 = vmul.f32 %v4284, %v4573
    %v4682 = vmul.f32 %v4285, %v4577
    %v4683 = vmul.f32 %v4286, %v4573
    %v4684 = vmul.f32 %v4287, %v4577
    %v4685 = vadd.f32 %v4653, %v4614
    %v4686 = vadd.f32 %v4654, %v4618
    %v4687 = vadd.f32 %v4655, %v4614
    %v4688 = vadd.f32 %v4656, %v4618
    %v4689 = vadd.f32 %v4657, %v4614
    %v4690 = vadd.f32 %v4658, %v4618
    %v4691 = vadd.f32 %v4659, %v4614
    %v4692 = vadd.f32 %v4660, %v4618
    %v4693 = vadd.f32 %v4661, %v4614
    %v4694 = vadd.f32 %v4662, %v4618
    %v4695 = vadd.f32 %v4663, %v4614
    %v4696 = vadd.f32 %v4664, %v4618
    %v4697 = vadd.f32 %v4665, %v4614
    %v4698 = vadd.f32 %v4666, %v4618
    %v4699 = vadd.f32 %v4667, %v4614
    %v4700 = vadd.f32 %v4668, %v4618
    %v4701 = vadd.f32 %v4669, %v4614
    %v4702 = vadd.f32 %v4670, %v4618
    %v4703 = vadd.f32 %v4671, %v4614
    %v4704 = vadd.f32 %v4672, %v4618
    %v4705 = vadd.f32 %v4673, %v4614
    %v4706 = vadd.f32 %v4674, %v4618
    %v4707 = vadd.f32 %v4675, %v4614
    %v4708 = vadd.f32 %v4676, %v4618
    %v4709 = vadd.f32 %v4677, %v4614
    %v4710 = vadd.f32 %v4678, %v4618
    %v4711 = vadd.f32 %v4679, %v4614
    %v4712 = vadd.f32 %v4680, %v4618
    %v4713 = vadd.f32 %v4681, %v4614
    %v4714 = vadd.f32 %v4682, %v4618
    %v4715 = vadd.f32 %v4683, %v4614
    %v4716 = vadd.f32 %v4684, %v4618
    %4717 = vst [vmem:[#allocation10] sm:$0xff] %v4621
    %4718 = vst [vmem:[#allocation10 + $0x8] sm:$0xff] %v4622
    %4719 = vst [vmem:[#allocation10 + $0x20] sm:$0xff] %v4623
    %4720 = vst [vmem:[#allocation10 + $0x28] sm:$0xff] %v4624
    %4721 = vst [vmem:[#allocation10 + $0x40] sm:$0xff] %v4625
    %4722 = vst [vmem:[#allocation10 + $0x48] sm:$0xff] %v4626
    %4723 = vst [vmem:[#allocation10 + $0x60] sm:$0xff] %v4627
    %4724 = vst [vmem:[#allocation10 + $0x68] sm:$0xff] %v4628
    %4725 = vst [vmem:[#allocation10 + $0x80] sm:$0xff] %v4629
    %4726 = vst [vmem:[#allocation10 + $0x88] sm:$0xff] %v4630
    %4727 = vst [vmem:[#allocation10 + $0xa0] sm:$0xff] %v4631
    %4728 = vst [vmem:[#allocation10 + $0xa8] sm:$0xff] %v4632
    %4729 = vst [vmem:[#allocation10 + $0xc0] sm:$0xff] %v4633
    %4730 = vst [vmem:[#allocation10 + $0xc8] sm:$0xff] %v4634
    %4731 = vst [vmem:[#allocation10 + $0xe0] sm:$0xff] %v4635
    %4732 = vst [vmem:[#allocation10 + $0xe8] sm:$0xff] %v4636
    %4733 = vst [vmem:[#allocation10 + $0x100] sm:$0xff] %v4637
    %4734 = vst [vmem:[#allocation10 + $0x108] sm:$0xff] %v4638
    %4735 = vst [vmem:[#allocation10 + $0x120] sm:$0xff] %v4639
    %4736 = vst [vmem:[#allocation10 + $0x128] sm:$0xff] %v4640
    %4737 = vst [vmem:[#allocation10 + $0x140] sm:$0xff] %v4641
    %4738 = vst [vmem:[#allocation10 + $0x148] sm:$0xff] %v4642
    %4739 = vst [vmem:[#allocation10 + $0x160] sm:$0xff] %v4643
    %4740 = vst [vmem:[#allocation10 + $0x168] sm:$0xff] %v4644
    %4741 = vst [vmem:[#allocation10 + $0x180] sm:$0xff] %v4645
    %4742 = vst [vmem:[#allocation10 + $0x188] sm:$0xff] %v4646
    %4743 = vst [vmem:[#allocation10 + $0x1a0] sm:$0xff] %v4647
    %4744 = vst [vmem:[#allocation10 + $0x1a8] sm:$0xff] %v4648
    %4745 = vst [vmem:[#allocation10 + $0x1c0] sm:$0xff] %v4649
    %4746 = vst [vmem:[#allocation10 + $0x1c8] sm:$0xff] %v4650
    %4747 = vst [vmem:[#allocation10 + $0x1e0] sm:$0xff] %v4651
    %4748 = vst [vmem:[#allocation10 + $0x1e8] sm:$0xff] %v4652
    %s4749 = scalar_lea.vmem [#allocation10], 16
    %4750 = vst [vmem:[%s4749] sm:$0xff] %v4685
    %4751 = vst [vmem:[%s4749 + $0x8] sm:$0xff] %v4686
    %4752 = vst [vmem:[%s4749 + $0x20] sm:$0xff] %v4687
    %4753 = vst [vmem:[%s4749 + $0x28] sm:$0xff] %v4688
    %4754 = vst [vmem:[%s4749 + $0x40] sm:$0xff] %v4689
    %4755 = vst [vmem:[%s4749 + $0x48] sm:$0xff] %v4690
    %4756 = vst [vmem:[%s4749 + $0x60] sm:$0xff] %v4691
    %4757 = vst [vmem:[%s4749 + $0x68] sm:$0xff] %v4692
    %4758 = vst [vmem:[%s4749 + $0x80] sm:$0xff] %v4693
    %4759 = vst [vmem:[%s4749 + $0x88] sm:$0xff] %v4694
    %4760 = vst [vmem:[%s4749 + $0xa0] sm:$0xff] %v4695
    %4761 = vst [vmem:[%s4749 + $0xa8] sm:$0xff] %v4696
    %4762 = vst [vmem:[%s4749 + $0xc0] sm:$0xff] %v4697
    %4763 = vst [vmem:[%s4749 + $0xc8] sm:$0xff] %v4698
    %4764 = vst [vmem:[%s4749 + $0xe0] sm:$0xff] %v4699
    %4765 = vst [vmem:[%s4749 + $0xe8] sm:$0xff] %v4700
    %4766 = vst [vmem:[%s4749 + $0x100] sm:$0xff] %v4701
    %4767 = vst [vmem:[%s4749 + $0x108] sm:$0xff] %v4702
    %4768 = vst [vmem:[%s4749 + $0x120] sm:$0xff] %v4703
    %4769 = vst [vmem:[%s4749 + $0x128] sm:$0xff] %v4704
    %4770 = vst [vmem:[%s4749 + $0x140] sm:$0xff] %v4705
    %4771 = vst [vmem:[%s4749 + $0x148] sm:$0xff] %v4706
    %4772 = vst [vmem:[%s4749 + $0x160] sm:$0xff] %v4707
    %4773 = vst [vmem:[%s4749 + $0x168] sm:$0xff] %v4708
    %4774 = vst [vmem:[%s4749 + $0x180] sm:$0xff] %v4709
    %4775 = vst [vmem:[%s4749 + $0x188] sm:$0xff] %v4710
    %4776 = vst [vmem:[%s4749 + $0x1a0] sm:$0xff] %v4711
    %4777 = vst [vmem:[%s4749 + $0x1a8] sm:$0xff] %v4712
    %4778 = vst [vmem:[%s4749 + $0x1c0] sm:$0xff] %v4713
    %4779 = vst [vmem:[%s4749 + $0x1c8] sm:$0xff] %v4714
    %4780 = vst [vmem:[%s4749 + $0x1e0] sm:$0xff] %v4715
    %4781 = vst [vmem:[%s4749 + $0x1e8] sm:$0xff] %v4716
    // Predicated region
    $region46: #{tpu_custom_call.1} parent=1 // pred_check
      _
    $region47: #{tpu_custom_call.1} parent=1 // pred_check_branch
      %4783 = sbr.rel (0) target = $region49
    $region48: #{tpu_custom_call.1} parent=1 // pred_region
      %s4785 = ssub.s32 8192, 8192
      %4786 = vsyncadd [#allocation4], %s4785
      %s4787 = sshll.u32 [#allocation10], 4
      %s4788 = int_to_ptr.vmem [resolvable:$true] %s4787
      %4793 = dma.vmem_to_hbm [thread:$0]  %s4788, 8192, %s7, [#allocation4], 256, 256, 16
    $region49: #{tpu_custom_call.1} parent=1 // pred_fallthru
      _
    // Predicated region
    $region50: #{tpu_custom_call.1} parent=1 // pred_check
      _
    $region51: #{tpu_custom_call.1} parent=1 // pred_check_branch
      %4795 = sbr.rel (0) target = $region53
    $region52: #{tpu_custom_call.1} parent=1 // pred_region
      %4796 = dma.done [#allocation4], 8192
    $region53: #{tpu_custom_call.1} parent=1 // pred_fallthru
      _
    %4797 = vsyncpa [#allocation3], 1
    %4798 = vsyncpa [#allocation6], 1
    %4799 = vsyncpa [#allocation9], 1
    %4800 = vsyncpa [#allocation4], 1

</llo_original>
